<compile_context>
chip_gen: v6e
topology: v6e:2x2x1
jax: 0.10.0
libtpu: 0.0.40
codegen_flags: <defaults>
</compile_context>

<pallas_src>
import math

import jax
import jax.numpy as jnp
from jax import lax
from jax.experimental import pallas as pl
from jax.experimental.pallas import tpu as pltpu

THRESH = 0.3
TAU_M = 9.4912
ALPHA = math.exp(-1.0 / TAU_M)   # same constant used by kernel and reference


def _round_up(x, m):
    return (x + m - 1) // m * m


# ---------------------------------------------------------------------------
# Stage 1: hoisted input projection  (batch*win, num_input) @ (num_input, HP)
# ---------------------------------------------------------------------------
def _proj_kernel(x_ref, w_ref, o_ref):
    # x arrives as bf16 (exact 0/1 spikes); upcast so the matmul is pure f32.
    x = x_ref[...].astype(jnp.float32)
    o_ref[...] = jnp.dot(x, w_ref[...], preferred_element_type=jnp.float32)


# ---------------------------------------------------------------------------
# Stage 2: serial recurrence over time for one batch tile
#   xw_ref : (win, TB, HP)   pre-projected input current per step
#   whh_ref: (HP, HP)        hidden->hidden (zero-padded)
#   who_ref: (HP, OP)        hidden->output (zero-padded)
#   out_ref: (TB, OP)        mean output spike count (lane-dense)
# ---------------------------------------------------------------------------
def _recurrence_kernel(xw_ref, whh_ref, who_ref, out_ref):
    win, tb, hp = xw_ref.shape
    op = who_ref.shape[1]

    alpha = jnp.float32(ALPHA)
    w_hh = whh_ref[...]
    w_ho = who_ref[...]

    def step(t, carry):
        h_mem, h_spike, o_mem, o_spike, o_sum = carry

        # --- mem_update_rnn (input projection already done: xw_ref[t]) ---
        m = (xw_ref[t]
             + jnp.dot(h_spike, w_hh, preferred_element_type=jnp.float32)
             + h_mem * (alpha * (1.0 - h_spike)))
        h_spike = (m > THRESH).astype(jnp.float32)
        # m == THRESH: no spike AND membrane reset to 0 (matches m*(m<thresh)).
        h_mem = jnp.where(m < THRESH, m, 0.0)

        # --- mem_update (output layer) ---
        om = (o_mem * (alpha * (1.0 - o_spike))
              + jnp.dot(h_spike, w_ho, preferred_element_type=jnp.float32))
        o_spike = (om > THRESH).astype(jnp.float32)
        o_mem = jnp.where(om < THRESH, om, 0.0)

        o_sum = o_sum + o_spike
        return (h_mem, h_spike, o_mem, o_spike, o_sum)

    z_h = jnp.zeros((tb, hp), jnp.float32)
    z_o = jnp.zeros((tb, op), jnp.float32)
    final = lax.fori_loop(0, win, step, (z_h, z_h, z_o, z_o, z_o), unroll=True)

    out_ref[...] = final[4] * jnp.float32(1.0 / win)


# ---------------------------------------------------------------------------
# Wrapper
# ---------------------------------------------------------------------------
@jax.jit
def rsnn_forward(x_bwi, w_ih, w_hh, w_ho):
    """RSNN forward.

    x_bwi: (batch, win, num_input) spike train (values 0/1)
    w_ih : (num_input, hidden)   == torch fc_ih.weight.T
    w_hh : (hidden, hidden)      == torch fc_hh.weight.T
    w_ho : (hidden, num_output)  == torch fc_ho.weight.T
    returns (batch, num_output) float32  ==  o_sumspike / win
    """
    batch, win, num_input = x_bwi.shape
    hidden = w_hh.shape[0]
    num_out = w_ho.shape[1]

    HP = _round_up(hidden, 128)          # lane-pad hidden
    OP = _round_up(num_out, 128)         # lane-pad output (lane-dense store)
    TB = min(128, _round_up(batch, 8))   # batch tile (MXU M / sublanes)
    B_pad = _round_up(batch, TB)

    # ----- Stage 1: projection, M = batch*win (tiled) -----
    M = batch * win
    if M <= 256:
        tm = _round_up(M, 8)
        M_pad = tm
    else:
        tm = 256
        M_pad = _round_up(M, tm)

    # Spikes are 0/1 -> exact in bf16; halves HBM traffic of the largest array.
    x2d = x_bwi.reshape(M, num_input).astype(jnp.bfloat16)
    x2d = jnp.pad(x2d, ((0, M_pad - M), (0, 0)))
    w_ih_p = jnp.pad(w_ih.astype(jnp.float32), ((0, 0), (0, HP - hidden)))

    xw = pl.pallas_call(
        _proj_kernel,
        out_shape=jax.ShapeDtypeStruct((M_pad, HP), jnp.float32),
        grid_spec=pltpu.PrefetchScalarGridSpec(
            num_scalar_prefetch=0,
            grid=(M_pad // tm,),
            in_specs=[
                pl.BlockSpec((tm, num_input), lambda i: (i, 0)),
                pl.BlockSpec((num_input, HP), lambda i: (0, 0)),
            ],
            out_specs=pl.BlockSpec((tm, HP), lambda i: (i, 0)),
        ),
        compiler_params=pltpu.CompilerParams(
            dimension_semantics=("parallel",)),
    )(x2d, w_ih_p)

    # Reorder only the small projected activation to time-major, pad batch.
    xw = xw[:M].reshape(batch, win, HP).transpose(1, 0, 2)   # (win, batch, HP)
    xw = jnp.pad(xw, ((0, 0), (0, B_pad - batch), (0, 0)))   # (win, B_pad, HP)

    # Zero-padded recurrent / output weights (padded rows/cols stay inert:
    # padded spikes are 0, padded membranes stay 0).
    w_hh_p = jnp.pad(w_hh.astype(jnp.float32),
                     ((0, HP - hidden), (0, HP - hidden)))
    w_ho_p = jnp.pad(w_ho.astype(jnp.float32),
                     ((0, HP - hidden), (0, OP - num_out)))

    # ----- Stage 2: recurrence, gridded over batch tiles (parallel) -----
    out_p = pl.pallas_call(
        _recurrence_kernel,
        out_shape=jax.ShapeDtypeStruct((B_pad, OP), jnp.float32),
        grid_spec=pltpu.PrefetchScalarGridSpec(
            num_scalar_prefetch=0,
            grid=(B_pad // TB,),
            in_specs=[
                pl.BlockSpec((win, TB, HP), lambda b: (0, b, 0)),
                pl.BlockSpec((HP, HP), lambda b: (0, 0)),
                pl.BlockSpec((HP, OP), lambda b: (0, 0)),
            ],
            out_specs=pl.BlockSpec((TB, OP), lambda b: (b, 0)),
        ),
        compiler_params=pltpu.CompilerParams(
            dimension_semantics=("parallel",)),
    )(xw, w_hh_p, w_ho_p)

    return out_p[:batch, :num_out]


# ---------------------------------------------------------------------------
# Pure-JAX reference mirroring the PyTorch forward (validation only)
# ---------------------------------------------------------------------------
def rsnn_reference(x_bwi, w_ih, w_hh, w_ho):
    batch, win, _ = x_bwi.shape
    hidden = w_hh.shape[0]
    num_out = w_ho.shape[1]
    alpha = jnp.float32(ALPHA)

    h_mem = jnp.zeros((batch, hidden), jnp.float32)
    h_spike = jnp.zeros((batch, hidden), jnp.float32)
    o_mem = jnp.zeros((batch, num_out), jnp.float32)
    o_spike = jnp.zeros((batch, num_out), jnp.float32)
    o_sum = jnp.zeros((batch, num_out), jnp.float32)
    for t in range(win):
        x = x_bwi[:, t, :]
        m = x @ w_ih + h_spike @ w_hh + h_mem * alpha * (1.0 - h_spike)
        h_spike = (m > THRESH).astype(jnp.float32)
        h_mem = m * (m < THRESH).astype(jnp.float32)
        m = o_mem * alpha * (1.0 - o_spike) + h_spike @ w_ho
        o_spike = (m > THRESH).astype(jnp.float32)
        o_mem = m * (m < THRESH).astype(jnp.float32)
        o_sum = o_sum + o_spike
    return o_sum / win


if __name__ == "__main__":
    # Small shapes consistent with the module's forward:
    # input is (batch, win, num_input); num_input = 34*34*2 in the original.
    batch = 4
    win = 8
    num_input = 34 * 34 * 2   # 2312
    num_hidden = 64
    num_output = 10

    key = jax.random.PRNGKey(0)
    k_x, k_ih, k_hh, k_ho = jax.random.split(key, 4)

    # Binary spike-like input (as an NMNIST spike train would be).
    x = (jax.random.uniform(k_x, (batch, win, num_input)) < 0.1).astype(jnp.float32)

    # Deterministic weight init (Kaiming-uniform-like, matching nn.Linear fan-in),
    # stored transposed: (fan_in, fan_out) so the kernel does x @ W.
    def linear_w(k, fan_in, fan_out):
        bound = 1.0 / (fan_in ** 0.5)
        return jax.random.uniform(k, (fan_in, fan_out), jnp.float32, -bound, bound)

    w_ih = linear_w(k_ih, num_input, num_hidden)
    w_hh = linear_w(k_hh, num_hidden, num_hidden)
    w_ho = linear_w(k_ho, num_hidden, num_output)

    out = rsnn_forward(x, w_ih, w_hh, w_ho)
    out = jax.block_until_ready(out)

    ref = rsnn_reference(x, w_ih, w_hh, w_ho)
    assert out.shape == (batch, num_output)
    assert jnp.allclose(out, ref, atol=1e-4, rtol=1e-4), (out, ref)

    print("KERNEL_OK")
</pallas_src>

<mosaic_0001>
module attributes {stable_mosaic.version = 11 : i64} {
  func.func @_proj_kernel(%arg0: i32, %arg1: memref<32x2312xbf16, #tpu.memory_space<vmem>>, %arg2: memref<2312x128xf32, #tpu.memory_space<vmem>>, %arg3: memref<32x128xf32, #tpu.memory_space<vmem>>) attributes {dimension_semantics = [#tpu.dimension_semantics<parallel>], iteration_bounds = array<i64: 1>, scalar_prefetch = 0 : i64, scratch_operands = 0 : i64, tpu.core_type = #tpu.core_type<tc>, window_params = [{transform_indices = @transform_0, window_bounds = array<i64: 32, 2312>}, {pipeline_mode = #tpu.pipeline_mode<synchronous>, transform_indices = @transform_1, window_bounds = array<i64: 2312, 128>}, {transform_indices = @transform_2, window_bounds = array<i64: 32, 128>}]} {
    %c0 = arith.constant 0 : index
    %c0_0 = arith.constant 0 : index
    %0 = vector.load %arg1[%c0, %c0_0] : memref<32x2312xbf16, #tpu.memory_space<vmem>>, vector<32x2312xbf16>
    %1 = arith.extf %0 : vector<32x2312xbf16> to vector<32x2312xf32>
    %c0_1 = arith.constant 0 : index
    %c0_2 = arith.constant 0 : index
    %2 = vector.load %arg2[%c0_1, %c0_2] : memref<2312x128xf32, #tpu.memory_space<vmem>>, vector<2312x128xf32>
    %cst = arith.constant dense<0.000000e+00> : vector<32x128xf32>
    %3 = tpu.matmul %1, %2, %cst {dimension_numbers = #tpu.dot_dimension_numbers<[1], [0], [0], [1], [0, 0, 1, 1], [], []>} : vector<32x2312xf32>, vector<2312x128xf32>, vector<32x128xf32> -> vector<32x128xf32>
    %c0_3 = arith.constant 0 : index
    %c0_4 = arith.constant 0 : index
    %4 = vector.load %arg3[%c0_3, %c0_4] : memref<32x128xf32, #tpu.memory_space<vmem>>, vector<32x128xf32>
    tpu.vector_store %arg3[%c0_3, %c0_4], %3 {strides = array<i32>} : memref<32x128xf32, #tpu.memory_space<vmem>>, vector<32x128xf32>,
    return
  }
  func.func @transform_0(%arg0: i32) -> (i32, i32) {
    %c0_i32 = arith.constant 0 : i32
    %c0_i32_0 = arith.constant 0 : i32
    return %arg0, %c0_i32 : i32, i32
  }
  func.func @transform_1(%arg0: i32) -> (i32, i32) {
    %c0_i32 = arith.constant 0 : i32
    %c0_i32_0 = arith.constant 0 : i32
    %c0_i32_1 = arith.constant 0 : i32
    return %c0_i32, %c0_i32_0 : i32, i32
  }
  func.func @transform_2(%arg0: i32) -> (i32, i32) {
    %c0_i32 = arith.constant 0 : i32
    %c0_i32_0 = arith.constant 0 : i32
    return %arg0, %c0_i32 : i32, i32
  }
}

module attributes {stable_mosaic.version = 11 : i64} {
  func.func @_recurrence_kernel(%arg0: i32, %arg1: memref<8x8x128xf32, #tpu.memory_space<vmem>>, %arg2: memref<128x128xf32, #tpu.memory_space<vmem>>, %arg3: memref<128x128xf32, #tpu.memory_space<vmem>>, %arg4: memref<8x128xf32, #tpu.memory_space<vmem>>) attributes {dimension_semantics = [#tpu.dimension_semantics<parallel>], iteration_bounds = array<i64: 1>, scalar_prefetch = 0 : i64, scratch_operands = 0 : i64, tpu.core_type = #tpu.core_type<tc>, window_params = [{transform_indices = @transform_0, window_bounds = array<i64: 8, 8, 128>}, {pipeline_mode = #tpu.pipeline_mode<synchronous>, transform_indices = @transform_1, window_bounds = array<i64: 128, 128>}, {pipeline_mode = #tpu.pipeline_mode<synchronous>, transform_indices = @transform_2, window_bounds = array<i64: 128, 128>}, {transform_indices = @transform_3, window_bounds = array<i64: 8, 128>}]} {
    %c0 = arith.constant 0 : index
    %c0_0 = arith.constant 0 : index
    %0 = vector.load %arg2[%c0, %c0_0] : memref<128x128xf32, #tpu.memory_space<vmem>>, vector<128x128xf32>
    %c0_1 = arith.constant 0 : index
    %c0_2 = arith.constant 0 : index
    %1 = vector.load %arg3[%c0_1, %c0_2] : memref<128x128xf32, #tpu.memory_space<vmem>>, vector<128x128xf32>
    %cst = arith.constant 0.000000e+00 : f32
    %2 = vector.broadcast %cst : f32 to vector<8x128xf32>
    %cst_3 = arith.constant 0.000000e+00 : f32
    %3 = vector.broadcast %cst_3 : f32 to vector<8x128xf32>
    %cst_4 = arith.constant 0.899999797 : f32
    %c0_i32 = arith.constant 0 : i32
    %4 = arith.index_cast %c0_i32 : i32 to index
    %c0_5 = arith.constant 0 : index
    %c0_6 = arith.constant 0 : index
    %5 = vector.load %arg1[%4, %c0_5, %c0_6] : memref<8x8x128xf32, #tpu.memory_space<vmem>>, vector<1x8x128xf32>
    %6 = vector.shape_cast %5 : vector<1x8x128xf32> to vector<8x128xf32>
    %cst_7 = arith.constant dense<0.000000e+00> : vector<8x128xf32>
    %7 = tpu.matmul %2, %0, %cst_7 {dimension_numbers = #tpu.dot_dimension_numbers<[1], [0], [0], [1], [0, 0, 1, 1], [], []>} : vector<8x128xf32>, vector<128x128xf32>, vector<8x128xf32> -> vector<8x128xf32>
    %8 = arith.addf %6, %7 : vector<8x128xf32>
    %cst_8 = arith.constant 1.000000e+00 : f32
    %9 = vector.broadcast %cst_8 : f32 to vector<8x128xf32>
    %10 = arith.subf %9, %2 : vector<8x128xf32>
    %11 = vector.broadcast %cst_4 : f32 to vector<8x128xf32>
    %12 = arith.mulf %11, %10 : vector<8x128xf32>
    %13 = arith.mulf %2, %12 : vector<8x128xf32>
    %14 = arith.addf %8, %13 : vector<8x128xf32>
    %cst_9 = arith.constant 3.000000e-01 : f32
    %15 = vector.broadcast %cst_9 : f32 to vector<8x128xf32>
    %16 = arith.cmpf ogt, %14, %15 : vector<8x128xf32>
    %17 = arith.extui %16 : vector<8x128xi1> to vector<8x128xi32>
    %18 = arith.sitofp %17 : vector<8x128xi32> to vector<8x128xf32>
    %cst_10 = arith.constant 3.000000e-01 : f32
    %19 = vector.broadcast %cst_10 : f32 to vector<8x128xf32>
    %20 = arith.cmpf olt, %14, %19 : vector<8x128xf32>
    %cst_11 = arith.constant 0.000000e+00 : f32
    %21 = vector.broadcast %cst_11 : f32 to vector<8x128xf32>
    %22 = arith.select %20, %14, %21 : vector<8x128xi1>, vector<8x128xf32>
    %cst_12 = arith.constant 1.000000e+00 : f32
    %23 = vector.broadcast %cst_12 : f32 to vector<8x128xf32>
    %24 = arith.subf %23, %3 : vector<8x128xf32>
    %25 = vector.broadcast %cst_4 : f32 to vector<8x128xf32>
    %26 = arith.mulf %25, %24 : vector<8x128xf32>
    %27 = arith.mulf %3, %26 : vector<8x128xf32>
    %cst_13 = arith.constant dense<0.000000e+00> : vector<8x128xf32>
    %28 = tpu.matmul %18, %1, %cst_13 {dimension_numbers = #tpu.dot_dimension_numbers<[1], [0], [0], [1], [0, 0, 1, 1], [], []>} : vector<8x128xf32>, vector<128x128xf32>, vector<8x128xf32> -> vector<8x128xf32>
    %29 = arith.addf %27, %28 : vector<8x128xf32>
    %cst_14 = arith.constant 3.000000e-01 : f32
    %30 = vector.broadcast %cst_14 : f32 to vector<8x128xf32>
    %31 = arith.cmpf ogt, %29, %30 : vector<8x128xf32>
    %32 = arith.extui %31 : vector<8x128xi1> to vector<8x128xi32>
    %33 = arith.sitofp %32 : vector<8x128xi32> to vector<8x128xf32>
    %cst_15 = arith.constant 3.000000e-01 : f32
    %34 = vector.broadcast %cst_15 : f32 to vector<8x128xf32>
    %35 = arith.cmpf olt, %29, %34 : vector<8x128xf32>
    %cst_16 = arith.constant 0.000000e+00 : f32
    %36 = vector.broadcast %cst_16 : f32 to vector<8x128xf32>
    %37 = arith.select %35, %29, %36 : vector<8x128xi1>, vector<8x128xf32>
    %38 = arith.addf %3, %33 : vector<8x128xf32>
    %c1_i32 = arith.constant 1 : i32
    %39 = arith.index_cast %c1_i32 : i32 to index
    %c0_17 = arith.constant 0 : index
    %c0_18 = arith.constant 0 : index
    %40 = vector.load %arg1[%39, %c0_17, %c0_18] : memref<8x8x128xf32, #tpu.memory_space<vmem>>, vector<1x8x128xf32>
    %41 = vector.shape_cast %40 : vector<1x8x128xf32> to vector<8x128xf32>
    %cst_19 = arith.constant dense<0.000000e+00> : vector<8x128xf32>
    %42 = tpu.matmul %18, %0, %cst_19 {dimension_numbers = #tpu.dot_dimension_numbers<[1], [0], [0], [1], [0, 0, 1, 1], [], []>} : vector<8x128xf32>, vector<128x128xf32>, vector<8x128xf32> -> vector<8x128xf32>
    %43 = arith.addf %41, %42 : vector<8x128xf32>
    %cst_20 = arith.constant 1.000000e+00 : f32
    %44 = vector.broadcast %cst_20 : f32 to vector<8x128xf32>
    %45 = arith.subf %44, %18 : vector<8x128xf32>
    %46 = vector.broadcast %cst_4 : f32 to vector<8x128xf32>
    %47 = arith.mulf %46, %45 : vector<8x128xf32>
    %48 = arith.mulf %22, %47 : vector<8x128xf32>
    %49 = arith.addf %43, %48 : vector<8x128xf32>
    %cst_21 = arith.constant 3.000000e-01 : f32
    %50 = vector.broadcast %cst_21 : f32 to vector<8x128xf32>
    %51 = arith.cmpf ogt, %49, %50 : vector<8x128xf32>
    %52 = arith.extui %51 : vector<8x128xi1> to vector<8x128xi32>
    %53 = arith.sitofp %52 : vector<8x128xi32> to vector<8x128xf32>
    %cst_22 = arith.constant 3.000000e-01 : f32
    %54 = vector.broadcast %cst_22 : f32 to vector<8x128xf32>
    %55 = arith.cmpf olt, %49, %54 : vector<8x128xf32>
    %cst_23 = arith.constant 0.000000e+00 : f32
    %56 = vector.broadcast %cst_23 : f32 to vector<8x128xf32>
    %57 = arith.select %55, %49, %56 : vector<8x128xi1>, vector<8x128xf32>
    %cst_24 = arith.constant 1.000000e+00 : f32
    %58 = vector.broadcast %cst_24 : f32 to vector<8x128xf32>
    %59 = arith.subf %58, %33 : vector<8x128xf32>
    %60 = vector.broadcast %cst_4 : f32 to vector<8x128xf32>
    %61 = arith.mulf %60, %59 : vector<8x128xf32>
    %62 = arith.mulf %37, %61 : vector<8x128xf32>
    %cst_25 = arith.constant dense<0.000000e+00> : vector<8x128xf32>
    %63 = tpu.matmul %53, %1, %cst_25 {dimension_numbers = #tpu.dot_dimension_numbers<[1], [0], [0], [1], [0, 0, 1, 1], [], []>} : vector<8x128xf32>, vector<128x128xf32>, vector<8x128xf32> -> vector<8x128xf32>
    %64 = arith.addf %62, %63 : vector<8x128xf32>
    %cst_26 = arith.constant 3.000000e-01 : f32
    %65 = vector.broadcast %cst_26 : f32 to vector<8x128xf32>
    %66 = arith.cmpf ogt, %64, %65 : vector<8x128xf32>
    %67 = arith.extui %66 : vector<8x128xi1> to vector<8x128xi32>
    %68 = arith.sitofp %67 : vector<8x128xi32> to vector<8x128xf32>
    %cst_27 = arith.constant 3.000000e-01 : f32
    %69 = vector.broadcast %cst_27 : f32 to vector<8x128xf32>
    %70 = arith.cmpf olt, %64, %69 : vector<8x128xf32>
    %cst_28 = arith.constant 0.000000e+00 : f32
    %71 = vector.broadcast %cst_28 : f32 to vector<8x128xf32>
    %72 = arith.select %70, %64, %71 : vector<8x128xi1>, vector<8x128xf32>
    %73 = arith.addf %38, %68 : vector<8x128xf32>
    %c2_i32 = arith.constant 2 : i32
    %74 = arith.index_cast %c2_i32 : i32 to index
    %c0_29 = arith.constant 0 : index
    %c0_30 = arith.constant 0 : index
    %75 = vector.load %arg1[%74, %c0_29, %c0_30] : memref<8x8x128xf32, #tpu.memory_space<vmem>>, vector<1x8x128xf32>
    %76 = vector.shape_cast %75 : vector<1x8x128xf32> to vector<8x128xf32>
    %cst_31 = arith.constant dense<0.000000e+00> : vector<8x128xf32>
    %77 = tpu.matmul %53, %0, %cst_31 {dimension_numbers = #tpu.dot_dimension_numbers<[1], [0], [0], [1], [0, 0, 1, 1], [], []>} : vector<8x128xf32>, vector<128x128xf32>, vector<8x128xf32> -> vector<8x128xf32>
    %78 = arith.addf %76, %77 : vector<8x128xf32>
    %cst_32 = arith.constant 1.000000e+00 : f32
    %79 = vector.broadcast %cst_32 : f32 to vector<8x128xf32>
    %80 = arith.subf %79, %53 : vector<8x128xf32>
    %81 = vector.broadcast %cst_4 : f32 to vector<8x128xf32>
    %82 = arith.mulf %81, %80 : vector<8x128xf32>
    %83 = arith.mulf %57, %82 : vector<8x128xf32>
    %84 = arith.addf %78, %83 : vector<8x128xf32>
    %cst_33 = arith.constant 3.000000e-01 : f32
    %85 = vector.broadcast %cst_33 : f32 to vector<8x128xf32>
    %86 = arith.cmpf ogt, %84, %85 : vector<8x128xf32>
    %87 = arith.extui %86 : vector<8x128xi1> to vector<8x128xi32>
    %88 = arith.sitofp %87 : vector<8x128xi32> to vector<8x128xf32>
    %cst_34 = arith.constant 3.000000e-01 : f32
    %89 = vector.broadcast %cst_34 : f32 to vector<8x128xf32>
    %90 = arith.cmpf olt, %84, %89 : vector<8x128xf32>
    %cst_35 = arith.constant 0.000000e+00 : f32
    %91 = vector.broadcast %cst_35 : f32 to vector<8x128xf32>
    %92 = arith.select %90, %84, %91 : vector<8x128xi1>, vector<8x128xf32>
    %cst_36 = arith.constant 1.000000e+00 : f32
    %93 = vector.broadcast %cst_36 : f32 to vector<8x128xf32>
    %94 = arith.subf %93, %68 : vector<8x128xf32>
    %95 = vector.broadcast %cst_4 : f32 to vector<8x128xf32>
    %96 = arith.mulf %95, %94 : vector<8x128xf32>
    %97 = arith.mulf %72, %96 : vector<8x128xf32>
    %cst_37 = arith.constant dense<0.000000e+00> : vector<8x128xf32>
    %98 = tpu.matmul %88, %1, %cst_37 {dimension_numbers = #tpu.dot_dimension_numbers<[1], [0], [0], [1], [0, 0, 1, 1], [], []>} : vector<8x128xf32>, vector<128x128xf32>, vector<8x128xf32> -> vector<8x128xf32>
    %99 = arith.addf %97, %98 : vector<8x128xf32>
    %cst_38 = arith.constant 3.000000e-01 : f32
    %100 = vector.broadcast %cst_38 : f32 to vector<8x128xf32>
    %101 = arith.cmpf ogt, %99, %100 : vector<8x128xf32>
    %102 = arith.extui %101 : vector<8x128xi1> to vector<8x128xi32>
    %103 = arith.sitofp %102 : vector<8x128xi32> to vector<8x128xf32>
    %cst_39 = arith.constant 3.000000e-01 : f32
    %104 = vector.broadcast %cst_39 : f32 to vector<8x128xf32>
    %105 = arith.cmpf olt, %99, %104 : vector<8x128xf32>
    %cst_40 = arith.constant 0.000000e+00 : f32
    %106 = vector.broadcast %cst_40 : f32 to vector<8x128xf32>
    %107 = arith.select %105, %99, %106 : vector<8x128xi1>, vector<8x128xf32>
    %108 = arith.addf %73, %103 : vector<8x128xf32>
    %c3_i32 = arith.constant 3 : i32
    %109 = arith.index_cast %c3_i32 : i32 to index
    %c0_41 = arith.constant 0 : index
    %c0_42 = arith.constant 0 : index
    %110 = vector.load %arg1[%109, %c0_41, %c0_42] : memref<8x8x128xf32, #tpu.memory_space<vmem>>, vector<1x8x128xf32>
    %111 = vector.shape_cast %110 : vector<1x8x128xf32> to vector<8x128xf32>
    %cst_43 = arith.constant dense<0.000000e+00> : vector<8x128xf32>
    %112 = tpu.matmul %88, %0, %cst_43 {dimension_numbers = #tpu.dot_dimension_numbers<[1], [0], [0], [1], [0, 0, 1, 1], [], []>} : vector<8x128xf32>, vector<128x128xf32>, vector<8x128xf32> -> vector<8x128xf32>
    %113 = arith.addf %111, %112 : vector<8x128xf32>
    %cst_44 = arith.constant 1.000000e+00 : f32
    %114 = vector.broadcast %cst_44 : f32 to vector<8x128xf32>
    %115 = arith.subf %114, %88 : vector<8x128xf32>
    %116 = vector.broadcast %cst_4 : f32 to vector<8x128xf32>
    %117 = arith.mulf %116, %115 : vector<8x128xf32>
    %118 = arith.mulf %92, %117 : vector<8x128xf32>
    %119 = arith.addf %113, %118 : vector<8x128xf32>
    %cst_45 = arith.constant 3.000000e-01 : f32
    %120 = vector.broadcast %cst_45 : f32 to vector<8x128xf32>
    %121 = arith.cmpf ogt, %119, %120 : vector<8x128xf32>
    %122 = arith.extui %121 : vector<8x128xi1> to vector<8x128xi32>
    %123 = arith.sitofp %122 : vector<8x128xi32> to vector<8x128xf32>
    %cst_46 = arith.constant 3.000000e-01 : f32
    %124 = vector.broadcast %cst_46 : f32 to vector<8x128xf32>
    %125 = arith.cmpf olt, %119, %124 : vector<8x128xf32>
    %cst_47 = arith.constant 0.000000e+00 : f32
    %126 = vector.broadcast %cst_47 : f32 to vector<8x128xf32>
    %127 = arith.select %125, %119, %126 : vector<8x128xi1>, vector<8x128xf32>
    %cst_48 = arith.constant 1.000000e+00 : f32
    %128 = vector.broadcast %cst_48 : f32 to vector<8x128xf32>
    %129 = arith.subf %128, %103 : vector<8x128xf32>
    %130 = vector.broadcast %cst_4 : f32 to vector<8x128xf32>
    %131 = arith.mulf %130, %129 : vector<8x128xf32>
    %132 = arith.mulf %107, %131 : vector<8x128xf32>
    %cst_49 = arith.constant dense<0.000000e+00> : vector<8x128xf32>
    %133 = tpu.matmul %123, %1, %cst_49 {dimension_numbers = #tpu.dot_dimension_numbers<[1], [0], [0], [1], [0, 0, 1, 1], [], []>} : vector<8x128xf32>, vector<128x128xf32>, vector<8x128xf32> -> vector<8x128xf32>
    %134 = arith.addf %132, %133 : vector<8x128xf32>
    %cst_50 = arith.constant 3.000000e-01 : f32
    %135 = vector.broadcast %cst_50 : f32 to vector<8x128xf32>
    %136 = arith.cmpf ogt, %134, %135 : vector<8x128xf32>
    %137 = arith.extui %136 : vector<8x128xi1> to vector<8x128xi32>
    %138 = arith.sitofp %137 : vector<8x128xi32> to vector<8x128xf32>
    %cst_51 = arith.constant 3.000000e-01 : f32
    %139 = vector.broadcast %cst_51 : f32 to vector<8x128xf32>
    %140 = arith.cmpf olt, %134, %139 : vector<8x128xf32>
    %cst_52 = arith.constant 0.000000e+00 : f32
    %141 = vector.broadcast %cst_52 : f32 to vector<8x128xf32>
    %142 = arith.select %140, %134, %141 : vector<8x128xi1>, vector<8x128xf32>
    %143 = arith.addf %108, %138 : vector<8x128xf32>
    %c4_i32 = arith.constant 4 : i32
    %144 = arith.index_cast %c4_i32 : i32 to index
    %c0_53 = arith.constant 0 : index
    %c0_54 = arith.constant 0 : index
    %145 = vector.load %arg1[%144, %c0_53, %c0_54] : memref<8x8x128xf32, #tpu.memory_space<vmem>>, vector<1x8x128xf32>
    %146 = vector.shape_cast %145 : vector<1x8x128xf32> to vector<8x128xf32>
    %cst_55 = arith.constant dense<0.000000e+00> : vector<8x128xf32>
    %147 = tpu.matmul %123, %0, %cst_55 {dimension_numbers = #tpu.dot_dimension_numbers<[1], [0], [0], [1], [0, 0, 1, 1], [], []>} : vector<8x128xf32>, vector<128x128xf32>, vector<8x128xf32> -> vector<8x128xf32>
    %148 = arith.addf %146, %147 : vector<8x128xf32>
    %cst_56 = arith.constant 1.000000e+00 : f32
    %149 = vector.broadcast %cst_56 : f32 to vector<8x128xf32>
    %150 = arith.subf %149, %123 : vector<8x128xf32>
    %151 = vector.broadcast %cst_4 : f32 to vector<8x128xf32>
    %152 = arith.mulf %151, %150 : vector<8x128xf32>
    %153 = arith.mulf %127, %152 : vector<8x128xf32>
    %154 = arith.addf %148, %153 : vector<8x128xf32>
    %cst_57 = arith.constant 3.000000e-01 : f32
    %155 = vector.broadcast %cst_57 : f32 to vector<8x128xf32>
    %156 = arith.cmpf ogt, %154, %155 : vector<8x128xf32>
    %157 = arith.extui %156 : vector<8x128xi1> to vector<8x128xi32>
    %158 = arith.sitofp %157 : vector<8x128xi32> to vector<8x128xf32>
    %cst_58 = arith.constant 3.000000e-01 : f32
    %159 = vector.broadcast %cst_58 : f32 to vector<8x128xf32>
    %160 = arith.cmpf olt, %154, %159 : vector<8x128xf32>
    %cst_59 = arith.constant 0.000000e+00 : f32
    %161 = vector.broadcast %cst_59 : f32 to vector<8x128xf32>
    %162 = arith.select %160, %154, %161 : vector<8x128xi1>, vector<8x128xf32>
    %cst_60 = arith.constant 1.000000e+00 : f32
    %163 = vector.broadcast %cst_60 : f32 to vector<8x128xf32>
    %164 = arith.subf %163, %138 : vector<8x128xf32>
    %165 = vector.broadcast %cst_4 : f32 to vector<8x128xf32>
    %166 = arith.mulf %165, %164 : vector<8x128xf32>
    %167 = arith.mulf %142, %166 : vector<8x128xf32>
    %cst_61 = arith.constant dense<0.000000e+00> : vector<8x128xf32>
    %168 = tpu.matmul %158, %1, %cst_61 {dimension_numbers = #tpu.dot_dimension_numbers<[1], [0], [0], [1], [0, 0, 1, 1], [], []>} : vector<8x128xf32>, vector<128x128xf32>, vector<8x128xf32> -> vector<8x128xf32>
    %169 = arith.addf %167, %168 : vector<8x128xf32>
    %cst_62 = arith.constant 3.000000e-01 : f32
    %170 = vector.broadcast %cst_62 : f32 to vector<8x128xf32>
    %171 = arith.cmpf ogt, %169, %170 : vector<8x128xf32>
    %172 = arith.extui %171 : vector<8x128xi1> to vector<8x128xi32>
    %173 = arith.sitofp %172 : vector<8x128xi32> to vector<8x128xf32>
    %cst_63 = arith.constant 3.000000e-01 : f32
    %174 = vector.broadcast %cst_63 : f32 to vector<8x128xf32>
    %175 = arith.cmpf olt, %169, %174 : vector<8x128xf32>
    %cst_64 = arith.constant 0.000000e+00 : f32
    %176 = vector.broadcast %cst_64 : f32 to vector<8x128xf32>
    %177 = arith.select %175, %169, %176 : vector<8x128xi1>, vector<8x128xf32>
    %178 = arith.addf %143, %173 : vector<8x128xf32>
    %c5_i32 = arith.constant 5 : i32
    %179 = arith.index_cast %c5_i32 : i32 to index
    %c0_65 = arith.constant 0 : index
    %c0_66 = arith.constant 0 : index
    %180 = vector.load %arg1[%179, %c0_65, %c0_66] : memref<8x8x128xf32, #tpu.memory_space<vmem>>, vector<1x8x128xf32>
    %181 = vector.shape_cast %180 : vector<1x8x128xf32> to vector<8x128xf32>
    %cst_67 = arith.constant dense<0.000000e+00> : vector<8x128xf32>
    %182 = tpu.matmul %158, %0, %cst_67 {dimension_numbers = #tpu.dot_dimension_numbers<[1], [0], [0], [1], [0, 0, 1, 1], [], []>} : vector<8x128xf32>, vector<128x128xf32>, vector<8x128xf32> -> vector<8x128xf32>
    %183 = arith.addf %181, %182 : vector<8x128xf32>
    %cst_68 = arith.constant 1.000000e+00 : f32
    %184 = vector.broadcast %cst_68 : f32 to vector<8x128xf32>
    %185 = arith.subf %184, %158 : vector<8x128xf32>
    %186 = vector.broadcast %cst_4 : f32 to vector<8x128xf32>
    %187 = arith.mulf %186, %185 : vector<8x128xf32>
    %188 = arith.mulf %162, %187 : vector<8x128xf32>
    %189 = arith.addf %183, %188 : vector<8x128xf32>
    %cst_69 = arith.constant 3.000000e-01 : f32
    %190 = vector.broadcast %cst_69 : f32 to vector<8x128xf32>
    %191 = arith.cmpf ogt, %189, %190 : vector<8x128xf32>
    %192 = arith.extui %191 : vector<8x128xi1> to vector<8x128xi32>
    %193 = arith.sitofp %192 : vector<8x128xi32> to vector<8x128xf32>
    %cst_70 = arith.constant 3.000000e-01 : f32
    %194 = vector.broadcast %cst_70 : f32 to vector<8x128xf32>
    %195 = arith.cmpf olt, %189, %194 : vector<8x128xf32>
    %cst_71 = arith.constant 0.000000e+00 : f32
    %196 = vector.broadcast %cst_71 : f32 to vector<8x128xf32>
    %197 = arith.select %195, %189, %196 : vector<8x128xi1>, vector<8x128xf32>
    %cst_72 = arith.constant 1.000000e+00 : f32
    %198 = vector.broadcast %cst_72 : f32 to vector<8x128xf32>
    %199 = arith.subf %198, %173 : vector<8x128xf32>
    %200 = vector.broadcast %cst_4 : f32 to vector<8x128xf32>
    %201 = arith.mulf %200, %199 : vector<8x128xf32>
    %202 = arith.mulf %177, %201 : vector<8x128xf32>
    %cst_73 = arith.constant dense<0.000000e+00> : vector<8x128xf32>
    %203 = tpu.matmul %193, %1, %cst_73 {dimension_numbers = #tpu.dot_dimension_numbers<[1], [0], [0], [1], [0, 0, 1, 1], [], []>} : vector<8x128xf32>, vector<128x128xf32>, vector<8x128xf32> -> vector<8x128xf32>
    %204 = arith.addf %202, %203 : vector<8x128xf32>
    %cst_74 = arith.constant 3.000000e-01 : f32
    %205 = vector.broadcast %cst_74 : f32 to vector<8x128xf32>
    %206 = arith.cmpf ogt, %204, %205 : vector<8x128xf32>
    %207 = arith.extui %206 : vector<8x128xi1> to vector<8x128xi32>
    %208 = arith.sitofp %207 : vector<8x128xi32> to vector<8x128xf32>
    %cst_75 = arith.constant 3.000000e-01 : f32
    %209 = vector.broadcast %cst_75 : f32 to vector<8x128xf32>
    %210 = arith.cmpf olt, %204, %209 : vector<8x128xf32>
    %cst_76 = arith.constant 0.000000e+00 : f32
    %211 = vector.broadcast %cst_76 : f32 to vector<8x128xf32>
    %212 = arith.select %210, %204, %211 : vector<8x128xi1>, vector<8x128xf32>
    %213 = arith.addf %178, %208 : vector<8x128xf32>
    %c6_i32 = arith.constant 6 : i32
    %214 = arith.index_cast %c6_i32 : i32 to index
    %c0_77 = arith.constant 0 : index
    %c0_78 = arith.constant 0 : index
    %215 = vector.load %arg1[%214, %c0_77, %c0_78] : memref<8x8x128xf32, #tpu.memory_space<vmem>>, vector<1x8x128xf32>
    %216 = vector.shape_cast %215 : vector<1x8x128xf32> to vector<8x128xf32>
    %cst_79 = arith.constant dense<0.000000e+00> : vector<8x128xf32>
    %217 = tpu.matmul %193, %0, %cst_79 {dimension_numbers = #tpu.dot_dimension_numbers<[1], [0], [0], [1], [0, 0, 1, 1], [], []>} : vector<8x128xf32>, vector<128x128xf32>, vector<8x128xf32> -> vector<8x128xf32>
    %218 = arith.addf %216, %217 : vector<8x128xf32>
    %cst_80 = arith.constant 1.000000e+00 : f32
    %219 = vector.broadcast %cst_80 : f32 to vector<8x128xf32>
    %220 = arith.subf %219, %193 : vector<8x128xf32>
    %221 = vector.broadcast %cst_4 : f32 to vector<8x128xf32>
    %222 = arith.mulf %221, %220 : vector<8x128xf32>
    %223 = arith.mulf %197, %222 : vector<8x128xf32>
    %224 = arith.addf %218, %223 : vector<8x128xf32>
    %cst_81 = arith.constant 3.000000e-01 : f32
    %225 = vector.broadcast %cst_81 : f32 to vector<8x128xf32>
    %226 = arith.cmpf ogt, %224, %225 : vector<8x128xf32>
    %227 = arith.extui %226 : vector<8x128xi1> to vector<8x128xi32>
    %228 = arith.sitofp %227 : vector<8x128xi32> to vector<8x128xf32>
    %cst_82 = arith.constant 3.000000e-01 : f32
    %229 = vector.broadcast %cst_82 : f32 to vector<8x128xf32>
    %230 = arith.cmpf olt, %224, %229 : vector<8x128xf32>
    %cst_83 = arith.constant 0.000000e+00 : f32
    %231 = vector.broadcast %cst_83 : f32 to vector<8x128xf32>
    %232 = arith.select %230, %224, %231 : vector<8x128xi1>, vector<8x128xf32>
    %cst_84 = arith.constant 1.000000e+00 : f32
    %233 = vector.broadcast %cst_84 : f32 to vector<8x128xf32>
    %234 = arith.subf %233, %208 : vector<8x128xf32>
    %235 = vector.broadcast %cst_4 : f32 to vector<8x128xf32>
    %236 = arith.mulf %235, %234 : vector<8x128xf32>
    %237 = arith.mulf %212, %236 : vector<8x128xf32>
    %cst_85 = arith.constant dense<0.000000e+00> : vector<8x128xf32>
    %238 = tpu.matmul %228, %1, %cst_85 {dimension_numbers = #tpu.dot_dimension_numbers<[1], [0], [0], [1], [0, 0, 1, 1], [], []>} : vector<8x128xf32>, vector<128x128xf32>, vector<8x128xf32> -> vector<8x128xf32>
    %239 = arith.addf %237, %238 : vector<8x128xf32>
    %cst_86 = arith.constant 3.000000e-01 : f32
    %240 = vector.broadcast %cst_86 : f32 to vector<8x128xf32>
    %241 = arith.cmpf ogt, %239, %240 : vector<8x128xf32>
    %242 = arith.extui %241 : vector<8x128xi1> to vector<8x128xi32>
    %243 = arith.sitofp %242 : vector<8x128xi32> to vector<8x128xf32>
    %cst_87 = arith.constant 3.000000e-01 : f32
    %244 = vector.broadcast %cst_87 : f32 to vector<8x128xf32>
    %245 = arith.cmpf olt, %239, %244 : vector<8x128xf32>
    %cst_88 = arith.constant 0.000000e+00 : f32
    %246 = vector.broadcast %cst_88 : f32 to vector<8x128xf32>
    %247 = arith.select %245, %239, %246 : vector<8x128xi1>, vector<8x128xf32>
    %248 = arith.addf %213, %243 : vector<8x128xf32>
    %c7_i32 = arith.constant 7 : i32
    %249 = arith.index_cast %c7_i32 : i32 to index
    %c0_89 = arith.constant 0 : index
    %c0_90 = arith.constant 0 : index
    %250 = vector.load %arg1[%249, %c0_89, %c0_90] : memref<8x8x128xf32, #tpu.memory_space<vmem>>, vector<1x8x128xf32>
    %251 = vector.shape_cast %250 : vector<1x8x128xf32> to vector<8x128xf32>
    %cst_91 = arith.constant dense<0.000000e+00> : vector<8x128xf32>
    %252 = tpu.matmul %228, %0, %cst_91 {dimension_numbers = #tpu.dot_dimension_numbers<[1], [0], [0], [1], [0, 0, 1, 1], [], []>} : vector<8x128xf32>, vector<128x128xf32>, vector<8x128xf32> -> vector<8x128xf32>
    %253 = arith.addf %251, %252 : vector<8x128xf32>
    %cst_92 = arith.constant 1.000000e+00 : f32
    %254 = vector.broadcast %cst_92 : f32 to vector<8x128xf32>
    %255 = arith.subf %254, %228 : vector<8x128xf32>
    %256 = vector.broadcast %cst_4 : f32 to vector<8x128xf32>
    %257 = arith.mulf %256, %255 : vector<8x128xf32>
    %258 = arith.mulf %232, %257 : vector<8x128xf32>
    %259 = arith.addf %253, %258 : vector<8x128xf32>
    %cst_93 = arith.constant 3.000000e-01 : f32
    %260 = vector.broadcast %cst_93 : f32 to vector<8x128xf32>
    %261 = arith.cmpf ogt, %259, %260 : vector<8x128xf32>
    %262 = arith.extui %261 : vector<8x128xi1> to vector<8x128xi32>
    %263 = arith.sitofp %262 : vector<8x128xi32> to vector<8x128xf32>
    %cst_94 = arith.constant 3.000000e-01 : f32
    %264 = vector.broadcast %cst_94 : f32 to vector<8x128xf32>
    %265 = arith.cmpf olt, %259, %264 : vector<8x128xf32>
    %cst_95 = arith.constant 0.000000e+00 : f32
    %266 = vector.broadcast %cst_95 : f32 to vector<8x128xf32>
    %267 = arith.select %265, %259, %266 : vector<8x128xi1>, vector<8x128xf32>
    %cst_96 = arith.constant 1.000000e+00 : f32
    %268 = vector.broadcast %cst_96 : f32 to vector<8x128xf32>
    %269 = arith.subf %268, %243 : vector<8x128xf32>
    %270 = vector.broadcast %cst_4 : f32 to vector<8x128xf32>
    %271 = arith.mulf %270, %269 : vector<8x128xf32>
    %272 = arith.mulf %247, %271 : vector<8x128xf32>
    %cst_97 = arith.constant dense<0.000000e+00> : vector<8x128xf32>
    %273 = tpu.matmul %263, %1, %cst_97 {dimension_numbers = #tpu.dot_dimension_numbers<[1], [0], [0], [1], [0, 0, 1, 1], [], []>} : vector<8x128xf32>, vector<128x128xf32>, vector<8x128xf32> -> vector<8x128xf32>
    %274 = arith.addf %272, %273 : vector<8x128xf32>
    %cst_98 = arith.constant 3.000000e-01 : f32
    %275 = vector.broadcast %cst_98 : f32 to vector<8x128xf32>
    %276 = arith.cmpf ogt, %274, %275 : vector<8x128xf32>
    %277 = arith.extui %276 : vector<8x128xi1> to vector<8x128xi32>
    %278 = arith.sitofp %277 : vector<8x128xi32> to vector<8x128xf32>
    %cst_99 = arith.constant 3.000000e-01 : f32
    %279 = vector.broadcast %cst_99 : f32 to vector<8x128xf32>
    %280 = arith.cmpf olt, %274, %279 : vector<8x128xf32>
    %cst_100 = arith.constant 0.000000e+00 : f32
    %281 = vector.broadcast %cst_100 : f32 to vector<8x128xf32>
    %282 = arith.select %280, %274, %281 : vector<8x128xi1>, vector<8x128xf32>
    %283 = arith.addf %248, %278 : vector<8x128xf32>
    %c8_i32 = arith.constant 8 : i32
    %cst_101 = arith.constant 1.250000e-01 : f32
    %284 = vector.broadcast %cst_101 : f32 to vector<8x128xf32>
    %285 = arith.mulf %283, %284 : vector<8x128xf32>
    %c0_102 = arith.constant 0 : index
    %c0_103 = arith.constant 0 : index
    %286 = vector.load %arg4[%c0_102, %c0_103] : memref<8x128xf32, #tpu.memory_space<vmem>>, vector<8x128xf32>
    tpu.vector_store %arg4[%c0_102, %c0_103], %285 {strides = array<i32>} : memref<8x128xf32, #tpu.memory_space<vmem>>, vector<8x128xf32>,
    return
  }
  func.func @transform_0(%arg0: i32) -> (i32, i32, i32) {
    %c0_i32 = arith.constant 0 : i32
    %c0_i32_0 = arith.constant 0 : i32
    %c0_i32_1 = arith.constant 0 : i32
    return %c0_i32, %arg0, %c0_i32_0 : i32, i32, i32
  }
  func.func @transform_1(%arg0: i32) -> (i32, i32) {
    %c0_i32 = arith.constant 0 : i32
    %c0_i32_0 = arith.constant 0 : i32
    %c0_i32_1 = arith.constant 0 : i32
    return %c0_i32, %c0_i32_0 : i32, i32
  }
  func.func @transform_2(%arg0: i32) -> (i32, i32) {
    %c0_i32 = arith.constant 0 : i32
    %c0_i32_0 = arith.constant 0 : i32
    %c0_i32_1 = arith.constant 0 : i32
    return %c0_i32, %c0_i32_0 : i32, i32
  }
  func.func @transform_3(%arg0: i32) -> (i32, i32) {
    %c0_i32 = arith.constant 0 : i32
    %c0_i32_0 = arith.constant 0 : i32
    return %arg0, %c0_i32 : i32, i32
  }
}

</mosaic_0001>

<llo_original>
// kernel: rsnn_forward.3
$region0: #{rsnn_forward.3}
  #allocation0 [shape = 'u32[]', space=smem, size = 0x4, offset = 0x4, fixed_abs, tag = 'smem constant byte address 0x4 - core index']
  #allocation1 [shape = 'u32[144,128]{1,0:T(1,128)}', space=vmem, size = 0x12000, scoped, tag = 'internal scratch']
  %s0 = inlined_call_operand.vmem [shape: f32[8,8,128], index: 0, kind: input, shape index: {}]
  %s1 = inlined_call_operand.vmem [shape: f32[128,128], index: 1, kind: input, shape index: {}]
  %s2 = inlined_call_operand.vmem [shape: f32[128,128], index: 2, kind: input, shape index: {}]
  %s3 = inlined_call_operand.vmem [shape: f32[8,128], index: 3, kind: output, shape index: {}]
  %s4 = sld [smem:[#allocation0]]
  $region22: #{rsnn_forward.3} parent=0
    _
  %s6 = ssub.s32 1, %s4
  %s7 = scalar_select 0, %s6, %s4
  // Predicated region
  $region2: #{rsnn_forward.3} parent=0 // pred_check
    _
  $region3: #{rsnn_forward.3} parent=0 // pred_check_branch
    %9 = sbr.rel (0) target = $region5
  $region4: #{rsnn_forward.3} parent=0 // pred_region
    _
  $region5: #{rsnn_forward.3} parent=0 // pred_fallthru
    _
  // Predicated region
  $region6: #{rsnn_forward.3} parent=0 // pred_check
    _
  $region7: #{rsnn_forward.3} parent=0 // pred_check_branch
    %11 = sbr.rel (0) target = $region9
  $region8: #{rsnn_forward.3} parent=0 // pred_region
    _
  $region9: #{rsnn_forward.3} parent=0 // pred_fallthru
    _
  // Predicated region
  $region10: #{rsnn_forward.3} parent=0 // pred_check
    _
  $region11: #{rsnn_forward.3} parent=0 // pred_check_branch
    %13 = sbr.rel (0) target = $region13
  $region12: #{rsnn_forward.3} parent=0 // pred_region
    _
  $region13: #{rsnn_forward.3} parent=0 // pred_fallthru
    _
  %v14 = vld [vmem:[%s1] sm:$0xff]
  %v15 = vld [vmem:[%s1 + $0x8] sm:$0xff]
  %v16 = vld [vmem:[%s1 + $0x10] sm:$0xff]
  %v17 = vld [vmem:[%s1 + $0x18] sm:$0xff]
  %v18 = vld [vmem:[%s1 + $0x20] sm:$0xff]
  %v19 = vld [vmem:[%s1 + $0x28] sm:$0xff]
  %v20 = vld [vmem:[%s1 + $0x30] sm:$0xff]
  %v21 = vld [vmem:[%s1 + $0x38] sm:$0xff]
  %v22 = vld [vmem:[%s1 + $0x40] sm:$0xff]
  %v23 = vld [vmem:[%s1 + $0x48] sm:$0xff]
  %v24 = vld [vmem:[%s1 + $0x50] sm:$0xff]
  %v25 = vld [vmem:[%s1 + $0x58] sm:$0xff]
  %v26 = vld [vmem:[%s1 + $0x60] sm:$0xff]
  %v27 = vld [vmem:[%s1 + $0x68] sm:$0xff]
  %v28 = vld [vmem:[%s1 + $0x70] sm:$0xff]
  %v29 = vld [vmem:[%s1 + $0x78] sm:$0xff]
  %v30 = vld [vmem:[%s2] sm:$0xff]
  %v31 = vld [vmem:[%s2 + $0x8] sm:$0xff]
  %v32 = vld [vmem:[%s2 + $0x10] sm:$0xff]
  %v33 = vld [vmem:[%s2 + $0x18] sm:$0xff]
  %v34 = vld [vmem:[%s2 + $0x20] sm:$0xff]
  %v35 = vld [vmem:[%s2 + $0x28] sm:$0xff]
  %v36 = vld [vmem:[%s2 + $0x30] sm:$0xff]
  %v37 = vld [vmem:[%s2 + $0x38] sm:$0xff]
  %v38 = vld [vmem:[%s2 + $0x40] sm:$0xff]
  %v39 = vld [vmem:[%s2 + $0x48] sm:$0xff]
  %v40 = vld [vmem:[%s2 + $0x50] sm:$0xff]
  %v41 = vld [vmem:[%s2 + $0x58] sm:$0xff]
  %v42 = vld [vmem:[%s2 + $0x60] sm:$0xff]
  %v43 = vld [vmem:[%s2 + $0x68] sm:$0xff]
  %v44 = vld [vmem:[%s2 + $0x70] sm:$0xff]
  %v45 = vld [vmem:[%s2 + $0x78] sm:$0xff]
  %v46 = vld [vmem:[%s0] sm:$0xff]
  %47 = vmatprep.subr.mxu0 0.0
  %48 = vmatpush1.msra.mxu0 %v29
  %49 = vmatprep.subr.mxu0 0.0
  %50 = vmatpush1.msra.mxu0 %v28
  %51 = vmatprep.subr.mxu0 0.0
  %52 = vmatpush1.msra.mxu0 %v27
  %53 = vmatprep.subr.mxu0 0.0
  %54 = vmatpush1.msra.mxu0 %v26
  %55 = vmatprep.subr.mxu0 0.0
  %56 = vmatpush1.msra.mxu0 %v25
  %57 = vmatprep.subr.mxu0 0.0
  %58 = vmatpush1.msra.mxu0 %v24
  %59 = vmatprep.subr.mxu0 0.0
  %60 = vmatpush1.msra.mxu0 %v23
  %61 = vmatprep.subr.mxu0 0.0
  %62 = vmatpush1.msra.mxu0 %v22
  %63 = vmatprep.subr.mxu0 0.0
  %64 = vmatpush1.msra.mxu0 %v21
  %65 = vmatprep.subr.mxu0 0.0
  %66 = vmatpush1.msra.mxu0 %v20
  %67 = vmatprep.subr.mxu0 0.0
  %68 = vmatpush1.msra.mxu0 %v19
  %69 = vmatprep.subr.mxu0 0.0
  %70 = vmatpush1.msra.mxu0 %v18
  %71 = vmatprep.subr.mxu0 0.0
  %72 = vmatpush1.msra.mxu0 %v17
  %73 = vmatprep.subr.mxu0 0.0
  %74 = vmatpush1.msra.mxu0 %v16
  %75 = vmatprep.subr.mxu0 0.0
  %76 = vmatpush1.msra.mxu0 %v15
  %77 = vmatprep.subr.mxu0 0.0
  %78 = vmatpush1.msra.mxu0 %v14
  %79 = vmatprep.subr.mxu0 0.0
  %80 = vmatpush2.msra.mxu0 0.0
  %81 = vmatprep.subr.mxu0 0.0
  %82 = vmatpush2.msra.mxu0 0.0
  %83 = vmatprep.subr.mxu0 0.0
  %84 = vmatpush2.msra.mxu0 0.0
  %85 = vmatprep.subr.mxu0 0.0
  %86 = vmatpush2.msra.mxu0 0.0
  %87 = vmatprep.subr.mxu0 0.0
  %88 = vmatpush2.msra.mxu0 0.0
  %89 = vmatprep.subr.mxu0 0.0
  %90 = vmatpush2.msra.mxu0 0.0
  %91 = vmatprep.subr.mxu0 0.0
  %92 = vmatpush2.msra.mxu0 0.0
  %93 = vmatprep.subr.mxu0 0.0
  %94 = vmatpush2.msra.mxu0 0.0
  %95 = vmatprep.subr.mxu0 0.0
  %96 = vmatpush2.msra.mxu0 0.0
  %97 = vmatprep.subr.mxu0 0.0
  %98 = vmatpush2.msra.mxu0 0.0
  %99 = vmatprep.subr.mxu0 0.0
  %100 = vmatpush2.msra.mxu0 0.0
  %101 = vmatprep.subr.mxu0 0.0
  %102 = vmatpush2.msra.mxu0 0.0
  %103 = vmatprep.subr.mxu0 0.0
  %104 = vmatpush2.msra.mxu0 0.0
  %105 = vmatprep.subr.mxu0 0.0
  %106 = vmatpush2.msra.mxu0 0.0
  %107 = vmatprep.subr.mxu0 0.0
  %108 = vmatpush2.msra.mxu0 0.0
  %109 = vmatprep.subr.mxu0 0.0
  %110 = vmatpush2.msra.mxu0 0.0
  %111 = vmatprep.mubr.f32.mxu0 0.0
  %112 = vmatmul.mubr.f32.gmra.mxu0 0.0
  %v113 = vpop.f32.mrf.mxu0
  %v114 = vadd.f32 0.0, %v113
  %v115 = vpop.f32.mrf.mxu0
  %116 = vdwg.mxu0
  %v117 = vadd.f32 %v46, %v114
  %v118 = vadd.f32 %v117, 0.0
  %vm119 = vcmp.gt.f32.partialorder %v118, 0.3
  %v120 = vsel %vm119, 1, 0
  %v121 = vcvt.s32.f32 %v120
  %vm122 = vcmp.lt.f32.partialorder %v118, 0.3
  %v123 = vsel %vm122, %v118, 0.0
  %124 = vmatprep.subr.mxu0 0.0
  %125 = vmatpush1.msra.mxu0 %v45
  %126 = vmatprep.subr.mxu0 0.0
  %127 = vmatpush1.msra.mxu0 %v44
  %128 = vmatprep.subr.mxu0 0.0
  %129 = vmatpush1.msra.mxu0 %v43
  %130 = vmatprep.subr.mxu0 0.0
  %131 = vmatpush1.msra.mxu0 %v42
  %132 = vmatprep.subr.mxu0 0.0
  %133 = vmatpush1.msra.mxu0 %v41
  %134 = vmatprep.subr.mxu0 0.0
  %135 = vmatpush1.msra.mxu0 %v40
  %136 = vmatprep.subr.mxu0 0.0
  %137 = vmatpush1.msra.mxu0 %v39
  %138 = vmatprep.subr.mxu0 0.0
  %139 = vmatpush1.msra.mxu0 %v38
  %140 = vmatprep.subr.mxu0 0.0
  %141 = vmatpush1.msra.mxu0 %v37
  %142 = vmatprep.subr.mxu0 0.0
  %143 = vmatpush1.msra.mxu0 %v36
  %144 = vmatprep.subr.mxu0 0.0
  %145 = vmatpush1.msra.mxu0 %v35
  %146 = vmatprep.subr.mxu0 0.0
  %147 = vmatpush1.msra.mxu0 %v34
  %148 = vmatprep.subr.mxu0 0.0
  %149 = vmatpush1.msra.mxu0 %v33
  %150 = vmatprep.subr.mxu0 0.0
  %151 = vmatpush1.msra.mxu0 %v32
  %152 = vmatprep.subr.mxu0 0.0
  %153 = vmatpush1.msra.mxu0 %v31
  %154 = vmatprep.subr.mxu0 0.0
  %155 = vmatpush1.msra.mxu0 %v30
  %156 = vmatprep.subr.mxu0 0.0
  %157 = vmatpush2.msra.mxu0 0.0
  %158 = vmatprep.subr.mxu0 0.0
  %159 = vmatpush2.msra.mxu0 0.0
  %160 = vmatprep.subr.mxu0 0.0
  %161 = vmatpush2.msra.mxu0 0.0
  %162 = vmatprep.subr.mxu0 0.0
  %163 = vmatpush2.msra.mxu0 0.0
  %164 = vmatprep.subr.mxu0 0.0
  %165 = vmatpush2.msra.mxu0 0.0
  %166 = vmatprep.subr.mxu0 0.0
  %167 = vmatpush2.msra.mxu0 0.0
  %168 = vmatprep.subr.mxu0 0.0
  %169 = vmatpush2.msra.mxu0 0.0
  %170 = vmatprep.subr.mxu0 0.0
  %171 = vmatpush2.msra.mxu0 0.0
  %172 = vmatprep.subr.mxu0 0.0
  %173 = vmatpush2.msra.mxu0 0.0
  %174 = vmatprep.subr.mxu0 0.0
  %175 = vmatpush2.msra.mxu0 0.0
  %176 = vmatprep.subr.mxu0 0.0
  %177 = vmatpush2.msra.mxu0 0.0
  %178 = vmatprep.subr.mxu0 0.0
  %179 = vmatpush2.msra.mxu0 0.0
  %180 = vmatprep.subr.mxu0 0.0
  %181 = vmatpush2.msra.mxu0 0.0
  %182 = vmatprep.subr.mxu0 0.0
  %183 = vmatpush2.msra.mxu0 0.0
  %184 = vmatprep.subr.mxu0 0.0
  %185 = vmatpush2.msra.mxu0 0.0
  %186 = vmatprep.subr.mxu0 0.0
  %187 = vmatpush2.msra.mxu0 0.0
  %188 = vmatprep.mubr.f32.mxu0 0.0
  %189 = vmatmul.mubr.f32.gmra.mxu0 %v121
  %v190 = vpop.f32.mrf.mxu0
  %v191 = vadd.f32 0.0, %v190
  %v192 = vpop.f32.mrf.mxu0
  %193 = vdwg.mxu0
  %vm194 = vcmp.gt.f32.partialorder %v191, 0.3
  %v195 = vsel %vm194, 1, 0
  %v196 = vcvt.s32.f32 %v195
  %vm197 = vcmp.lt.f32.partialorder %v191, 0.3
  %v198 = vsel %vm197, %v191, 0.0
  %v199 = vadd.f32 %v196, 0.0
  %s200 = scalar_lea.vmem %s0, 8
  %v201 = vld [vmem:[%s200] sm:$0xff]
  %202 = vmatprep.subr.mxu0 0.0
  %203 = vmatpush1.msra.mxu0 %v29
  %204 = vmatprep.subr.mxu0 0.0
  %205 = vmatpush1.msra.mxu0 %v28
  %206 = vmatprep.subr.mxu0 0.0
  %207 = vmatpush1.msra.mxu0 %v27
  %208 = vmatprep.subr.mxu0 0.0
  %209 = vmatpush1.msra.mxu0 %v26
  %210 = vmatprep.subr.mxu0 0.0
  %211 = vmatpush1.msra.mxu0 %v25
  %212 = vmatprep.subr.mxu0 0.0
  %213 = vmatpush1.msra.mxu0 %v24
  %214 = vmatprep.subr.mxu0 0.0
  %215 = vmatpush1.msra.mxu0 %v23
  %216 = vmatprep.subr.mxu0 0.0
  %217 = vmatpush1.msra.mxu0 %v22
  %218 = vmatprep.subr.mxu0 0.0
  %219 = vmatpush1.msra.mxu0 %v21
  %220 = vmatprep.subr.mxu0 0.0
  %221 = vmatpush1.msra.mxu0 %v20
  %222 = vmatprep.subr.mxu0 0.0
  %223 = vmatpush1.msra.mxu0 %v19
  %224 = vmatprep.subr.mxu0 0.0
  %225 = vmatpush1.msra.mxu0 %v18
  %226 = vmatprep.subr.mxu0 0.0
  %227 = vmatpush1.msra.mxu0 %v17
  %228 = vmatprep.subr.mxu0 0.0
  %229 = vmatpush1.msra.mxu0 %v16
  %230 = vmatprep.subr.mxu0 0.0
  %231 = vmatpush1.msra.mxu0 %v15
  %232 = vmatprep.subr.mxu0 0.0
  %233 = vmatpush1.msra.mxu0 %v14
  %234 = vmatprep.subr.mxu0 0.0
  %235 = vmatpush2.msra.mxu0 0.0
  %236 = vmatprep.subr.mxu0 0.0
  %237 = vmatpush2.msra.mxu0 0.0
  %238 = vmatprep.subr.mxu0 0.0
  %239 = vmatpush2.msra.mxu0 0.0
  %240 = vmatprep.subr.mxu0 0.0
  %241 = vmatpush2.msra.mxu0 0.0
  %242 = vmatprep.subr.mxu0 0.0
  %243 = vmatpush2.msra.mxu0 0.0
  %244 = vmatprep.subr.mxu0 0.0
  %245 = vmatpush2.msra.mxu0 0.0
  %246 = vmatprep.subr.mxu0 0.0
  %247 = vmatpush2.msra.mxu0 0.0
  %248 = vmatprep.subr.mxu0 0.0
  %249 = vmatpush2.msra.mxu0 0.0
  %250 = vmatprep.subr.mxu0 0.0
  %251 = vmatpush2.msra.mxu0 0.0
  %252 = vmatprep.subr.mxu0 0.0
  %253 = vmatpush2.msra.mxu0 0.0
  %254 = vmatprep.subr.mxu0 0.0
  %255 = vmatpush2.msra.mxu0 0.0
  %256 = vmatprep.subr.mxu0 0.0
  %257 = vmatpush2.msra.mxu0 0.0
  %258 = vmatprep.subr.mxu0 0.0
  %259 = vmatpush2.msra.mxu0 0.0
  %260 = vmatprep.subr.mxu0 0.0
  %261 = vmatpush2.msra.mxu0 0.0
  %262 = vmatprep.subr.mxu0 0.0
  %263 = vmatpush2.msra.mxu0 0.0
  %264 = vmatprep.subr.mxu0 0.0
  %265 = vmatpush2.msra.mxu0 0.0
  %266 = vmatprep.mubr.f32.mxu0 0.0
  %267 = vmatmul.mubr.f32.gmra.mxu0 %v121
  %v268 = vpop.f32.mrf.mxu0
  %v269 = vadd.f32 0.0, %v268
  %v270 = vpop.f32.mrf.mxu0
  %271 = vdwg.mxu0
  %v272 = vadd.f32 %v201, %v269
  %v273 = vsub.f32 1.0, %v121
  %v274 = vmul.f32 %v273, 0.8999998
  %v275 = vmul.f32 %v123, %v274
  %v276 = vadd.f32 %v272, %v275
  %vm277 = vcmp.gt.f32.partialorder %v276, 0.3
  %v278 = vsel %vm277, 1, 0
  %v279 = vcvt.s32.f32 %v278
  %vm280 = vcmp.lt.f32.partialorder %v276, 0.3
  %v281 = vsel %vm280, %v276, 0.0
  %v282 = vsub.f32 1.0, %v196
  %v283 = vmul.f32 %v282, 0.8999998
  %v284 = vmul.f32 %v198, %v283
  %285 = vmatprep.subr.mxu0 0.0
  %286 = vmatpush1.msra.mxu0 %v45
  %287 = vmatprep.subr.mxu0 0.0
  %288 = vmatpush1.msra.mxu0 %v44
  %289 = vmatprep.subr.mxu0 0.0
  %290 = vmatpush1.msra.mxu0 %v43
  %291 = vmatprep.subr.mxu0 0.0
  %292 = vmatpush1.msra.mxu0 %v42
  %293 = vmatprep.subr.mxu0 0.0
  %294 = vmatpush1.msra.mxu0 %v41
  %295 = vmatprep.subr.mxu0 0.0
  %296 = vmatpush1.msra.mxu0 %v40
  %297 = vmatprep.subr.mxu0 0.0
  %298 = vmatpush1.msra.mxu0 %v39
  %299 = vmatprep.subr.mxu0 0.0
  %300 = vmatpush1.msra.mxu0 %v38
  %301 = vmatprep.subr.mxu0 0.0
  %302 = vmatpush1.msra.mxu0 %v37
  %303 = vmatprep.subr.mxu0 0.0
  %304 = vmatpush1.msra.mxu0 %v36
  %305 = vmatprep.subr.mxu0 0.0
  %306 = vmatpush1.msra.mxu0 %v35
  %307 = vmatprep.subr.mxu0 0.0
  %308 = vmatpush1.msra.mxu0 %v34
  %309 = vmatprep.subr.mxu0 0.0
  %310 = vmatpush1.msra.mxu0 %v33
  %311 = vmatprep.subr.mxu0 0.0
  %312 = vmatpush1.msra.mxu0 %v32
  %313 = vmatprep.subr.mxu0 0.0
  %314 = vmatpush1.msra.mxu0 %v31
  %315 = vmatprep.subr.mxu0 0.0
  %316 = vmatpush1.msra.mxu0 %v30
  %317 = vmatprep.subr.mxu0 0.0
  %318 = vmatpush2.msra.mxu0 0.0
  %319 = vmatprep.subr.mxu0 0.0
  %320 = vmatpush2.msra.mxu0 0.0
  %321 = vmatprep.subr.mxu0 0.0
  %322 = vmatpush2.msra.mxu0 0.0
  %323 = vmatprep.subr.mxu0 0.0
  %324 = vmatpush2.msra.mxu0 0.0
  %325 = vmatprep.subr.mxu0 0.0
  %326 = vmatpush2.msra.mxu0 0.0
  %327 = vmatprep.subr.mxu0 0.0
  %328 = vmatpush2.msra.mxu0 0.0
  %329 = vmatprep.subr.mxu0 0.0
  %330 = vmatpush2.msra.mxu0 0.0
  %331 = vmatprep.subr.mxu0 0.0
  %332 = vmatpush2.msra.mxu0 0.0
  %333 = vmatprep.subr.mxu0 0.0
  %334 = vmatpush2.msra.mxu0 0.0
  %335 = vmatprep.subr.mxu0 0.0
  %336 = vmatpush2.msra.mxu0 0.0
  %337 = vmatprep.subr.mxu0 0.0
  %338 = vmatpush2.msra.mxu0 0.0
  %339 = vmatprep.subr.mxu0 0.0
  %340 = vmatpush2.msra.mxu0 0.0
  %341 = vmatprep.subr.mxu0 0.0
  %342 = vmatpush2.msra.mxu0 0.0
  %343 = vmatprep.subr.mxu0 0.0
  %344 = vmatpush2.msra.mxu0 0.0
  %345 = vmatprep.subr.mxu0 0.0
  %346 = vmatpush2.msra.mxu0 0.0
  %347 = vmatprep.subr.mxu0 0.0
  %348 = vmatpush2.msra.mxu0 0.0
  %349 = vmatprep.mubr.f32.mxu0 0.0
  %350 = vmatmul.mubr.f32.gmra.mxu0 %v279
  %v351 = vpop.f32.mrf.mxu0
  %v352 = vadd.f32 0.0, %v351
  %v353 = vpop.f32.mrf.mxu0
  %354 = vdwg.mxu0
  %v355 = vadd.f32 %v284, %v352
  %vm356 = vcmp.gt.f32.partialorder %v355, 0.3
  %v357 = vsel %vm356, 1, 0
  %v358 = vcvt.s32.f32 %v357
  %vm359 = vcmp.lt.f32.partialorder %v355, 0.3
  %v360 = vsel %vm359, %v355, 0.0
  %v361 = vadd.f32 %v199, %v358
  %s362 = scalar_lea.vmem %s0, 16
  %v363 = vld [vmem:[%s362] sm:$0xff]
  %364 = vmatprep.subr.mxu0 0.0
  %365 = vmatpush1.msra.mxu0 %v29
  %366 = vmatprep.subr.mxu0 0.0
  %367 = vmatpush1.msra.mxu0 %v28
  %368 = vmatprep.subr.mxu0 0.0
  %369 = vmatpush1.msra.mxu0 %v27
  %370 = vmatprep.subr.mxu0 0.0
  %371 = vmatpush1.msra.mxu0 %v26
  %372 = vmatprep.subr.mxu0 0.0
  %373 = vmatpush1.msra.mxu0 %v25
  %374 = vmatprep.subr.mxu0 0.0
  %375 = vmatpush1.msra.mxu0 %v24
  %376 = vmatprep.subr.mxu0 0.0
  %377 = vmatpush1.msra.mxu0 %v23
  %378 = vmatprep.subr.mxu0 0.0
  %379 = vmatpush1.msra.mxu0 %v22
  %380 = vmatprep.subr.mxu0 0.0
  %381 = vmatpush1.msra.mxu0 %v21
  %382 = vmatprep.subr.mxu0 0.0
  %383 = vmatpush1.msra.mxu0 %v20
  %384 = vmatprep.subr.mxu0 0.0
  %385 = vmatpush1.msra.mxu0 %v19
  %386 = vmatprep.subr.mxu0 0.0
  %387 = vmatpush1.msra.mxu0 %v18
  %388 = vmatprep.subr.mxu0 0.0
  %389 = vmatpush1.msra.mxu0 %v17
  %390 = vmatprep.subr.mxu0 0.0
  %391 = vmatpush1.msra.mxu0 %v16
  %392 = vmatprep.subr.mxu0 0.0
  %393 = vmatpush1.msra.mxu0 %v15
  %394 = vmatprep.subr.mxu0 0.0
  %395 = vmatpush1.msra.mxu0 %v14
  %396 = vmatprep.subr.mxu0 0.0
  %397 = vmatpush2.msra.mxu0 0.0
  %398 = vmatprep.subr.mxu0 0.0
  %399 = vmatpush2.msra.mxu0 0.0
  %400 = vmatprep.subr.mxu0 0.0
  %401 = vmatpush2.msra.mxu0 0.0
  %402 = vmatprep.subr.mxu0 0.0
  %403 = vmatpush2.msra.mxu0 0.0
  %404 = vmatprep.subr.mxu0 0.0
  %405 = vmatpush2.msra.mxu0 0.0
  %406 = vmatprep.subr.mxu0 0.0
  %407 = vmatpush2.msra.mxu0 0.0
  %408 = vmatprep.subr.mxu0 0.0
  %409 = vmatpush2.msra.mxu0 0.0
  %410 = vmatprep.subr.mxu0 0.0
  %411 = vmatpush2.msra.mxu0 0.0
  %412 = vmatprep.subr.mxu0 0.0
  %413 = vmatpush2.msra.mxu0 0.0
  %414 = vmatprep.subr.mxu0 0.0
  %415 = vmatpush2.msra.mxu0 0.0
  %416 = vmatprep.subr.mxu0 0.0
  %417 = vmatpush2.msra.mxu0 0.0
  %418 = vmatprep.subr.mxu0 0.0
  %419 = vmatpush2.msra.mxu0 0.0
  %420 = vmatprep.subr.mxu0 0.0
  %421 = vmatpush2.msra.mxu0 0.0
  %422 = vmatprep.subr.mxu0 0.0
  %423 = vmatpush2.msra.mxu0 0.0
  %424 = vmatprep.subr.mxu0 0.0
  %425 = vmatpush2.msra.mxu0 0.0
  %426 = vmatprep.subr.mxu0 0.0
  %427 = vmatpush2.msra.mxu0 0.0
  %428 = vmatprep.mubr.f32.mxu0 0.0
  %429 = vmatmul.mubr.f32.gmra.mxu0 %v279
  %v430 = vpop.f32.mrf.mxu0
  %v431 = vadd.f32 0.0, %v430
  %v432 = vpop.f32.mrf.mxu0
  %433 = vdwg.mxu0
  %v434 = vadd.f32 %v363, %v431
  %v435 = vsub.f32 1.0, %v279
  %v436 = vmul.f32 %v435, 0.8999998
  %v437 = vmul.f32 %v281, %v436
  %v438 = vadd.f32 %v434, %v437
  %vm439 = vcmp.gt.f32.partialorder %v438, 0.3
  %v440 = vsel %vm439, 1, 0
  %v441 = vcvt.s32.f32 %v440
  %vm442 = vcmp.lt.f32.partialorder %v438, 0.3
  %v443 = vsel %vm442, %v438, 0.0
  %v444 = vsub.f32 1.0, %v358
  %v445 = vmul.f32 %v444, 0.8999998
  %v446 = vmul.f32 %v360, %v445
  %447 = vmatprep.subr.mxu0 0.0
  %448 = vmatpush1.msra.mxu0 %v45
  %449 = vmatprep.subr.mxu0 0.0
  %450 = vmatpush1.msra.mxu0 %v44
  %451 = vmatprep.subr.mxu0 0.0
  %452 = vmatpush1.msra.mxu0 %v43
  %453 = vmatprep.subr.mxu0 0.0
  %454 = vmatpush1.msra.mxu0 %v42
  %455 = vmatprep.subr.mxu0 0.0
  %456 = vmatpush1.msra.mxu0 %v41
  %457 = vmatprep.subr.mxu0 0.0
  %458 = vmatpush1.msra.mxu0 %v40
  %459 = vmatprep.subr.mxu0 0.0
  %460 = vmatpush1.msra.mxu0 %v39
  %461 = vmatprep.subr.mxu0 0.0
  %462 = vmatpush1.msra.mxu0 %v38
  %463 = vmatprep.subr.mxu0 0.0
  %464 = vmatpush1.msra.mxu0 %v37
  %465 = vmatprep.subr.mxu0 0.0
  %466 = vmatpush1.msra.mxu0 %v36
  %467 = vmatprep.subr.mxu0 0.0
  %468 = vmatpush1.msra.mxu0 %v35
  %469 = vmatprep.subr.mxu0 0.0
  %470 = vmatpush1.msra.mxu0 %v34
  %471 = vmatprep.subr.mxu0 0.0
  %472 = vmatpush1.msra.mxu0 %v33
  %473 = vmatprep.subr.mxu0 0.0
  %474 = vmatpush1.msra.mxu0 %v32
  %475 = vmatprep.subr.mxu0 0.0
  %476 = vmatpush1.msra.mxu0 %v31
  %477 = vmatprep.subr.mxu0 0.0
  %478 = vmatpush1.msra.mxu0 %v30
  %479 = vmatprep.subr.mxu0 0.0
  %480 = vmatpush2.msra.mxu0 0.0
  %481 = vmatprep.subr.mxu0 0.0
  %482 = vmatpush2.msra.mxu0 0.0
  %483 = vmatprep.subr.mxu0 0.0
  %484 = vmatpush2.msra.mxu0 0.0
  %485 = vmatprep.subr.mxu0 0.0
  %486 = vmatpush2.msra.mxu0 0.0
  %487 = vmatprep.subr.mxu0 0.0
  %488 = vmatpush2.msra.mxu0 0.0
  %489 = vmatprep.subr.mxu0 0.0
  %490 = vmatpush2.msra.mxu0 0.0
  %491 = vmatprep.subr.mxu0 0.0
  %492 = vmatpush2.msra.mxu0 0.0
  %493 = vmatprep.subr.mxu0 0.0
  %494 = vmatpush2.msra.mxu0 0.0
  %495 = vmatprep.subr.mxu0 0.0
  %496 = vmatpush2.msra.mxu0 0.0
  %497 = vmatprep.subr.mxu0 0.0
  %498 = vmatpush2.msra.mxu0 0.0
  %499 = vmatprep.subr.mxu0 0.0
  %500 = vmatpush2.msra.mxu0 0.0
  %501 = vmatprep.subr.mxu0 0.0
  %502 = vmatpush2.msra.mxu0 0.0
  %503 = vmatprep.subr.mxu0 0.0
  %504 = vmatpush2.msra.mxu0 0.0
  %505 = vmatprep.subr.mxu0 0.0
  %506 = vmatpush2.msra.mxu0 0.0
  %507 = vmatprep.subr.mxu0 0.0
  %508 = vmatpush2.msra.mxu0 0.0
  %509 = vmatprep.subr.mxu0 0.0
  %510 = vmatpush2.msra.mxu0 0.0
  %511 = vmatprep.mubr.f32.mxu0 0.0
  %512 = vmatmul.mubr.f32.gmra.mxu0 %v441
  %v513 = vpop.f32.mrf.mxu0
  %v514 = vadd.f32 0.0, %v513
  %v515 = vpop.f32.mrf.mxu0
  %516 = vdwg.mxu0
  %v517 = vadd.f32 %v446, %v514
  %vm518 = vcmp.gt.f32.partialorder %v517, 0.3
  %v519 = vsel %vm518, 1, 0
  %v520 = vcvt.s32.f32 %v519
  %vm521 = vcmp.lt.f32.partialorder %v517, 0.3
  %v522 = vsel %vm521, %v517, 0.0
  %v523 = vadd.f32 %v361, %v520
  %s524 = scalar_lea.vmem %s0, 24
  %v525 = vld [vmem:[%s524] sm:$0xff]
  %526 = vmatprep.subr.mxu0 0.0
  %527 = vmatpush1.msra.mxu0 %v29
  %528 = vmatprep.subr.mxu0 0.0
  %529 = vmatpush1.msra.mxu0 %v28
  %530 = vmatprep.subr.mxu0 0.0
  %531 = vmatpush1.msra.mxu0 %v27
  %532 = vmatprep.subr.mxu0 0.0
  %533 = vmatpush1.msra.mxu0 %v26
  %534 = vmatprep.subr.mxu0 0.0
  %535 = vmatpush1.msra.mxu0 %v25
  %536 = vmatprep.subr.mxu0 0.0
  %537 = vmatpush1.msra.mxu0 %v24
  %538 = vmatprep.subr.mxu0 0.0
  %539 = vmatpush1.msra.mxu0 %v23
  %540 = vmatprep.subr.mxu0 0.0
  %541 = vmatpush1.msra.mxu0 %v22
  %542 = vmatprep.subr.mxu0 0.0
  %543 = vmatpush1.msra.mxu0 %v21
  %544 = vmatprep.subr.mxu0 0.0
  %545 = vmatpush1.msra.mxu0 %v20
  %546 = vmatprep.subr.mxu0 0.0
  %547 = vmatpush1.msra.mxu0 %v19
  %548 = vmatprep.subr.mxu0 0.0
  %549 = vmatpush1.msra.mxu0 %v18
  %550 = vmatprep.subr.mxu0 0.0
  %551 = vmatpush1.msra.mxu0 %v17
  %552 = vmatprep.subr.mxu0 0.0
  %553 = vmatpush1.msra.mxu0 %v16
  %554 = vmatprep.subr.mxu0 0.0
  %555 = vmatpush1.msra.mxu0 %v15
  %556 = vmatprep.subr.mxu0 0.0
  %557 = vmatpush1.msra.mxu0 %v14
  %558 = vmatprep.subr.mxu0 0.0
  %559 = vmatpush2.msra.mxu0 0.0
  %560 = vmatprep.subr.mxu0 0.0
  %561 = vmatpush2.msra.mxu0 0.0
  %562 = vmatprep.subr.mxu0 0.0
  %563 = vmatpush2.msra.mxu0 0.0
  %564 = vmatprep.subr.mxu0 0.0
  %565 = vmatpush2.msra.mxu0 0.0
  %566 = vmatprep.subr.mxu0 0.0
  %567 = vmatpush2.msra.mxu0 0.0
  %568 = vmatprep.subr.mxu0 0.0
  %569 = vmatpush2.msra.mxu0 0.0
  %570 = vmatprep.subr.mxu0 0.0
  %571 = vmatpush2.msra.mxu0 0.0
  %572 = vmatprep.subr.mxu0 0.0
  %573 = vmatpush2.msra.mxu0 0.0
  %574 = vmatprep.subr.mxu0 0.0
  %575 = vmatpush2.msra.mxu0 0.0
  %576 = vmatprep.subr.mxu0 0.0
  %577 = vmatpush2.msra.mxu0 0.0
  %578 = vmatprep.subr.mxu0 0.0
  %579 = vmatpush2.msra.mxu0 0.0
  %580 = vmatprep.subr.mxu0 0.0
  %581 = vmatpush2.msra.mxu0 0.0
  %582 = vmatprep.subr.mxu0 0.0
  %583 = vmatpush2.msra.mxu0 0.0
  %584 = vmatprep.subr.mxu0 0.0
  %585 = vmatpush2.msra.mxu0 0.0
  %586 = vmatprep.subr.mxu0 0.0
  %587 = vmatpush2.msra.mxu0 0.0
  %588 = vmatprep.subr.mxu0 0.0
  %589 = vmatpush2.msra.mxu0 0.0
  %590 = vmatprep.mubr.f32.mxu0 0.0
  %591 = vmatmul.mubr.f32.gmra.mxu0 %v441
  %v592 = vpop.f32.mrf.mxu0
  %v593 = vadd.f32 0.0, %v592
  %v594 = vpop.f32.mrf.mxu0
  %595 = vdwg.mxu0
  %v596 = vadd.f32 %v525, %v593
  %v597 = vsub.f32 1.0, %v441
  %v598 = vmul.f32 %v597, 0.8999998
  %v599 = vmul.f32 %v443, %v598
  %v600 = vadd.f32 %v596, %v599
  %vm601 = vcmp.gt.f32.partialorder %v600, 0.3
  %v602 = vsel %vm601, 1, 0
  %v603 = vcvt.s32.f32 %v602
  %vm604 = vcmp.lt.f32.partialorder %v600, 0.3
  %v605 = vsel %vm604, %v600, 0.0
  %v606 = vsub.f32 1.0, %v520
  %v607 = vmul.f32 %v606, 0.8999998
  %v608 = vmul.f32 %v522, %v607
  %609 = vmatprep.subr.mxu0 0.0
  %610 = vmatpush1.msra.mxu0 %v45
  %611 = vmatprep.subr.mxu0 0.0
  %612 = vmatpush1.msra.mxu0 %v44
  %613 = vmatprep.subr.mxu0 0.0
  %614 = vmatpush1.msra.mxu0 %v43
  %615 = vmatprep.subr.mxu0 0.0
  %616 = vmatpush1.msra.mxu0 %v42
  %617 = vmatprep.subr.mxu0 0.0
  %618 = vmatpush1.msra.mxu0 %v41
  %619 = vmatprep.subr.mxu0 0.0
  %620 = vmatpush1.msra.mxu0 %v40
  %621 = vmatprep.subr.mxu0 0.0
  %622 = vmatpush1.msra.mxu0 %v39
  %623 = vmatprep.subr.mxu0 0.0
  %624 = vmatpush1.msra.mxu0 %v38
  %625 = vmatprep.subr.mxu0 0.0
  %626 = vmatpush1.msra.mxu0 %v37
  %627 = vmatprep.subr.mxu0 0.0
  %628 = vmatpush1.msra.mxu0 %v36
  %629 = vmatprep.subr.mxu0 0.0
  %630 = vmatpush1.msra.mxu0 %v35
  %631 = vmatprep.subr.mxu0 0.0
  %632 = vmatpush1.msra.mxu0 %v34
  %633 = vmatprep.subr.mxu0 0.0
  %634 = vmatpush1.msra.mxu0 %v33
  %635 = vmatprep.subr.mxu0 0.0
  %636 = vmatpush1.msra.mxu0 %v32
  %637 = vmatprep.subr.mxu0 0.0
  %638 = vmatpush1.msra.mxu0 %v31
  %639 = vmatprep.subr.mxu0 0.0
  %640 = vmatpush1.msra.mxu0 %v30
  %641 = vmatprep.subr.mxu0 0.0
  %642 = vmatpush2.msra.mxu0 0.0
  %643 = vmatprep.subr.mxu0 0.0
  %644 = vmatpush2.msra.mxu0 0.0
  %645 = vmatprep.subr.mxu0 0.0
  %646 = vmatpush2.msra.mxu0 0.0
  %647 = vmatprep.subr.mxu0 0.0
  %648 = vmatpush2.msra.mxu0 0.0
  %649 = vmatprep.subr.mxu0 0.0
  %650 = vmatpush2.msra.mxu0 0.0
  %651 = vmatprep.subr.mxu0 0.0
  %652 = vmatpush2.msra.mxu0 0.0
  %653 = vmatprep.subr.mxu0 0.0
  %654 = vmatpush2.msra.mxu0 0.0
  %655 = vmatprep.subr.mxu0 0.0
  %656 = vmatpush2.msra.mxu0 0.0
  %657 = vmatprep.subr.mxu0 0.0
  %658 = vmatpush2.msra.mxu0 0.0
  %659 = vmatprep.subr.mxu0 0.0
  %660 = vmatpush2.msra.mxu0 0.0
  %661 = vmatprep.subr.mxu0 0.0
  %662 = vmatpush2.msra.mxu0 0.0
  %663 = vmatprep.subr.mxu0 0.0
  %664 = vmatpush2.msra.mxu0 0.0
  %665 = vmatprep.subr.mxu0 0.0
  %666 = vmatpush2.msra.mxu0 0.0
  %667 = vmatprep.subr.mxu0 0.0
  %668 = vmatpush2.msra.mxu0 0.0
  %669 = vmatprep.subr.mxu0 0.0
  %670 = vmatpush2.msra.mxu0 0.0
  %671 = vmatprep.subr.mxu0 0.0
  %672 = vmatpush2.msra.mxu0 0.0
  %673 = vmatprep.mubr.f32.mxu0 0.0
  %674 = vmatmul.mubr.f32.gmra.mxu0 %v603
  %v675 = vpop.f32.mrf.mxu0
  %v676 = vadd.f32 0.0, %v675
  %v677 = vpop.f32.mrf.mxu0
  %678 = vdwg.mxu0
  %v679 = vadd.f32 %v608, %v676
  %vm680 = vcmp.gt.f32.partialorder %v679, 0.3
  %v681 = vsel %vm680, 1, 0
  %v682 = vcvt.s32.f32 %v681
  %vm683 = vcmp.lt.f32.partialorder %v679, 0.3
  %v684 = vsel %vm683, %v679, 0.0
  %v685 = vadd.f32 %v523, %v682
  %s686 = scalar_lea.vmem %s0, 32
  %v687 = vld [vmem:[%s686] sm:$0xff]
  %688 = vmatprep.subr.mxu0 0.0
  %689 = vmatpush1.msra.mxu0 %v29
  %690 = vmatprep.subr.mxu0 0.0
  %691 = vmatpush1.msra.mxu0 %v28
  %692 = vmatprep.subr.mxu0 0.0
  %693 = vmatpush1.msra.mxu0 %v27
  %694 = vmatprep.subr.mxu0 0.0
  %695 = vmatpush1.msra.mxu0 %v26
  %696 = vmatprep.subr.mxu0 0.0
  %697 = vmatpush1.msra.mxu0 %v25
  %698 = vmatprep.subr.mxu0 0.0
  %699 = vmatpush1.msra.mxu0 %v24
  %700 = vmatprep.subr.mxu0 0.0
  %701 = vmatpush1.msra.mxu0 %v23
  %702 = vmatprep.subr.mxu0 0.0
  %703 = vmatpush1.msra.mxu0 %v22
  %704 = vmatprep.subr.mxu0 0.0
  %705 = vmatpush1.msra.mxu0 %v21
  %706 = vmatprep.subr.mxu0 0.0
  %707 = vmatpush1.msra.mxu0 %v20
  %708 = vmatprep.subr.mxu0 0.0
  %709 = vmatpush1.msra.mxu0 %v19
  %710 = vmatprep.subr.mxu0 0.0
  %711 = vmatpush1.msra.mxu0 %v18
  %712 = vmatprep.subr.mxu0 0.0
  %713 = vmatpush1.msra.mxu0 %v17
  %714 = vmatprep.subr.mxu0 0.0
  %715 = vmatpush1.msra.mxu0 %v16
  %716 = vmatprep.subr.mxu0 0.0
  %717 = vmatpush1.msra.mxu0 %v15
  %718 = vmatprep.subr.mxu0 0.0
  %719 = vmatpush1.msra.mxu0 %v14
  %720 = vmatprep.subr.mxu0 0.0
  %721 = vmatpush2.msra.mxu0 0.0
  %722 = vmatprep.subr.mxu0 0.0
  %723 = vmatpush2.msra.mxu0 0.0
  %724 = vmatprep.subr.mxu0 0.0
  %725 = vmatpush2.msra.mxu0 0.0
  %726 = vmatprep.subr.mxu0 0.0
  %727 = vmatpush2.msra.mxu0 0.0
  %728 = vmatprep.subr.mxu0 0.0
  %729 = vmatpush2.msra.mxu0 0.0
  %730 = vmatprep.subr.mxu0 0.0
  %731 = vmatpush2.msra.mxu0 0.0
  %732 = vmatprep.subr.mxu0 0.0
  %733 = vmatpush2.msra.mxu0 0.0
  %734 = vmatprep.subr.mxu0 0.0
  %735 = vmatpush2.msra.mxu0 0.0
  %736 = vmatprep.subr.mxu0 0.0
  %737 = vmatpush2.msra.mxu0 0.0
  %738 = vmatprep.subr.mxu0 0.0
  %739 = vmatpush2.msra.mxu0 0.0
  %740 = vmatprep.subr.mxu0 0.0
  %741 = vmatpush2.msra.mxu0 0.0
  %742 = vmatprep.subr.mxu0 0.0
  %743 = vmatpush2.msra.mxu0 0.0
  %744 = vmatprep.subr.mxu0 0.0
  %745 = vmatpush2.msra.mxu0 0.0
  %746 = vmatprep.subr.mxu0 0.0
  %747 = vmatpush2.msra.mxu0 0.0
  %748 = vmatprep.subr.mxu0 0.0
  %749 = vmatpush2.msra.mxu0 0.0
  %750 = vmatprep.subr.mxu0 0.0
  %751 = vmatpush2.msra.mxu0 0.0
  %752 = vmatprep.mubr.f32.mxu0 0.0
  %753 = vmatmul.mubr.f32.gmra.mxu0 %v603
  %v754 = vpop.f32.mrf.mxu0
  %v755 = vadd.f32 0.0, %v754
  %v756 = vpop.f32.mrf.mxu0
  %757 = vdwg.mxu0
  %v758 = vadd.f32 %v687, %v755
  %v759 = vsub.f32 1.0, %v603
  %v760 = vmul.f32 %v759, 0.8999998
  %v761 = vmul.f32 %v605, %v760
  %v762 = vadd.f32 %v758, %v761
  %vm763 = vcmp.gt.f32.partialorder %v762, 0.3
  %v764 = vsel %vm763, 1, 0
  %v765 = vcvt.s32.f32 %v764
  %vm766 = vcmp.lt.f32.partialorder %v762, 0.3
  %v767 = vsel %vm766, %v762, 0.0
  %v768 = vsub.f32 1.0, %v682
  %v769 = vmul.f32 %v768, 0.8999998
  %v770 = vmul.f32 %v684, %v769
  %771 = vmatprep.subr.mxu0 0.0
  %772 = vmatpush1.msra.mxu0 %v45
  %773 = vmatprep.subr.mxu0 0.0
  %774 = vmatpush1.msra.mxu0 %v44
  %775 = vmatprep.subr.mxu0 0.0
  %776 = vmatpush1.msra.mxu0 %v43
  %777 = vmatprep.subr.mxu0 0.0
  %778 = vmatpush1.msra.mxu0 %v42
  %779 = vmatprep.subr.mxu0 0.0
  %780 = vmatpush1.msra.mxu0 %v41
  %781 = vmatprep.subr.mxu0 0.0
  %782 = vmatpush1.msra.mxu0 %v40
  %783 = vmatprep.subr.mxu0 0.0
  %784 = vmatpush1.msra.mxu0 %v39
  %785 = vmatprep.subr.mxu0 0.0
  %786 = vmatpush1.msra.mxu0 %v38
  %787 = vmatprep.subr.mxu0 0.0
  %788 = vmatpush1.msra.mxu0 %v37
  %789 = vmatprep.subr.mxu0 0.0
  %790 = vmatpush1.msra.mxu0 %v36
  %791 = vmatprep.subr.mxu0 0.0
  %792 = vmatpush1.msra.mxu0 %v35
  %793 = vmatprep.subr.mxu0 0.0
  %794 = vmatpush1.msra.mxu0 %v34
  %795 = vmatprep.subr.mxu0 0.0
  %796 = vmatpush1.msra.mxu0 %v33
  %797 = vmatprep.subr.mxu0 0.0
  %798 = vmatpush1.msra.mxu0 %v32
  %799 = vmatprep.subr.mxu0 0.0
  %800 = vmatpush1.msra.mxu0 %v31
  %801 = vmatprep.subr.mxu0 0.0
  %802 = vmatpush1.msra.mxu0 %v30
  %803 = vmatprep.subr.mxu0 0.0
  %804 = vmatpush2.msra.mxu0 0.0
  %805 = vmatprep.subr.mxu0 0.0
  %806 = vmatpush2.msra.mxu0 0.0
  %807 = vmatprep.subr.mxu0 0.0
  %808 = vmatpush2.msra.mxu0 0.0
  %809 = vmatprep.subr.mxu0 0.0
  %810 = vmatpush2.msra.mxu0 0.0
  %811 = vmatprep.subr.mxu0 0.0
  %812 = vmatpush2.msra.mxu0 0.0
  %813 = vmatprep.subr.mxu0 0.0
  %814 = vmatpush2.msra.mxu0 0.0
  %815 = vmatprep.subr.mxu0 0.0
  %816 = vmatpush2.msra.mxu0 0.0
  %817 = vmatprep.subr.mxu0 0.0
  %818 = vmatpush2.msra.mxu0 0.0
  %819 = vmatprep.subr.mxu0 0.0
  %820 = vmatpush2.msra.mxu0 0.0
  %821 = vmatprep.subr.mxu0 0.0
  %822 = vmatpush2.msra.mxu0 0.0
  %823 = vmatprep.subr.mxu0 0.0
  %824 = vmatpush2.msra.mxu0 0.0
  %825 = vmatprep.subr.mxu0 0.0
  %826 = vmatpush2.msra.mxu0 0.0
  %827 = vmatprep.subr.mxu0 0.0
  %828 = vmatpush2.msra.mxu0 0.0
  %829 = vmatprep.subr.mxu0 0.0
  %830 = vmatpush2.msra.mxu0 0.0
  %831 = vmatprep.subr.mxu0 0.0
  %832 = vmatpush2.msra.mxu0 0.0
  %833 = vmatprep.subr.mxu0 0.0
  %834 = vmatpush2.msra.mxu0 0.0
  %835 = vmatprep.mubr.f32.mxu0 0.0
  %836 = vmatmul.mubr.f32.gmra.mxu0 %v765
  %v837 = vpop.f32.mrf.mxu0
  %v838 = vadd.f32 0.0, %v837
  %v839 = vpop.f32.mrf.mxu0
  %840 = vdwg.mxu0
  %v841 = vadd.f32 %v770, %v838
  %vm842 = vcmp.gt.f32.partialorder %v841, 0.3
  %v843 = vsel %vm842, 1, 0
  %v844 = vcvt.s32.f32 %v843
  %vm845 = vcmp.lt.f32.partialorder %v841, 0.3
  %v846 = vsel %vm845, %v841, 0.0
  %v847 = vadd.f32 %v685, %v844
  %s848 = scalar_lea.vmem %s0, 40
  %v849 = vld [vmem:[%s848] sm:$0xff]
  %850 = vmatprep.subr.mxu0 0.0
  %851 = vmatpush1.msra.mxu0 %v29
  %852 = vmatprep.subr.mxu0 0.0
  %853 = vmatpush1.msra.mxu0 %v28
  %854 = vmatprep.subr.mxu0 0.0
  %855 = vmatpush1.msra.mxu0 %v27
  %856 = vmatprep.subr.mxu0 0.0
  %857 = vmatpush1.msra.mxu0 %v26
  %858 = vmatprep.subr.mxu0 0.0
  %859 = vmatpush1.msra.mxu0 %v25
  %860 = vmatprep.subr.mxu0 0.0
  %861 = vmatpush1.msra.mxu0 %v24
  %862 = vmatprep.subr.mxu0 0.0
  %863 = vmatpush1.msra.mxu0 %v23
  %864 = vmatprep.subr.mxu0 0.0
  %865 = vmatpush1.msra.mxu0 %v22
  %866 = vmatprep.subr.mxu0 0.0
  %867 = vmatpush1.msra.mxu0 %v21
  %868 = vmatprep.subr.mxu0 0.0
  %869 = vmatpush1.msra.mxu0 %v20
  %870 = vmatprep.subr.mxu0 0.0
  %871 = vmatpush1.msra.mxu0 %v19
  %872 = vmatprep.subr.mxu0 0.0
  %873 = vmatpush1.msra.mxu0 %v18
  %874 = vmatprep.subr.mxu0 0.0
  %875 = vmatpush1.msra.mxu0 %v17
  %876 = vmatprep.subr.mxu0 0.0
  %877 = vmatpush1.msra.mxu0 %v16
  %878 = vmatprep.subr.mxu0 0.0
  %879 = vmatpush1.msra.mxu0 %v15
  %880 = vmatprep.subr.mxu0 0.0
  %881 = vmatpush1.msra.mxu0 %v14
  %882 = vmatprep.subr.mxu0 0.0
  %883 = vmatpush2.msra.mxu0 0.0
  %884 = vmatprep.subr.mxu0 0.0
  %885 = vmatpush2.msra.mxu0 0.0
  %886 = vmatprep.subr.mxu0 0.0
  %887 = vmatpush2.msra.mxu0 0.0
  %888 = vmatprep.subr.mxu0 0.0
  %889 = vmatpush2.msra.mxu0 0.0
  %890 = vmatprep.subr.mxu0 0.0
  %891 = vmatpush2.msra.mxu0 0.0
  %892 = vmatprep.subr.mxu0 0.0
  %893 = vmatpush2.msra.mxu0 0.0
  %894 = vmatprep.subr.mxu0 0.0
  %895 = vmatpush2.msra.mxu0 0.0
  %896 = vmatprep.subr.mxu0 0.0
  %897 = vmatpush2.msra.mxu0 0.0
  %898 = vmatprep.subr.mxu0 0.0
  %899 = vmatpush2.msra.mxu0 0.0
  %900 = vmatprep.subr.mxu0 0.0
  %901 = vmatpush2.msra.mxu0 0.0
  %902 = vmatprep.subr.mxu0 0.0
  %903 = vmatpush2.msra.mxu0 0.0
  %904 = vmatprep.subr.mxu0 0.0
  %905 = vmatpush2.msra.mxu0 0.0
  %906 = vmatprep.subr.mxu0 0.0
  %907 = vmatpush2.msra.mxu0 0.0
  %908 = vmatprep.subr.mxu0 0.0
  %909 = vmatpush2.msra.mxu0 0.0
  %910 = vmatprep.subr.mxu0 0.0
  %911 = vmatpush2.msra.mxu0 0.0
  %912 = vmatprep.subr.mxu0 0.0
  %913 = vmatpush2.msra.mxu0 0.0
  %914 = vmatprep.mubr.f32.mxu0 0.0
  %915 = vmatmul.mubr.f32.gmra.mxu0 %v765
  %v916 = vpop.f32.mrf.mxu0
  %v917 = vadd.f32 0.0, %v916
  %v918 = vpop.f32.mrf.mxu0
  %919 = vdwg.mxu0
  %v920 = vadd.f32 %v849, %v917
  %v921 = vsub.f32 1.0, %v765
  %v922 = vmul.f32 %v921, 0.8999998
  %v923 = vmul.f32 %v767, %v922
  %v924 = vadd.f32 %v920, %v923
  %vm925 = vcmp.gt.f32.partialorder %v924, 0.3
  %v926 = vsel %vm925, 1, 0
  %v927 = vcvt.s32.f32 %v926
  %vm928 = vcmp.lt.f32.partialorder %v924, 0.3
  %v929 = vsel %vm928, %v924, 0.0
  %v930 = vsub.f32 1.0, %v844
  %v931 = vmul.f32 %v930, 0.8999998
  %v932 = vmul.f32 %v846, %v931
  %933 = vmatprep.subr.mxu0 0.0
  %934 = vmatpush1.msra.mxu0 %v45
  %935 = vmatprep.subr.mxu0 0.0
  %936 = vmatpush1.msra.mxu0 %v44
  %937 = vmatprep.subr.mxu0 0.0
  %938 = vmatpush1.msra.mxu0 %v43
  %939 = vmatprep.subr.mxu0 0.0
  %940 = vmatpush1.msra.mxu0 %v42
  %941 = vmatprep.subr.mxu0 0.0
  %942 = vmatpush1.msra.mxu0 %v41
  %943 = vmatprep.subr.mxu0 0.0
  %944 = vmatpush1.msra.mxu0 %v40
  %945 = vmatprep.subr.mxu0 0.0
  %946 = vmatpush1.msra.mxu0 %v39
  %947 = vmatprep.subr.mxu0 0.0
  %948 = vmatpush1.msra.mxu0 %v38
  %949 = vmatprep.subr.mxu0 0.0
  %950 = vmatpush1.msra.mxu0 %v37
  %951 = vmatprep.subr.mxu0 0.0
  %952 = vmatpush1.msra.mxu0 %v36
  %953 = vmatprep.subr.mxu0 0.0
  %954 = vmatpush1.msra.mxu0 %v35
  %955 = vmatprep.subr.mxu0 0.0
  %956 = vmatpush1.msra.mxu0 %v34
  %957 = vmatprep.subr.mxu0 0.0
  %958 = vmatpush1.msra.mxu0 %v33
  %959 = vmatprep.subr.mxu0 0.0
  %960 = vmatpush1.msra.mxu0 %v32
  %961 = vmatprep.subr.mxu0 0.0
  %962 = vmatpush1.msra.mxu0 %v31
  %963 = vmatprep.subr.mxu0 0.0
  %964 = vmatpush1.msra.mxu0 %v30
  %965 = vmatprep.subr.mxu0 0.0
  %966 = vmatpush2.msra.mxu0 0.0
  %967 = vmatprep.subr.mxu0 0.0
  %968 = vmatpush2.msra.mxu0 0.0
  %969 = vmatprep.subr.mxu0 0.0
  %970 = vmatpush2.msra.mxu0 0.0
  %971 = vmatprep.subr.mxu0 0.0
  %972 = vmatpush2.msra.mxu0 0.0
  %973 = vmatprep.subr.mxu0 0.0
  %974 = vmatpush2.msra.mxu0 0.0
  %975 = vmatprep.subr.mxu0 0.0
  %976 = vmatpush2.msra.mxu0 0.0
  %977 = vmatprep.subr.mxu0 0.0
  %978 = vmatpush2.msra.mxu0 0.0
  %979 = vmatprep.subr.mxu0 0.0
  %980 = vmatpush2.msra.mxu0 0.0
  %981 = vmatprep.subr.mxu0 0.0
  %982 = vmatpush2.msra.mxu0 0.0
  %983 = vmatprep.subr.mxu0 0.0
  %984 = vmatpush2.msra.mxu0 0.0
  %985 = vmatprep.subr.mxu0 0.0
  %986 = vmatpush2.msra.mxu0 0.0
  %987 = vmatprep.subr.mxu0 0.0
  %988 = vmatpush2.msra.mxu0 0.0
  %989 = vmatprep.subr.mxu0 0.0
  %990 = vmatpush2.msra.mxu0 0.0
  %991 = vmatprep.subr.mxu0 0.0
  %992 = vmatpush2.msra.mxu0 0.0
  %993 = vmatprep.subr.mxu0 0.0
  %994 = vmatpush2.msra.mxu0 0.0
  %995 = vmatprep.subr.mxu0 0.0
  %996 = vmatpush2.msra.mxu0 0.0
  %997 = vmatprep.mubr.f32.mxu0 0.0
  %998 = vmatmul.mubr.f32.gmra.mxu0 %v927
  %v999 = vpop.f32.mrf.mxu0
  %v1000 = vadd.f32 0.0, %v999
  %v1001 = vpop.f32.mrf.mxu0
  %1002 = vdwg.mxu0
  %v1003 = vadd.f32 %v932, %v1000
  %vm1004 = vcmp.gt.f32.partialorder %v1003, 0.3
  %v1005 = vsel %vm1004, 1, 0
  %v1006 = vcvt.s32.f32 %v1005
  %vm1007 = vcmp.lt.f32.partialorder %v1003, 0.3
  %v1008 = vsel %vm1007, %v1003, 0.0
  %v1009 = vadd.f32 %v847, %v1006
  %s1010 = scalar_lea.vmem %s0, 48
  %v1011 = vld [vmem:[%s1010] sm:$0xff]
  %1012 = vmatprep.subr.mxu0 0.0
  %1013 = vmatpush1.msra.mxu0 %v29
  %1014 = vmatprep.subr.mxu0 0.0
  %1015 = vmatpush1.msra.mxu0 %v28
  %1016 = vmatprep.subr.mxu0 0.0
  %1017 = vmatpush1.msra.mxu0 %v27
  %1018 = vmatprep.subr.mxu0 0.0
  %1019 = vmatpush1.msra.mxu0 %v26
  %1020 = vmatprep.subr.mxu0 0.0
  %1021 = vmatpush1.msra.mxu0 %v25
  %1022 = vmatprep.subr.mxu0 0.0
  %1023 = vmatpush1.msra.mxu0 %v24
  %1024 = vmatprep.subr.mxu0 0.0
  %1025 = vmatpush1.msra.mxu0 %v23
  %1026 = vmatprep.subr.mxu0 0.0
  %1027 = vmatpush1.msra.mxu0 %v22
  %1028 = vmatprep.subr.mxu0 0.0
  %1029 = vmatpush1.msra.mxu0 %v21
  %1030 = vmatprep.subr.mxu0 0.0
  %1031 = vmatpush1.msra.mxu0 %v20
  %1032 = vmatprep.subr.mxu0 0.0
  %1033 = vmatpush1.msra.mxu0 %v19
  %1034 = vmatprep.subr.mxu0 0.0
  %1035 = vmatpush1.msra.mxu0 %v18
  %1036 = vmatprep.subr.mxu0 0.0
  %1037 = vmatpush1.msra.mxu0 %v17
  %1038 = vmatprep.subr.mxu0 0.0
  %1039 = vmatpush1.msra.mxu0 %v16
  %1040 = vmatprep.subr.mxu0 0.0
  %1041 = vmatpush1.msra.mxu0 %v15
  %1042 = vmatprep.subr.mxu0 0.0
  %1043 = vmatpush1.msra.mxu0 %v14
  %1044 = vmatprep.subr.mxu0 0.0
  %1045 = vmatpush2.msra.mxu0 0.0
  %1046 = vmatprep.subr.mxu0 0.0
  %1047 = vmatpush2.msra.mxu0 0.0
  %1048 = vmatprep.subr.mxu0 0.0
  %1049 = vmatpush2.msra.mxu0 0.0
  %1050 = vmatprep.subr.mxu0 0.0
  %1051 = vmatpush2.msra.mxu0 0.0
  %1052 = vmatprep.subr.mxu0 0.0
  %1053 = vmatpush2.msra.mxu0 0.0
  %1054 = vmatprep.subr.mxu0 0.0
  %1055 = vmatpush2.msra.mxu0 0.0
  %1056 = vmatprep.subr.mxu0 0.0
  %1057 = vmatpush2.msra.mxu0 0.0
  %1058 = vmatprep.subr.mxu0 0.0
  %1059 = vmatpush2.msra.mxu0 0.0
  %1060 = vmatprep.subr.mxu0 0.0
  %1061 = vmatpush2.msra.mxu0 0.0
  %1062 = vmatprep.subr.mxu0 0.0
  %1063 = vmatpush2.msra.mxu0 0.0
  %1064 = vmatprep.subr.mxu0 0.0
  %1065 = vmatpush2.msra.mxu0 0.0
  %1066 = vmatprep.subr.mxu0 0.0
  %1067 = vmatpush2.msra.mxu0 0.0
  %1068 = vmatprep.subr.mxu0 0.0
  %1069 = vmatpush2.msra.mxu0 0.0
  %1070 = vmatprep.subr.mxu0 0.0
  %1071 = vmatpush2.msra.mxu0 0.0
  %1072 = vmatprep.subr.mxu0 0.0
  %1073 = vmatpush2.msra.mxu0 0.0
  %1074 = vmatprep.subr.mxu0 0.0
  %1075 = vmatpush2.msra.mxu0 0.0
  %1076 = vmatprep.mubr.f32.mxu0 0.0
  %1077 = vmatmul.mubr.f32.gmra.mxu0 %v927
  %v1078 = vpop.f32.mrf.mxu0
  %v1079 = vadd.f32 0.0, %v1078
  %v1080 = vpop.f32.mrf.mxu0
  %1081 = vdwg.mxu0
  %v1082 = vadd.f32 %v1011, %v1079
  %v1083 = vsub.f32 1.0, %v927
  %v1084 = vmul.f32 %v1083, 0.8999998
  %v1085 = vmul.f32 %v929, %v1084
  %v1086 = vadd.f32 %v1082, %v1085
  %vm1087 = vcmp.gt.f32.partialorder %v1086, 0.3
  %v1088 = vsel %vm1087, 1, 0
  %v1089 = vcvt.s32.f32 %v1088
  %vm1090 = vcmp.lt.f32.partialorder %v1086, 0.3
  %v1091 = vsel %vm1090, %v1086, 0.0
  %v1092 = vsub.f32 1.0, %v1006
  %v1093 = vmul.f32 %v1092, 0.8999998
  %v1094 = vmul.f32 %v1008, %v1093
  %1095 = vmatprep.subr.mxu0 0.0
  %1096 = vmatpush1.msra.mxu0 %v45
  %1097 = vmatprep.subr.mxu0 0.0
  %1098 = vmatpush1.msra.mxu0 %v44
  %1099 = vmatprep.subr.mxu0 0.0
  %1100 = vmatpush1.msra.mxu0 %v43
  %1101 = vmatprep.subr.mxu0 0.0
  %1102 = vmatpush1.msra.mxu0 %v42
  %1103 = vmatprep.subr.mxu0 0.0
  %1104 = vmatpush1.msra.mxu0 %v41
  %1105 = vmatprep.subr.mxu0 0.0
  %1106 = vmatpush1.msra.mxu0 %v40
  %1107 = vmatprep.subr.mxu0 0.0
  %1108 = vmatpush1.msra.mxu0 %v39
  %1109 = vmatprep.subr.mxu0 0.0
  %1110 = vmatpush1.msra.mxu0 %v38
  %1111 = vmatprep.subr.mxu0 0.0
  %1112 = vmatpush1.msra.mxu0 %v37
  %1113 = vmatprep.subr.mxu0 0.0
  %1114 = vmatpush1.msra.mxu0 %v36
  %1115 = vmatprep.subr.mxu0 0.0
  %1116 = vmatpush1.msra.mxu0 %v35
  %1117 = vmatprep.subr.mxu0 0.0
  %1118 = vmatpush1.msra.mxu0 %v34
  %1119 = vmatprep.subr.mxu0 0.0
  %1120 = vmatpush1.msra.mxu0 %v33
  %1121 = vmatprep.subr.mxu0 0.0
  %1122 = vmatpush1.msra.mxu0 %v32
  %1123 = vmatprep.subr.mxu0 0.0
  %1124 = vmatpush1.msra.mxu0 %v31
  %1125 = vmatprep.subr.mxu0 0.0
  %1126 = vmatpush1.msra.mxu0 %v30
  %1127 = vmatprep.subr.mxu0 0.0
  %1128 = vmatpush2.msra.mxu0 0.0
  %1129 = vmatprep.subr.mxu0 0.0
  %1130 = vmatpush2.msra.mxu0 0.0
  %1131 = vmatprep.subr.mxu0 0.0
  %1132 = vmatpush2.msra.mxu0 0.0
  %1133 = vmatprep.subr.mxu0 0.0
  %1134 = vmatpush2.msra.mxu0 0.0
  %1135 = vmatprep.subr.mxu0 0.0
  %1136 = vmatpush2.msra.mxu0 0.0
  %1137 = vmatprep.subr.mxu0 0.0
  %1138 = vmatpush2.msra.mxu0 0.0
  %1139 = vmatprep.subr.mxu0 0.0
  %1140 = vmatpush2.msra.mxu0 0.0
  %1141 = vmatprep.subr.mxu0 0.0
  %1142 = vmatpush2.msra.mxu0 0.0
  %1143 = vmatprep.subr.mxu0 0.0
  %1144 = vmatpush2.msra.mxu0 0.0
  %1145 = vmatprep.subr.mxu0 0.0
  %1146 = vmatpush2.msra.mxu0 0.0
  %1147 = vmatprep.subr.mxu0 0.0
  %1148 = vmatpush2.msra.mxu0 0.0
  %1149 = vmatprep.subr.mxu0 0.0
  %1150 = vmatpush2.msra.mxu0 0.0
  %1151 = vmatprep.subr.mxu0 0.0
  %1152 = vmatpush2.msra.mxu0 0.0
  %1153 = vmatprep.subr.mxu0 0.0
  %1154 = vmatpush2.msra.mxu0 0.0
  %1155 = vmatprep.subr.mxu0 0.0
  %1156 = vmatpush2.msra.mxu0 0.0
  %1157 = vmatprep.subr.mxu0 0.0
  %1158 = vmatpush2.msra.mxu0 0.0
  %1159 = vmatprep.mubr.f32.mxu0 0.0
  %1160 = vmatmul.mubr.f32.gmra.mxu0 %v1089
  %v1161 = vpop.f32.mrf.mxu0
  %v1162 = vadd.f32 0.0, %v1161
  %v1163 = vpop.f32.mrf.mxu0
  %1164 = vdwg.mxu0
  %v1165 = vadd.f32 %v1094, %v1162
  %vm1166 = vcmp.gt.f32.partialorder %v1165, 0.3
  %v1167 = vsel %vm1166, 1, 0
  %v1168 = vcvt.s32.f32 %v1167
  %vm1169 = vcmp.lt.f32.partialorder %v1165, 0.3
  %v1170 = vsel %vm1169, %v1165, 0.0
  %v1171 = vadd.f32 %v1009, %v1168
  %s1172 = scalar_lea.vmem %s0, 56
  %v1173 = vld [vmem:[%s1172] sm:$0xff]
  %1174 = vmatprep.subr.mxu0 0.0
  %1175 = vmatpush1.msra.mxu0 %v29
  %1176 = vmatprep.subr.mxu0 0.0
  %1177 = vmatpush1.msra.mxu0 %v28
  %1178 = vmatprep.subr.mxu0 0.0
  %1179 = vmatpush1.msra.mxu0 %v27
  %1180 = vmatprep.subr.mxu0 0.0
  %1181 = vmatpush1.msra.mxu0 %v26
  %1182 = vmatprep.subr.mxu0 0.0
  %1183 = vmatpush1.msra.mxu0 %v25
  %1184 = vmatprep.subr.mxu0 0.0
  %1185 = vmatpush1.msra.mxu0 %v24
  %1186 = vmatprep.subr.mxu0 0.0
  %1187 = vmatpush1.msra.mxu0 %v23
  %1188 = vmatprep.subr.mxu0 0.0
  %1189 = vmatpush1.msra.mxu0 %v22
  %1190 = vmatprep.subr.mxu0 0.0
  %1191 = vmatpush1.msra.mxu0 %v21
  %1192 = vmatprep.subr.mxu0 0.0
  %1193 = vmatpush1.msra.mxu0 %v20
  %1194 = vmatprep.subr.mxu0 0.0
  %1195 = vmatpush1.msra.mxu0 %v19
  %1196 = vmatprep.subr.mxu0 0.0
  %1197 = vmatpush1.msra.mxu0 %v18
  %1198 = vmatprep.subr.mxu0 0.0
  %1199 = vmatpush1.msra.mxu0 %v17
  %1200 = vmatprep.subr.mxu0 0.0
  %1201 = vmatpush1.msra.mxu0 %v16
  %1202 = vmatprep.subr.mxu0 0.0
  %1203 = vmatpush1.msra.mxu0 %v15
  %1204 = vmatprep.subr.mxu0 0.0
  %1205 = vmatpush1.msra.mxu0 %v14
  %1206 = vmatprep.subr.mxu0 0.0
  %1207 = vmatpush2.msra.mxu0 0.0
  %1208 = vmatprep.subr.mxu0 0.0
  %1209 = vmatpush2.msra.mxu0 0.0
  %1210 = vmatprep.subr.mxu0 0.0
  %1211 = vmatpush2.msra.mxu0 0.0
  %1212 = vmatprep.subr.mxu0 0.0
  %1213 = vmatpush2.msra.mxu0 0.0
  %1214 = vmatprep.subr.mxu0 0.0
  %1215 = vmatpush2.msra.mxu0 0.0
  %1216 = vmatprep.subr.mxu0 0.0
  %1217 = vmatpush2.msra.mxu0 0.0
  %1218 = vmatprep.subr.mxu0 0.0
  %1219 = vmatpush2.msra.mxu0 0.0
  %1220 = vmatprep.subr.mxu0 0.0
  %1221 = vmatpush2.msra.mxu0 0.0
  %1222 = vmatprep.subr.mxu0 0.0
  %1223 = vmatpush2.msra.mxu0 0.0
  %1224 = vmatprep.subr.mxu0 0.0
  %1225 = vmatpush2.msra.mxu0 0.0
  %1226 = vmatprep.subr.mxu0 0.0
  %1227 = vmatpush2.msra.mxu0 0.0
  %1228 = vmatprep.subr.mxu0 0.0
  %1229 = vmatpush2.msra.mxu0 0.0
  %1230 = vmatprep.subr.mxu0 0.0
  %1231 = vmatpush2.msra.mxu0 0.0
  %1232 = vmatprep.subr.mxu0 0.0
  %1233 = vmatpush2.msra.mxu0 0.0
  %1234 = vmatprep.subr.mxu0 0.0
  %1235 = vmatpush2.msra.mxu0 0.0
  %1236 = vmatprep.subr.mxu0 0.0
  %1237 = vmatpush2.msra.mxu0 0.0
  %1238 = vmatprep.mubr.f32.mxu0 0.0
  %1239 = vmatmul.mubr.f32.gmra.mxu0 %v1089
  %v1240 = vpop.f32.mrf.mxu0
  %v1241 = vadd.f32 0.0, %v1240
  %v1242 = vpop.f32.mrf.mxu0
  %1243 = vdwg.mxu0
  %v1244 = vadd.f32 %v1173, %v1241
  %v1245 = vsub.f32 1.0, %v1089
  %v1246 = vmul.f32 %v1245, 0.8999998
  %v1247 = vmul.f32 %v1091, %v1246
  %v1248 = vadd.f32 %v1244, %v1247
  %vm1249 = vcmp.gt.f32.partialorder %v1248, 0.3
  %v1250 = vsel %vm1249, 1, 0
  %v1251 = vcvt.s32.f32 %v1250
  %v1252 = vsub.f32 1.0, %v1168
  %v1253 = vmul.f32 %v1252, 0.8999998
  %v1254 = vmul.f32 %v1170, %v1253
  %1255 = vmatprep.subr.mxu0 0.0
  %1256 = vmatpush1.msra.mxu0 %v45
  %1257 = vmatprep.subr.mxu0 0.0
  %1258 = vmatpush1.msra.mxu0 %v44
  %1259 = vmatprep.subr.mxu0 0.0
  %1260 = vmatpush1.msra.mxu0 %v43
  %1261 = vmatprep.subr.mxu0 0.0
  %1262 = vmatpush1.msra.mxu0 %v42
  %1263 = vmatprep.subr.mxu0 0.0
  %1264 = vmatpush1.msra.mxu0 %v41
  %1265 = vmatprep.subr.mxu0 0.0
  %1266 = vmatpush1.msra.mxu0 %v40
  %1267 = vmatprep.subr.mxu0 0.0
  %1268 = vmatpush1.msra.mxu0 %v39
  %1269 = vmatprep.subr.mxu0 0.0
  %1270 = vmatpush1.msra.mxu0 %v38
  %1271 = vmatprep.subr.mxu0 0.0
  %1272 = vmatpush1.msra.mxu0 %v37
  %1273 = vmatprep.subr.mxu0 0.0
  %1274 = vmatpush1.msra.mxu0 %v36
  %1275 = vmatprep.subr.mxu0 0.0
  %1276 = vmatpush1.msra.mxu0 %v35
  %1277 = vmatprep.subr.mxu0 0.0
  %1278 = vmatpush1.msra.mxu0 %v34
  %1279 = vmatprep.subr.mxu0 0.0
  %1280 = vmatpush1.msra.mxu0 %v33
  %1281 = vmatprep.subr.mxu0 0.0
  %1282 = vmatpush1.msra.mxu0 %v32
  %1283 = vmatprep.subr.mxu0 0.0
  %1284 = vmatpush1.msra.mxu0 %v31
  %1285 = vmatprep.subr.mxu0 0.0
  %1286 = vmatpush1.msra.mxu0 %v30
  %1287 = vmatprep.subr.mxu0 0.0
  %1288 = vmatpush2.msra.mxu0 0.0
  %1289 = vmatprep.subr.mxu0 0.0
  %1290 = vmatpush2.msra.mxu0 0.0
  %1291 = vmatprep.subr.mxu0 0.0
  %1292 = vmatpush2.msra.mxu0 0.0
  %1293 = vmatprep.subr.mxu0 0.0
  %1294 = vmatpush2.msra.mxu0 0.0
  %1295 = vmatprep.subr.mxu0 0.0
  %1296 = vmatpush2.msra.mxu0 0.0
  %1297 = vmatprep.subr.mxu0 0.0
  %1298 = vmatpush2.msra.mxu0 0.0
  %1299 = vmatprep.subr.mxu0 0.0
  %1300 = vmatpush2.msra.mxu0 0.0
  %1301 = vmatprep.subr.mxu0 0.0
  %1302 = vmatpush2.msra.mxu0 0.0
  %1303 = vmatprep.subr.mxu0 0.0
  %1304 = vmatpush2.msra.mxu0 0.0
  %1305 = vmatprep.subr.mxu0 0.0
  %1306 = vmatpush2.msra.mxu0 0.0
  %1307 = vmatprep.subr.mxu0 0.0
  %1308 = vmatpush2.msra.mxu0 0.0
  %1309 = vmatprep.subr.mxu0 0.0
  %1310 = vmatpush2.msra.mxu0 0.0
  %1311 = vmatprep.subr.mxu0 0.0
  %1312 = vmatpush2.msra.mxu0 0.0
  %1313 = vmatprep.subr.mxu0 0.0
  %1314 = vmatpush2.msra.mxu0 0.0
  %1315 = vmatprep.subr.mxu0 0.0
  %1316 = vmatpush2.msra.mxu0 0.0
  %1317 = vmatprep.subr.mxu0 0.0
  %1318 = vmatpush2.msra.mxu0 0.0
  %1319 = vmatprep.mubr.f32.mxu0 0.0
  %1320 = vmatmul.mubr.f32.gmra.mxu0 %v1251
  %v1321 = vpop.f32.mrf.mxu0
  %v1322 = vadd.f32 0.0, %v1321
  %v1323 = vpop.f32.mrf.mxu0
  %1324 = vdwg.mxu0
  %v1325 = vadd.f32 %v1254, %v1322
  %vm1326 = vcmp.gt.f32.partialorder %v1325, 0.3
  %v1327 = vsel %vm1326, 1, 0
  %v1328 = vcvt.s32.f32 %v1327
  %v1329 = vadd.f32 %v1171, %v1328
  %v1330 = vmul.f32 %v1329, 0.125
  %1331 = vst [vmem:[%s3] sm:$0xff] %v1330
  // Predicated region
  $region14: #{rsnn_forward.3} parent=0 // pred_check
    _
  $region15: #{rsnn_forward.3} parent=0 // pred_check_branch
    %1333 = sbr.rel (0) target = $region17
  $region16: #{rsnn_forward.3} parent=0 // pred_region
    _
  $region17: #{rsnn_forward.3} parent=0 // pred_fallthru
    _
  // Predicated region
  $region18: #{rsnn_forward.3} parent=0 // pred_check
    _
  $region19: #{rsnn_forward.3} parent=0 // pred_check_branch
    %1335 = sbr.rel (0) target = $region21
  $region20: #{rsnn_forward.3} parent=0 // pred_region
    _
  $region21: #{rsnn_forward.3} parent=0 // pred_fallthru
    _

// kernel: rsnn_forward.2
$region0: #{rsnn_forward.2}
  #allocation0 [shape = 'u32[]', space=smem, size = 0x4, offset = 0x4, fixed_abs, tag = 'smem constant byte address 0x4 - core index']
  #allocation1 [shape = 'u32[144,128]{1,0:T(1,128)}', space=vmem, size = 0x12000, scoped, tag = 'internal scratch']
  %s0 = inlined_call_operand.vmem [shape: bf16[32,2312], index: 0, kind: input, shape index: {}]
  %s1 = inlined_call_operand.vmem [shape: f32[2312,128], index: 1, kind: input, shape index: {}]
  %s2 = inlined_call_operand.vmem [shape: f32[32,128], index: 2, kind: output, shape index: {}]
  %s3 = sld [smem:[#allocation0]]
  $region18: #{rsnn_forward.2} parent=0
    _
  %s5 = ssub.s32 1, %s3
  %s6 = scalar_select 0, %s5, %s3
  // Predicated region
  $region2: #{rsnn_forward.2} parent=0 // pred_check
    _
  $region3: #{rsnn_forward.2} parent=0 // pred_check_branch
    %8 = sbr.rel (0) target = $region5
  $region4: #{rsnn_forward.2} parent=0 // pred_region
    _
  $region5: #{rsnn_forward.2} parent=0 // pred_fallthru
    _
  // Predicated region
  $region6: #{rsnn_forward.2} parent=0 // pred_check
    _
  $region7: #{rsnn_forward.2} parent=0 // pred_check_branch
    %10 = sbr.rel (0) target = $region9
  $region8: #{rsnn_forward.2} parent=0 // pred_region
    _
  $region9: #{rsnn_forward.2} parent=0 // pred_fallthru
    _
  %v11 = vld [vmem:[%s0] sm:$0xff]
  %v12 = vld [vmem:[%s0 + $0x8] sm:$0xff]
  %v13 = vld [vmem:[%s0 + $0x10] sm:$0xff]
  %v14 = vld [vmem:[%s0 + $0x18] sm:$0xff]
  %v15 = vld [vmem:[%s0 + $0x20] sm:$0xff]
  %v16 = vld [vmem:[%s0 + $0x28] sm:$0xff]
  %v17 = vld [vmem:[%s0 + $0x30] sm:$0xff]
  %v18 = vld [vmem:[%s0 + $0x38] sm:$0xff]
  %v19 = vld [vmem:[%s0 + $0x40] sm:$0xff]
  %v20 = vld [vmem:[%s0 + $0x48] sm:$0xf]
  %v21 = vld [vmem:[%s0 + $0x4c] sm:$0xff]
  %v22 = vld [vmem:[%s0 + $0x54] sm:$0xff]
  %v23 = vld [vmem:[%s0 + $0x5c] sm:$0xff]
  %v24 = vld [vmem:[%s0 + $0x64] sm:$0xff]
  %v25 = vld [vmem:[%s0 + $0x6c] sm:$0xff]
  %v26 = vld [vmem:[%s0 + $0x74] sm:$0xff]
  %v27 = vld [vmem:[%s0 + $0x7c] sm:$0xff]
  %v28 = vld [vmem:[%s0 + $0x84] sm:$0xff]
  %v29 = vld [vmem:[%s0 + $0x8c] sm:$0xff]
  %v30 = vld [vmem:[%s0 + $0x94] sm:$0xf]
  %v31 = vld [vmem:[%s0 + $0x98] sm:$0xff]
  %v32 = vld [vmem:[%s0 + $0xa0] sm:$0xff]
  %v33 = vld [vmem:[%s0 + $0xa8] sm:$0xff]
  %v34 = vld [vmem:[%s0 + $0xb0] sm:$0xff]
  %v35 = vld [vmem:[%s0 + $0xb8] sm:$0xff]
  %v36 = vld [vmem:[%s0 + $0xc0] sm:$0xff]
  %v37 = vld [vmem:[%s0 + $0xc8] sm:$0xff]
  %v38 = vld [vmem:[%s0 + $0xd0] sm:$0xff]
  %v39 = vld [vmem:[%s0 + $0xd8] sm:$0xff]
  %v40 = vld [vmem:[%s0 + $0xe0] sm:$0xf]
  %v41 = vld [vmem:[%s0 + $0xe4] sm:$0xff]
  %v42 = vld [vmem:[%s0 + $0xec] sm:$0xff]
  %v43 = vld [vmem:[%s0 + $0xf4] sm:$0xff]
  %v44 = vld [vmem:[%s0 + $0xfc] sm:$0xff]
  %v45 = vld [vmem:[%s0 + $0x104] sm:$0xff]
  %v46 = vld [vmem:[%s0 + $0x10c] sm:$0xff]
  %v47 = vld [vmem:[%s0 + $0x114] sm:$0xff]
  %v48 = vld [vmem:[%s0 + $0x11c] sm:$0xff]
  %v49 = vld [vmem:[%s0 + $0x124] sm:$0xff]
  %v50 = vld [vmem:[%s0 + $0x12c] sm:$0xf]
  %v51 = vunpack.c.l.bf16 %v11
  %v52 = vunpack.c.h.bf16 %v11
  %v53 = vunpack.c.l.bf16 %v12
  %v54 = vunpack.c.h.bf16 %v12
  %v55 = vunpack.c.l.bf16 %v13
  %v56 = vunpack.c.h.bf16 %v13
  %v57 = vunpack.c.l.bf16 %v14
  %v58 = vunpack.c.h.bf16 %v14
  %v59 = vunpack.c.l.bf16 %v15
  %v60 = vunpack.c.h.bf16 %v15
  %v61 = vunpack.c.l.bf16 %v16
  %v62 = vunpack.c.h.bf16 %v16
  %v63 = vunpack.c.l.bf16 %v17
  %v64 = vunpack.c.h.bf16 %v17
  %v65 = vunpack.c.l.bf16 %v18
  %v66 = vunpack.c.h.bf16 %v18
  %v67 = vunpack.c.l.bf16 %v19
  %v68 = vunpack.c.h.bf16 %v19
  %v69 = vunpack.c.l.bf16 %v20
  %v70 = vunpack.c.l.bf16 %v21
  %v71 = vunpack.c.h.bf16 %v21
  %v72 = vunpack.c.l.bf16 %v22
  %v73 = vunpack.c.h.bf16 %v22
  %v74 = vunpack.c.l.bf16 %v23
  %v75 = vunpack.c.h.bf16 %v23
  %v76 = vunpack.c.l.bf16 %v24
  %v77 = vunpack.c.h.bf16 %v24
  %v78 = vunpack.c.l.bf16 %v25
  %v79 = vunpack.c.h.bf16 %v25
  %v80 = vunpack.c.l.bf16 %v26
  %v81 = vunpack.c.h.bf16 %v26
  %v82 = vunpack.c.l.bf16 %v27
  %v83 = vunpack.c.h.bf16 %v27
  %v84 = vunpack.c.l.bf16 %v28
  %v85 = vunpack.c.h.bf16 %v28
  %v86 = vunpack.c.l.bf16 %v29
  %v87 = vunpack.c.h.bf16 %v29
  %v88 = vunpack.c.l.bf16 %v30
  %v89 = vunpack.c.l.bf16 %v31
  %v90 = vunpack.c.h.bf16 %v31
  %v91 = vunpack.c.l.bf16 %v32
  %v92 = vunpack.c.h.bf16 %v32
  %v93 = vunpack.c.l.bf16 %v33
  %v94 = vunpack.c.h.bf16 %v33
  %v95 = vunpack.c.l.bf16 %v34
  %v96 = vunpack.c.h.bf16 %v34
  %v97 = vunpack.c.l.bf16 %v35
  %v98 = vunpack.c.h.bf16 %v35
  %v99 = vunpack.c.l.bf16 %v36
  %v100 = vunpack.c.h.bf16 %v36
  %v101 = vunpack.c.l.bf16 %v37
  %v102 = vunpack.c.h.bf16 %v37
  %v103 = vunpack.c.l.bf16 %v38
  %v104 = vunpack.c.h.bf16 %v38
  %v105 = vunpack.c.l.bf16 %v39
  %v106 = vunpack.c.h.bf16 %v39
  %v107 = vunpack.c.l.bf16 %v40
  %v108 = vunpack.c.l.bf16 %v41
  %v109 = vunpack.c.h.bf16 %v41
  %v110 = vunpack.c.l.bf16 %v42
  %v111 = vunpack.c.h.bf16 %v42
  %v112 = vunpack.c.l.bf16 %v43
  %v113 = vunpack.c.h.bf16 %v43
  %v114 = vunpack.c.l.bf16 %v44
  %v115 = vunpack.c.h.bf16 %v44
  %v116 = vunpack.c.l.bf16 %v45
  %v117 = vunpack.c.h.bf16 %v45
  %v118 = vunpack.c.l.bf16 %v46
  %v119 = vunpack.c.h.bf16 %v46
  %v120 = vunpack.c.l.bf16 %v47
  %v121 = vunpack.c.h.bf16 %v47
  %v122 = vunpack.c.l.bf16 %v48
  %v123 = vunpack.c.h.bf16 %v48
  %v124 = vunpack.c.l.bf16 %v49
  %v125 = vunpack.c.h.bf16 %v49
  %v126 = vunpack.c.l.bf16 %v50
  %v127 = vld [vmem:[%s1] sm:$0xff]
  %v128 = vld [vmem:[%s1 + $0x8] sm:$0xff]
  %v129 = vld [vmem:[%s1 + $0x10] sm:$0xff]
  %v130 = vld [vmem:[%s1 + $0x18] sm:$0xff]
  %v131 = vld [vmem:[%s1 + $0x20] sm:$0xff]
  %v132 = vld [vmem:[%s1 + $0x28] sm:$0xff]
  %v133 = vld [vmem:[%s1 + $0x30] sm:$0xff]
  %v134 = vld [vmem:[%s1 + $0x38] sm:$0xff]
  %v135 = vld [vmem:[%s1 + $0x40] sm:$0xff]
  %v136 = vld [vmem:[%s1 + $0x48] sm:$0xff]
  %v137 = vld [vmem:[%s1 + $0x50] sm:$0xff]
  %v138 = vld [vmem:[%s1 + $0x58] sm:$0xff]
  %v139 = vld [vmem:[%s1 + $0x60] sm:$0xff]
  %v140 = vld [vmem:[%s1 + $0x68] sm:$0xff]
  %v141 = vld [vmem:[%s1 + $0x70] sm:$0xff]
  %v142 = vld [vmem:[%s1 + $0x78] sm:$0xff]
  %v143 = vld [vmem:[%s1 + $0x80] sm:$0xff]
  %v144 = vld [vmem:[%s1 + $0x88] sm:$0xff]
  %v145 = vld [vmem:[%s1 + $0x90] sm:$0xff]
  %v146 = vld [vmem:[%s1 + $0x98] sm:$0xff]
  %v147 = vld [vmem:[%s1 + $0xa0] sm:$0xff]
  %v148 = vld [vmem:[%s1 + $0xa8] sm:$0xff]
  %v149 = vld [vmem:[%s1 + $0xb0] sm:$0xff]
  %v150 = vld [vmem:[%s1 + $0xb8] sm:$0xff]
  %v151 = vld [vmem:[%s1 + $0xc0] sm:$0xff]
  %v152 = vld [vmem:[%s1 + $0xc8] sm:$0xff]
  %v153 = vld [vmem:[%s1 + $0xd0] sm:$0xff]
  %v154 = vld [vmem:[%s1 + $0xd8] sm:$0xff]
  %v155 = vld [vmem:[%s1 + $0xe0] sm:$0xff]
  %v156 = vld [vmem:[%s1 + $0xe8] sm:$0xff]
  %v157 = vld [vmem:[%s1 + $0xf0] sm:$0xff]
  %v158 = vld [vmem:[%s1 + $0xf8] sm:$0xff]
  %v159 = vld [vmem:[%s1 + $0x100] sm:$0xff]
  %v160 = vld [vmem:[%s1 + $0x108] sm:$0xff]
  %v161 = vld [vmem:[%s1 + $0x110] sm:$0xff]
  %v162 = vld [vmem:[%s1 + $0x118] sm:$0xff]
  %v163 = vld [vmem:[%s1 + $0x120] sm:$0xff]
  %v164 = vld [vmem:[%s1 + $0x128] sm:$0xff]
  %v165 = vld [vmem:[%s1 + $0x130] sm:$0xff]
  %v166 = vld [vmem:[%s1 + $0x138] sm:$0xff]
  %v167 = vld [vmem:[%s1 + $0x140] sm:$0xff]
  %v168 = vld [vmem:[%s1 + $0x148] sm:$0xff]
  %v169 = vld [vmem:[%s1 + $0x150] sm:$0xff]
  %v170 = vld [vmem:[%s1 + $0x158] sm:$0xff]
  %v171 = vld [vmem:[%s1 + $0x160] sm:$0xff]
  %v172 = vld [vmem:[%s1 + $0x168] sm:$0xff]
  %v173 = vld [vmem:[%s1 + $0x170] sm:$0xff]
  %v174 = vld [vmem:[%s1 + $0x178] sm:$0xff]
  %v175 = vld [vmem:[%s1 + $0x180] sm:$0xff]
  %v176 = vld [vmem:[%s1 + $0x188] sm:$0xff]
  %v177 = vld [vmem:[%s1 + $0x190] sm:$0xff]
  %v178 = vld [vmem:[%s1 + $0x198] sm:$0xff]
  %v179 = vld [vmem:[%s1 + $0x1a0] sm:$0xff]
  %v180 = vld [vmem:[%s1 + $0x1a8] sm:$0xff]
  %v181 = vld [vmem:[%s1 + $0x1b0] sm:$0xff]
  %v182 = vld [vmem:[%s1 + $0x1b8] sm:$0xff]
  %v183 = vld [vmem:[%s1 + $0x1c0] sm:$0xff]
  %v184 = vld [vmem:[%s1 + $0x1c8] sm:$0xff]
  %v185 = vld [vmem:[%s1 + $0x1d0] sm:$0xff]
  %v186 = vld [vmem:[%s1 + $0x1d8] sm:$0xff]
  %v187 = vld [vmem:[%s1 + $0x1e0] sm:$0xff]
  %v188 = vld [vmem:[%s1 + $0x1e8] sm:$0xff]
  %v189 = vld [vmem:[%s1 + $0x1f0] sm:$0xff]
  %v190 = vld [vmem:[%s1 + $0x1f8] sm:$0xff]
  %v191 = vld [vmem:[%s1 + $0x200] sm:$0xff]
  %v192 = vld [vmem:[%s1 + $0x208] sm:$0xff]
  %v193 = vld [vmem:[%s1 + $0x210] sm:$0xff]
  %v194 = vld [vmem:[%s1 + $0x218] sm:$0xff]
  %v195 = vld [vmem:[%s1 + $0x220] sm:$0xff]
  %v196 = vld [vmem:[%s1 + $0x228] sm:$0xff]
  %v197 = vld [vmem:[%s1 + $0x230] sm:$0xff]
  %v198 = vld [vmem:[%s1 + $0x238] sm:$0xff]
  %v199 = vld [vmem:[%s1 + $0x240] sm:$0xff]
  %v200 = vld [vmem:[%s1 + $0x248] sm:$0xff]
  %v201 = vld [vmem:[%s1 + $0x250] sm:$0xff]
  %v202 = vld [vmem:[%s1 + $0x258] sm:$0xff]
  %v203 = vld [vmem:[%s1 + $0x260] sm:$0xff]
  %v204 = vld [vmem:[%s1 + $0x268] sm:$0xff]
  %v205 = vld [vmem:[%s1 + $0x270] sm:$0xff]
  %v206 = vld [vmem:[%s1 + $0x278] sm:$0xff]
  %v207 = vld [vmem:[%s1 + $0x280] sm:$0xff]
  %v208 = vld [vmem:[%s1 + $0x288] sm:$0xff]
  %v209 = vld [vmem:[%s1 + $0x290] sm:$0xff]
  %v210 = vld [vmem:[%s1 + $0x298] sm:$0xff]
  %v211 = vld [vmem:[%s1 + $0x2a0] sm:$0xff]
  %v212 = vld [vmem:[%s1 + $0x2a8] sm:$0xff]
  %v213 = vld [vmem:[%s1 + $0x2b0] sm:$0xff]
  %v214 = vld [vmem:[%s1 + $0x2b8] sm:$0xff]
  %v215 = vld [vmem:[%s1 + $0x2c0] sm:$0xff]
  %v216 = vld [vmem:[%s1 + $0x2c8] sm:$0xff]
  %v217 = vld [vmem:[%s1 + $0x2d0] sm:$0xff]
  %v218 = vld [vmem:[%s1 + $0x2d8] sm:$0xff]
  %v219 = vld [vmem:[%s1 + $0x2e0] sm:$0xff]
  %v220 = vld [vmem:[%s1 + $0x2e8] sm:$0xff]
  %v221 = vld [vmem:[%s1 + $0x2f0] sm:$0xff]
  %v222 = vld [vmem:[%s1 + $0x2f8] sm:$0xff]
  %v223 = vld [vmem:[%s1 + $0x300] sm:$0xff]
  %v224 = vld [vmem:[%s1 + $0x308] sm:$0xff]
  %v225 = vld [vmem:[%s1 + $0x310] sm:$0xff]
  %v226 = vld [vmem:[%s1 + $0x318] sm:$0xff]
  %v227 = vld [vmem:[%s1 + $0x320] sm:$0xff]
  %v228 = vld [vmem:[%s1 + $0x328] sm:$0xff]
  %v229 = vld [vmem:[%s1 + $0x330] sm:$0xff]
  %v230 = vld [vmem:[%s1 + $0x338] sm:$0xff]
  %v231 = vld [vmem:[%s1 + $0x340] sm:$0xff]
  %v232 = vld [vmem:[%s1 + $0x348] sm:$0xff]
  %v233 = vld [vmem:[%s1 + $0x350] sm:$0xff]
  %v234 = vld [vmem:[%s1 + $0x358] sm:$0xff]
  %v235 = vld [vmem:[%s1 + $0x360] sm:$0xff]
  %v236 = vld [vmem:[%s1 + $0x368] sm:$0xff]
  %v237 = vld [vmem:[%s1 + $0x370] sm:$0xff]
  %v238 = vld [vmem:[%s1 + $0x378] sm:$0xff]
  %v239 = vld [vmem:[%s1 + $0x380] sm:$0xff]
  %v240 = vld [vmem:[%s1 + $0x388] sm:$0xff]
  %v241 = vld [vmem:[%s1 + $0x390] sm:$0xff]
  %v242 = vld [vmem:[%s1 + $0x398] sm:$0xff]
  %v243 = vld [vmem:[%s1 + $0x3a0] sm:$0xff]
  %v244 = vld [vmem:[%s1 + $0x3a8] sm:$0xff]
  %v245 = vld [vmem:[%s1 + $0x3b0] sm:$0xff]
  %v246 = vld [vmem:[%s1 + $0x3b8] sm:$0xff]
  %v247 = vld [vmem:[%s1 + $0x3c0] sm:$0xff]
  %v248 = vld [vmem:[%s1 + $0x3c8] sm:$0xff]
  %v249 = vld [vmem:[%s1 + $0x3d0] sm:$0xff]
  %v250 = vld [vmem:[%s1 + $0x3d8] sm:$0xff]
  %v251 = vld [vmem:[%s1 + $0x3e0] sm:$0xff]
  %v252 = vld [vmem:[%s1 + $0x3e8] sm:$0xff]
  %v253 = vld [vmem:[%s1 + $0x3f0] sm:$0xff]
  %v254 = vld [vmem:[%s1 + $0x3f8] sm:$0xff]
  %v255 = vld [vmem:[%s1 + $0x400] sm:$0xff]
  %v256 = vld [vmem:[%s1 + $0x408] sm:$0xff]
  %v257 = vld [vmem:[%s1 + $0x410] sm:$0xff]
  %v258 = vld [vmem:[%s1 + $0x418] sm:$0xff]
  %v259 = vld [vmem:[%s1 + $0x420] sm:$0xff]
  %v260 = vld [vmem:[%s1 + $0x428] sm:$0xff]
  %v261 = vld [vmem:[%s1 + $0x430] sm:$0xff]
  %v262 = vld [vmem:[%s1 + $0x438] sm:$0xff]
  %v263 = vld [vmem:[%s1 + $0x440] sm:$0xff]
  %v264 = vld [vmem:[%s1 + $0x448] sm:$0xff]
  %v265 = vld [vmem:[%s1 + $0x450] sm:$0xff]
  %v266 = vld [vmem:[%s1 + $0x458] sm:$0xff]
  %v267 = vld [vmem:[%s1 + $0x460] sm:$0xff]
  %v268 = vld [vmem:[%s1 + $0x468] sm:$0xff]
  %v269 = vld [vmem:[%s1 + $0x470] sm:$0xff]
  %v270 = vld [vmem:[%s1 + $0x478] sm:$0xff]
  %v271 = vld [vmem:[%s1 + $0x480] sm:$0xff]
  %v272 = vld [vmem:[%s1 + $0x488] sm:$0xff]
  %v273 = vld [vmem:[%s1 + $0x490] sm:$0xff]
  %v274 = vld [vmem:[%s1 + $0x498] sm:$0xff]
  %v275 = vld [vmem:[%s1 + $0x4a0] sm:$0xff]
  %v276 = vld [vmem:[%s1 + $0x4a8] sm:$0xff]
  %v277 = vld [vmem:[%s1 + $0x4b0] sm:$0xff]
  %v278 = vld [vmem:[%s1 + $0x4b8] sm:$0xff]
  %v279 = vld [vmem:[%s1 + $0x4c0] sm:$0xff]
  %v280 = vld [vmem:[%s1 + $0x4c8] sm:$0xff]
  %v281 = vld [vmem:[%s1 + $0x4d0] sm:$0xff]
  %v282 = vld [vmem:[%s1 + $0x4d8] sm:$0xff]
  %v283 = vld [vmem:[%s1 + $0x4e0] sm:$0xff]
  %v284 = vld [vmem:[%s1 + $0x4e8] sm:$0xff]
  %v285 = vld [vmem:[%s1 + $0x4f0] sm:$0xff]
  %v286 = vld [vmem:[%s1 + $0x4f8] sm:$0xff]
  %v287 = vld [vmem:[%s1 + $0x500] sm:$0xff]
  %v288 = vld [vmem:[%s1 + $0x508] sm:$0xff]
  %v289 = vld [vmem:[%s1 + $0x510] sm:$0xff]
  %v290 = vld [vmem:[%s1 + $0x518] sm:$0xff]
  %v291 = vld [vmem:[%s1 + $0x520] sm:$0xff]
  %v292 = vld [vmem:[%s1 + $0x528] sm:$0xff]
  %v293 = vld [vmem:[%s1 + $0x530] sm:$0xff]
  %v294 = vld [vmem:[%s1 + $0x538] sm:$0xff]
  %v295 = vld [vmem:[%s1 + $0x540] sm:$0xff]
  %v296 = vld [vmem:[%s1 + $0x548] sm:$0xff]
  %v297 = vld [vmem:[%s1 + $0x550] sm:$0xff]
  %v298 = vld [vmem:[%s1 + $0x558] sm:$0xff]
  %v299 = vld [vmem:[%s1 + $0x560] sm:$0xff]
  %v300 = vld [vmem:[%s1 + $0x568] sm:$0xff]
  %v301 = vld [vmem:[%s1 + $0x570] sm:$0xff]
  %v302 = vld [vmem:[%s1 + $0x578] sm:$0xff]
  %v303 = vld [vmem:[%s1 + $0x580] sm:$0xff]
  %v304 = vld [vmem:[%s1 + $0x588] sm:$0xff]
  %v305 = vld [vmem:[%s1 + $0x590] sm:$0xff]
  %v306 = vld [vmem:[%s1 + $0x598] sm:$0xff]
  %v307 = vld [vmem:[%s1 + $0x5a0] sm:$0xff]
  %v308 = vld [vmem:[%s1 + $0x5a8] sm:$0xff]
  %v309 = vld [vmem:[%s1 + $0x5b0] sm:$0xff]
  %v310 = vld [vmem:[%s1 + $0x5b8] sm:$0xff]
  %v311 = vld [vmem:[%s1 + $0x5c0] sm:$0xff]
  %v312 = vld [vmem:[%s1 + $0x5c8] sm:$0xff]
  %v313 = vld [vmem:[%s1 + $0x5d0] sm:$0xff]
  %v314 = vld [vmem:[%s1 + $0x5d8] sm:$0xff]
  %v315 = vld [vmem:[%s1 + $0x5e0] sm:$0xff]
  %v316 = vld [vmem:[%s1 + $0x5e8] sm:$0xff]
  %v317 = vld [vmem:[%s1 + $0x5f0] sm:$0xff]
  %v318 = vld [vmem:[%s1 + $0x5f8] sm:$0xff]
  %v319 = vld [vmem:[%s1 + $0x600] sm:$0xff]
  %v320 = vld [vmem:[%s1 + $0x608] sm:$0xff]
  %v321 = vld [vmem:[%s1 + $0x610] sm:$0xff]
  %v322 = vld [vmem:[%s1 + $0x618] sm:$0xff]
  %v323 = vld [vmem:[%s1 + $0x620] sm:$0xff]
  %v324 = vld [vmem:[%s1 + $0x628] sm:$0xff]
  %v325 = vld [vmem:[%s1 + $0x630] sm:$0xff]
  %v326 = vld [vmem:[%s1 + $0x638] sm:$0xff]
  %v327 = vld [vmem:[%s1 + $0x640] sm:$0xff]
  %v328 = vld [vmem:[%s1 + $0x648] sm:$0xff]
  %v329 = vld [vmem:[%s1 + $0x650] sm:$0xff]
  %v330 = vld [vmem:[%s1 + $0x658] sm:$0xff]
  %v331 = vld [vmem:[%s1 + $0x660] sm:$0xff]
  %v332 = vld [vmem:[%s1 + $0x668] sm:$0xff]
  %v333 = vld [vmem:[%s1 + $0x670] sm:$0xff]
  %v334 = vld [vmem:[%s1 + $0x678] sm:$0xff]
  %v335 = vld [vmem:[%s1 + $0x680] sm:$0xff]
  %v336 = vld [vmem:[%s1 + $0x688] sm:$0xff]
  %v337 = vld [vmem:[%s1 + $0x690] sm:$0xff]
  %v338 = vld [vmem:[%s1 + $0x698] sm:$0xff]
  %v339 = vld [vmem:[%s1 + $0x6a0] sm:$0xff]
  %v340 = vld [vmem:[%s1 + $0x6a8] sm:$0xff]
  %v341 = vld [vmem:[%s1 + $0x6b0] sm:$0xff]
  %v342 = vld [vmem:[%s1 + $0x6b8] sm:$0xff]
  %v343 = vld [vmem:[%s1 + $0x6c0] sm:$0xff]
  %v344 = vld [vmem:[%s1 + $0x6c8] sm:$0xff]
  %v345 = vld [vmem:[%s1 + $0x6d0] sm:$0xff]
  %v346 = vld [vmem:[%s1 + $0x6d8] sm:$0xff]
  %v347 = vld [vmem:[%s1 + $0x6e0] sm:$0xff]
  %v348 = vld [vmem:[%s1 + $0x6e8] sm:$0xff]
  %v349 = vld [vmem:[%s1 + $0x6f0] sm:$0xff]
  %v350 = vld [vmem:[%s1 + $0x6f8] sm:$0xff]
  %v351 = vld [vmem:[%s1 + $0x700] sm:$0xff]
  %v352 = vld [vmem:[%s1 + $0x708] sm:$0xff]
  %v353 = vld [vmem:[%s1 + $0x710] sm:$0xff]
  %v354 = vld [vmem:[%s1 + $0x718] sm:$0xff]
  %v355 = vld [vmem:[%s1 + $0x720] sm:$0xff]
  %v356 = vld [vmem:[%s1 + $0x728] sm:$0xff]
  %v357 = vld [vmem:[%s1 + $0x730] sm:$0xff]
  %v358 = vld [vmem:[%s1 + $0x738] sm:$0xff]
  %v359 = vld [vmem:[%s1 + $0x740] sm:$0xff]
  %v360 = vld [vmem:[%s1 + $0x748] sm:$0xff]
  %v361 = vld [vmem:[%s1 + $0x750] sm:$0xff]
  %v362 = vld [vmem:[%s1 + $0x758] sm:$0xff]
  %v363 = vld [vmem:[%s1 + $0x760] sm:$0xff]
  %v364 = vld [vmem:[%s1 + $0x768] sm:$0xff]
  %v365 = vld [vmem:[%s1 + $0x770] sm:$0xff]
  %v366 = vld [vmem:[%s1 + $0x778] sm:$0xff]
  %v367 = vld [vmem:[%s1 + $0x780] sm:$0xff]
  %v368 = vld [vmem:[%s1 + $0x788] sm:$0xff]
  %v369 = vld [vmem:[%s1 + $0x790] sm:$0xff]
  %v370 = vld [vmem:[%s1 + $0x798] sm:$0xff]
  %v371 = vld [vmem:[%s1 + $0x7a0] sm:$0xff]
  %v372 = vld [vmem:[%s1 + $0x7a8] sm:$0xff]
  %v373 = vld [vmem:[%s1 + $0x7b0] sm:$0xff]
  %v374 = vld [vmem:[%s1 + $0x7b8] sm:$0xff]
  %v375 = vld [vmem:[%s1 + $0x7c0] sm:$0xff]
  %v376 = vld [vmem:[%s1 + $0x7c8] sm:$0xff]
  %v377 = vld [vmem:[%s1 + $0x7d0] sm:$0xff]
  %v378 = vld [vmem:[%s1 + $0x7d8] sm:$0xff]
  %v379 = vld [vmem:[%s1 + $0x7e0] sm:$0xff]
  %v380 = vld [vmem:[%s1 + $0x7e8] sm:$0xff]
  %v381 = vld [vmem:[%s1 + $0x7f0] sm:$0xff]
  %v382 = vld [vmem:[%s1 + $0x7f8] sm:$0xff]
  %v383 = vld [vmem:[%s1 + $0x800] sm:$0xff]
  %v384 = vld [vmem:[%s1 + $0x808] sm:$0xff]
  %v385 = vld [vmem:[%s1 + $0x810] sm:$0xff]
  %v386 = vld [vmem:[%s1 + $0x818] sm:$0xff]
  %v387 = vld [vmem:[%s1 + $0x820] sm:$0xff]
  %v388 = vld [vmem:[%s1 + $0x828] sm:$0xff]
  %v389 = vld [vmem:[%s1 + $0x830] sm:$0xff]
  %v390 = vld [vmem:[%s1 + $0x838] sm:$0xff]
  %v391 = vld [vmem:[%s1 + $0x840] sm:$0xff]
  %v392 = vld [vmem:[%s1 + $0x848] sm:$0xff]
  %v393 = vld [vmem:[%s1 + $0x850] sm:$0xff]
  %v394 = vld [vmem:[%s1 + $0x858] sm:$0xff]
  %v395 = vld [vmem:[%s1 + $0x860] sm:$0xff]
  %v396 = vld [vmem:[%s1 + $0x868] sm:$0xff]
  %v397 = vld [vmem:[%s1 + $0x870] sm:$0xff]
  %v398 = vld [vmem:[%s1 + $0x878] sm:$0xff]
  %v399 = vld [vmem:[%s1 + $0x880] sm:$0xff]
  %v400 = vld [vmem:[%s1 + $0x888] sm:$0xff]
  %v401 = vld [vmem:[%s1 + $0x890] sm:$0xff]
  %v402 = vld [vmem:[%s1 + $0x898] sm:$0xff]
  %v403 = vld [vmem:[%s1 + $0x8a0] sm:$0xff]
  %v404 = vld [vmem:[%s1 + $0x8a8] sm:$0xff]
  %v405 = vld [vmem:[%s1 + $0x8b0] sm:$0xff]
  %v406 = vld [vmem:[%s1 + $0x8b8] sm:$0xff]
  %v407 = vld [vmem:[%s1 + $0x8c0] sm:$0xff]
  %v408 = vld [vmem:[%s1 + $0x8c8] sm:$0xff]
  %v409 = vld [vmem:[%s1 + $0x8d0] sm:$0xff]
  %v410 = vld [vmem:[%s1 + $0x8d8] sm:$0xff]
  %v411 = vld [vmem:[%s1 + $0x8e0] sm:$0xff]
  %v412 = vld [vmem:[%s1 + $0x8e8] sm:$0xff]
  %v413 = vld [vmem:[%s1 + $0x8f0] sm:$0xff]
  %v414 = vld [vmem:[%s1 + $0x8f8] sm:$0xff]
  %v415 = vld [vmem:[%s1 + $0x900] sm:$0xff]
  %vm416 = vcmask 64512
  %v418 = vsel %vm416, %v69, 0
  %v421 = vsel %vm416, %v88, 0
  %v424 = vsel %vm416, %v107, 0
  %v427 = vsel %vm416, %v126, 0
  %429 = vmatprep.subr.mxu0 0.0
  %430 = vmatpush1.msra.mxu0 %v142
  %431 = vmatprep.subr.mxu0 0.0
  %432 = vmatpush1.msra.mxu0 %v141
  %433 = vmatprep.subr.mxu0 0.0
  %434 = vmatpush1.msra.mxu0 %v140
  %435 = vmatprep.subr.mxu0 0.0
  %436 = vmatpush1.msra.mxu0 %v139
  %437 = vmatprep.subr.mxu0 0.0
  %438 = vmatpush1.msra.mxu0 %v138
  %439 = vmatprep.subr.mxu0 0.0
  %440 = vmatpush1.msra.mxu0 %v137
  %441 = vmatprep.subr.mxu0 0.0
  %442 = vmatpush1.msra.mxu0 %v136
  %443 = vmatprep.subr.mxu0 0.0
  %444 = vmatpush1.msra.mxu0 %v135
  %445 = vmatprep.subr.mxu0 0.0
  %446 = vmatpush1.msra.mxu0 %v134
  %447 = vmatprep.subr.mxu0 0.0
  %448 = vmatpush1.msra.mxu0 %v133
  %449 = vmatprep.subr.mxu0 0.0
  %450 = vmatpush1.msra.mxu0 %v132
  %451 = vmatprep.subr.mxu0 0.0
  %452 = vmatpush1.msra.mxu0 %v131
  %453 = vmatprep.subr.mxu0 0.0
  %454 = vmatpush1.msra.mxu0 %v130
  %455 = vmatprep.subr.mxu0 0.0
  %456 = vmatpush1.msra.mxu0 %v129
  %457 = vmatprep.subr.mxu0 0.0
  %458 = vmatpush1.msra.mxu0 %v128
  %459 = vmatprep.subr.mxu0 0.0
  %460 = vmatpush1.msra.mxu0 %v127
  %461 = vmatprep.subr.mxu0 0.0
  %462 = vmatpush2.msra.mxu0 %v158
  %463 = vmatprep.subr.mxu0 0.0
  %464 = vmatpush2.msra.mxu0 %v157
  %465 = vmatprep.subr.mxu0 0.0
  %466 = vmatpush2.msra.mxu0 %v156
  %467 = vmatprep.subr.mxu0 0.0
  %468 = vmatpush2.msra.mxu0 %v155
  %469 = vmatprep.subr.mxu0 0.0
  %470 = vmatpush2.msra.mxu0 %v154
  %471 = vmatprep.subr.mxu0 0.0
  %472 = vmatpush2.msra.mxu0 %v153
  %473 = vmatprep.subr.mxu0 0.0
  %474 = vmatpush2.msra.mxu0 %v152
  %475 = vmatprep.subr.mxu0 0.0
  %476 = vmatpush2.msra.mxu0 %v151
  %477 = vmatprep.subr.mxu0 0.0
  %478 = vmatpush2.msra.mxu0 %v150
  %479 = vmatprep.subr.mxu0 0.0
  %480 = vmatpush2.msra.mxu0 %v149
  %481 = vmatprep.subr.mxu0 0.0
  %482 = vmatpush2.msra.mxu0 %v148
  %483 = vmatprep.subr.mxu0 0.0
  %484 = vmatpush2.msra.mxu0 %v147
  %485 = vmatprep.subr.mxu0 0.0
  %486 = vmatpush2.msra.mxu0 %v146
  %487 = vmatprep.subr.mxu0 0.0
  %488 = vmatpush2.msra.mxu0 %v145
  %489 = vmatprep.subr.mxu0 0.0
  %490 = vmatpush2.msra.mxu0 %v144
  %491 = vmatprep.subr.mxu0 0.0
  %492 = vmatpush2.msra.mxu0 %v143
  %493 = vmatprep.mubr.f32.mxu0 %v52
  %494 = vmatmul.mubr.f32.gmra.mxu0 %v51
  %v495 = vpop.f32.mrf.mxu0
  %v496 = vadd.f32 0.0, %v495
  %v497 = vpop.f32.mrf.mxu0
  %498 = vmatprep.mubr.f32.mxu0 %v71
  %499 = vmatmul.mubr.f32.gmra.mxu0 %v70
  %v500 = vpop.f32.mrf.mxu0
  %v501 = vadd.f32 0.0, %v500
  %v502 = vpop.f32.mrf.mxu0
  %503 = vmatprep.mubr.f32.mxu0 %v90
  %504 = vmatmul.mubr.f32.gmra.mxu0 %v89
  %v505 = vpop.f32.mrf.mxu0
  %v506 = vadd.f32 0.0, %v505
  %v507 = vpop.f32.mrf.mxu0
  %508 = vmatprep.mubr.f32.mxu0 %v109
  %509 = vmatmul.mubr.f32.gmra.mxu0 %v108
  %v510 = vpop.f32.mrf.mxu0
  %v511 = vadd.f32 0.0, %v510
  %v512 = vpop.f32.mrf.mxu0
  %513 = vdwg.mxu0
  %514 = vmatprep.subr.mxu0 0.0
  %515 = vmatpush1.msra.mxu0 %v174
  %516 = vmatprep.subr.mxu0 0.0
  %517 = vmatpush1.msra.mxu0 %v173
  %518 = vmatprep.subr.mxu0 0.0
  %519 = vmatpush1.msra.mxu0 %v172
  %520 = vmatprep.subr.mxu0 0.0
  %521 = vmatpush1.msra.mxu0 %v171
  %522 = vmatprep.subr.mxu0 0.0
  %523 = vmatpush1.msra.mxu0 %v170
  %524 = vmatprep.subr.mxu0 0.0
  %525 = vmatpush1.msra.mxu0 %v169
  %526 = vmatprep.subr.mxu0 0.0
  %527 = vmatpush1.msra.mxu0 %v168
  %528 = vmatprep.subr.mxu0 0.0
  %529 = vmatpush1.msra.mxu0 %v167
  %530 = vmatprep.subr.mxu0 0.0
  %531 = vmatpush1.msra.mxu0 %v166
  %532 = vmatprep.subr.mxu0 0.0
  %533 = vmatpush1.msra.mxu0 %v165
  %534 = vmatprep.subr.mxu0 0.0
  %535 = vmatpush1.msra.mxu0 %v164
  %536 = vmatprep.subr.mxu0 0.0
  %537 = vmatpush1.msra.mxu0 %v163
  %538 = vmatprep.subr.mxu0 0.0
  %539 = vmatpush1.msra.mxu0 %v162
  %540 = vmatprep.subr.mxu0 0.0
  %541 = vmatpush1.msra.mxu0 %v161
  %542 = vmatprep.subr.mxu0 0.0
  %543 = vmatpush1.msra.mxu0 %v160
  %544 = vmatprep.subr.mxu0 0.0
  %545 = vmatpush1.msra.mxu0 %v159
  %546 = vmatprep.subr.mxu0 0.0
  %547 = vmatpush2.msra.mxu0 %v190
  %548 = vmatprep.subr.mxu0 0.0
  %549 = vmatpush2.msra.mxu0 %v189
  %550 = vmatprep.subr.mxu0 0.0
  %551 = vmatpush2.msra.mxu0 %v188
  %552 = vmatprep.subr.mxu0 0.0
  %553 = vmatpush2.msra.mxu0 %v187
  %554 = vmatprep.subr.mxu0 0.0
  %555 = vmatpush2.msra.mxu0 %v186
  %556 = vmatprep.subr.mxu0 0.0
  %557 = vmatpush2.msra.mxu0 %v185
  %558 = vmatprep.subr.mxu0 0.0
  %559 = vmatpush2.msra.mxu0 %v184
  %560 = vmatprep.subr.mxu0 0.0
  %561 = vmatpush2.msra.mxu0 %v183
  %562 = vmatprep.subr.mxu0 0.0
  %563 = vmatpush2.msra.mxu0 %v182
  %564 = vmatprep.subr.mxu0 0.0
  %565 = vmatpush2.msra.mxu0 %v181
  %566 = vmatprep.subr.mxu0 0.0
  %567 = vmatpush2.msra.mxu0 %v180
  %568 = vmatprep.subr.mxu0 0.0
  %569 = vmatpush2.msra.mxu0 %v179
  %570 = vmatprep.subr.mxu0 0.0
  %571 = vmatpush2.msra.mxu0 %v178
  %572 = vmatprep.subr.mxu0 0.0
  %573 = vmatpush2.msra.mxu0 %v177
  %574 = vmatprep.subr.mxu0 0.0
  %575 = vmatpush2.msra.mxu0 %v176
  %576 = vmatprep.subr.mxu0 0.0
  %577 = vmatpush2.msra.mxu0 %v175
  %578 = vmatprep.mubr.f32.mxu0 %v54
  %579 = vmatmul.mubr.f32.gmra.mxu0 %v53
  %v580 = vpop.f32.mrf.mxu0
  %v581 = vadd.f32 %v496, %v580
  %v582 = vpop.f32.mrf.mxu0
  %583 = vmatprep.mubr.f32.mxu0 %v73
  %584 = vmatmul.mubr.f32.gmra.mxu0 %v72
  %v585 = vpop.f32.mrf.mxu0
  %v586 = vadd.f32 %v501, %v585
  %v587 = vpop.f32.mrf.mxu0
  %588 = vmatprep.mubr.f32.mxu0 %v92
  %589 = vmatmul.mubr.f32.gmra.mxu0 %v91
  %v590 = vpop.f32.mrf.mxu0
  %v591 = vadd.f32 %v506, %v590
  %v592 = vpop.f32.mrf.mxu0
  %593 = vmatprep.mubr.f32.mxu0 %v111
  %594 = vmatmul.mubr.f32.gmra.mxu0 %v110
  %v595 = vpop.f32.mrf.mxu0
  %v596 = vadd.f32 %v511, %v595
  %v597 = vpop.f32.mrf.mxu0
  %598 = vdwg.mxu0
  %599 = vmatprep.subr.mxu0 0.0
  %600 = vmatpush1.msra.mxu0 %v206
  %601 = vmatprep.subr.mxu0 0.0
  %602 = vmatpush1.msra.mxu0 %v205
  %603 = vmatprep.subr.mxu0 0.0
  %604 = vmatpush1.msra.mxu0 %v204
  %605 = vmatprep.subr.mxu0 0.0
  %606 = vmatpush1.msra.mxu0 %v203
  %607 = vmatprep.subr.mxu0 0.0
  %608 = vmatpush1.msra.mxu0 %v202
  %609 = vmatprep.subr.mxu0 0.0
  %610 = vmatpush1.msra.mxu0 %v201
  %611 = vmatprep.subr.mxu0 0.0
  %612 = vmatpush1.msra.mxu0 %v200
  %613 = vmatprep.subr.mxu0 0.0
  %614 = vmatpush1.msra.mxu0 %v199
  %615 = vmatprep.subr.mxu0 0.0
  %616 = vmatpush1.msra.mxu0 %v198
  %617 = vmatprep.subr.mxu0 0.0
  %618 = vmatpush1.msra.mxu0 %v197
  %619 = vmatprep.subr.mxu0 0.0
  %620 = vmatpush1.msra.mxu0 %v196
  %621 = vmatprep.subr.mxu0 0.0
  %622 = vmatpush1.msra.mxu0 %v195
  %623 = vmatprep.subr.mxu0 0.0
  %624 = vmatpush1.msra.mxu0 %v194
  %625 = vmatprep.subr.mxu0 0.0
  %626 = vmatpush1.msra.mxu0 %v193
  %627 = vmatprep.subr.mxu0 0.0
  %628 = vmatpush1.msra.mxu0 %v192
  %629 = vmatprep.subr.mxu0 0.0
  %630 = vmatpush1.msra.mxu0 %v191
  %631 = vmatprep.subr.mxu0 0.0
  %632 = vmatpush2.msra.mxu0 %v222
  %633 = vmatprep.subr.mxu0 0.0
  %634 = vmatpush2.msra.mxu0 %v221
  %635 = vmatprep.subr.mxu0 0.0
  %636 = vmatpush2.msra.mxu0 %v220
  %637 = vmatprep.subr.mxu0 0.0
  %638 = vmatpush2.msra.mxu0 %v219
  %639 = vmatprep.subr.mxu0 0.0
  %640 = vmatpush2.msra.mxu0 %v218
  %641 = vmatprep.subr.mxu0 0.0
  %642 = vmatpush2.msra.mxu0 %v217
  %643 = vmatprep.subr.mxu0 0.0
  %644 = vmatpush2.msra.mxu0 %v216
  %645 = vmatprep.subr.mxu0 0.0
  %646 = vmatpush2.msra.mxu0 %v215
  %647 = vmatprep.subr.mxu0 0.0
  %648 = vmatpush2.msra.mxu0 %v214
  %649 = vmatprep.subr.mxu0 0.0
  %650 = vmatpush2.msra.mxu0 %v213
  %651 = vmatprep.subr.mxu0 0.0
  %652 = vmatpush2.msra.mxu0 %v212
  %653 = vmatprep.subr.mxu0 0.0
  %654 = vmatpush2.msra.mxu0 %v211
  %655 = vmatprep.subr.mxu0 0.0
  %656 = vmatpush2.msra.mxu0 %v210
  %657 = vmatprep.subr.mxu0 0.0
  %658 = vmatpush2.msra.mxu0 %v209
  %659 = vmatprep.subr.mxu0 0.0
  %660 = vmatpush2.msra.mxu0 %v208
  %661 = vmatprep.subr.mxu0 0.0
  %662 = vmatpush2.msra.mxu0 %v207
  %663 = vmatprep.mubr.f32.mxu0 %v56
  %664 = vmatmul.mubr.f32.gmra.mxu0 %v55
  %v665 = vpop.f32.mrf.mxu0
  %v666 = vadd.f32 %v581, %v665
  %v667 = vpop.f32.mrf.mxu0
  %668 = vmatprep.mubr.f32.mxu0 %v75
  %669 = vmatmul.mubr.f32.gmra.mxu0 %v74
  %v670 = vpop.f32.mrf.mxu0
  %v671 = vadd.f32 %v586, %v670
  %v672 = vpop.f32.mrf.mxu0
  %673 = vmatprep.mubr.f32.mxu0 %v94
  %674 = vmatmul.mubr.f32.gmra.mxu0 %v93
  %v675 = vpop.f32.mrf.mxu0
  %v676 = vadd.f32 %v591, %v675
  %v677 = vpop.f32.mrf.mxu0
  %678 = vmatprep.mubr.f32.mxu0 %v113
  %679 = vmatmul.mubr.f32.gmra.mxu0 %v112
  %v680 = vpop.f32.mrf.mxu0
  %v681 = vadd.f32 %v596, %v680
  %v682 = vpop.f32.mrf.mxu0
  %683 = vdwg.mxu0
  %684 = vmatprep.subr.mxu0 0.0
  %685 = vmatpush1.msra.mxu0 %v238
  %686 = vmatprep.subr.mxu0 0.0
  %687 = vmatpush1.msra.mxu0 %v237
  %688 = vmatprep.subr.mxu0 0.0
  %689 = vmatpush1.msra.mxu0 %v236
  %690 = vmatprep.subr.mxu0 0.0
  %691 = vmatpush1.msra.mxu0 %v235
  %692 = vmatprep.subr.mxu0 0.0
  %693 = vmatpush1.msra.mxu0 %v234
  %694 = vmatprep.subr.mxu0 0.0
  %695 = vmatpush1.msra.mxu0 %v233
  %696 = vmatprep.subr.mxu0 0.0
  %697 = vmatpush1.msra.mxu0 %v232
  %698 = vmatprep.subr.mxu0 0.0
  %699 = vmatpush1.msra.mxu0 %v231
  %700 = vmatprep.subr.mxu0 0.0
  %701 = vmatpush1.msra.mxu0 %v230
  %702 = vmatprep.subr.mxu0 0.0
  %703 = vmatpush1.msra.mxu0 %v229
  %704 = vmatprep.subr.mxu0 0.0
  %705 = vmatpush1.msra.mxu0 %v228
  %706 = vmatprep.subr.mxu0 0.0
  %707 = vmatpush1.msra.mxu0 %v227
  %708 = vmatprep.subr.mxu0 0.0
  %709 = vmatpush1.msra.mxu0 %v226
  %710 = vmatprep.subr.mxu0 0.0
  %711 = vmatpush1.msra.mxu0 %v225
  %712 = vmatprep.subr.mxu0 0.0
  %713 = vmatpush1.msra.mxu0 %v224
  %714 = vmatprep.subr.mxu0 0.0
  %715 = vmatpush1.msra.mxu0 %v223
  %716 = vmatprep.subr.mxu0 0.0
  %717 = vmatpush2.msra.mxu0 %v254
  %718 = vmatprep.subr.mxu0 0.0
  %719 = vmatpush2.msra.mxu0 %v253
  %720 = vmatprep.subr.mxu0 0.0
  %721 = vmatpush2.msra.mxu0 %v252
  %722 = vmatprep.subr.mxu0 0.0
  %723 = vmatpush2.msra.mxu0 %v251
  %724 = vmatprep.subr.mxu0 0.0
  %725 = vmatpush2.msra.mxu0 %v250
  %726 = vmatprep.subr.mxu0 0.0
  %727 = vmatpush2.msra.mxu0 %v249
  %728 = vmatprep.subr.mxu0 0.0
  %729 = vmatpush2.msra.mxu0 %v248
  %730 = vmatprep.subr.mxu0 0.0
  %731 = vmatpush2.msra.mxu0 %v247
  %732 = vmatprep.subr.mxu0 0.0
  %733 = vmatpush2.msra.mxu0 %v246
  %734 = vmatprep.subr.mxu0 0.0
  %735 = vmatpush2.msra.mxu0 %v245
  %736 = vmatprep.subr.mxu0 0.0
  %737 = vmatpush2.msra.mxu0 %v244
  %738 = vmatprep.subr.mxu0 0.0
  %739 = vmatpush2.msra.mxu0 %v243
  %740 = vmatprep.subr.mxu0 0.0
  %741 = vmatpush2.msra.mxu0 %v242
  %742 = vmatprep.subr.mxu0 0.0
  %743 = vmatpush2.msra.mxu0 %v241
  %744 = vmatprep.subr.mxu0 0.0
  %745 = vmatpush2.msra.mxu0 %v240
  %746 = vmatprep.subr.mxu0 0.0
  %747 = vmatpush2.msra.mxu0 %v239
  %748 = vmatprep.mubr.f32.mxu0 %v58
  %749 = vmatmul.mubr.f32.gmra.mxu0 %v57
  %v750 = vpop.f32.mrf.mxu0
  %v751 = vadd.f32 %v666, %v750
  %v752 = vpop.f32.mrf.mxu0
  %753 = vmatprep.mubr.f32.mxu0 %v77
  %754 = vmatmul.mubr.f32.gmra.mxu0 %v76
  %v755 = vpop.f32.mrf.mxu0
  %v756 = vadd.f32 %v671, %v755
  %v757 = vpop.f32.mrf.mxu0
  %758 = vmatprep.mubr.f32.mxu0 %v96
  %759 = vmatmul.mubr.f32.gmra.mxu0 %v95
  %v760 = vpop.f32.mrf.mxu0
  %v761 = vadd.f32 %v676, %v760
  %v762 = vpop.f32.mrf.mxu0
  %763 = vmatprep.mubr.f32.mxu0 %v115
  %764 = vmatmul.mubr.f32.gmra.mxu0 %v114
  %v765 = vpop.f32.mrf.mxu0
  %v766 = vadd.f32 %v681, %v765
  %v767 = vpop.f32.mrf.mxu0
  %768 = vdwg.mxu0
  %769 = vmatprep.subr.mxu0 0.0
  %770 = vmatpush1.msra.mxu0 %v270
  %771 = vmatprep.subr.mxu0 0.0
  %772 = vmatpush1.msra.mxu0 %v269
  %773 = vmatprep.subr.mxu0 0.0
  %774 = vmatpush1.msra.mxu0 %v268
  %775 = vmatprep.subr.mxu0 0.0
  %776 = vmatpush1.msra.mxu0 %v267
  %777 = vmatprep.subr.mxu0 0.0
  %778 = vmatpush1.msra.mxu0 %v266
  %779 = vmatprep.subr.mxu0 0.0
  %780 = vmatpush1.msra.mxu0 %v265
  %781 = vmatprep.subr.mxu0 0.0
  %782 = vmatpush1.msra.mxu0 %v264
  %783 = vmatprep.subr.mxu0 0.0
  %784 = vmatpush1.msra.mxu0 %v263
  %785 = vmatprep.subr.mxu0 0.0
  %786 = vmatpush1.msra.mxu0 %v262
  %787 = vmatprep.subr.mxu0 0.0
  %788 = vmatpush1.msra.mxu0 %v261
  %789 = vmatprep.subr.mxu0 0.0
  %790 = vmatpush1.msra.mxu0 %v260
  %791 = vmatprep.subr.mxu0 0.0
  %792 = vmatpush1.msra.mxu0 %v259
  %793 = vmatprep.subr.mxu0 0.0
  %794 = vmatpush1.msra.mxu0 %v258
  %795 = vmatprep.subr.mxu0 0.0
  %796 = vmatpush1.msra.mxu0 %v257
  %797 = vmatprep.subr.mxu0 0.0
  %798 = vmatpush1.msra.mxu0 %v256
  %799 = vmatprep.subr.mxu0 0.0
  %800 = vmatpush1.msra.mxu0 %v255
  %801 = vmatprep.subr.mxu0 0.0
  %802 = vmatpush2.msra.mxu0 %v286
  %803 = vmatprep.subr.mxu0 0.0
  %804 = vmatpush2.msra.mxu0 %v285
  %805 = vmatprep.subr.mxu0 0.0
  %806 = vmatpush2.msra.mxu0 %v284
  %807 = vmatprep.subr.mxu0 0.0
  %808 = vmatpush2.msra.mxu0 %v283
  %809 = vmatprep.subr.mxu0 0.0
  %810 = vmatpush2.msra.mxu0 %v282
  %811 = vmatprep.subr.mxu0 0.0
  %812 = vmatpush2.msra.mxu0 %v281
  %813 = vmatprep.subr.mxu0 0.0
  %814 = vmatpush2.msra.mxu0 %v280
  %815 = vmatprep.subr.mxu0 0.0
  %816 = vmatpush2.msra.mxu0 %v279
  %817 = vmatprep.subr.mxu0 0.0
  %818 = vmatpush2.msra.mxu0 %v278
  %819 = vmatprep.subr.mxu0 0.0
  %820 = vmatpush2.msra.mxu0 %v277
  %821 = vmatprep.subr.mxu0 0.0
  %822 = vmatpush2.msra.mxu0 %v276
  %823 = vmatprep.subr.mxu0 0.0
  %824 = vmatpush2.msra.mxu0 %v275
  %825 = vmatprep.subr.mxu0 0.0
  %826 = vmatpush2.msra.mxu0 %v274
  %827 = vmatprep.subr.mxu0 0.0
  %828 = vmatpush2.msra.mxu0 %v273
  %829 = vmatprep.subr.mxu0 0.0
  %830 = vmatpush2.msra.mxu0 %v272
  %831 = vmatprep.subr.mxu0 0.0
  %832 = vmatpush2.msra.mxu0 %v271
  %833 = vmatprep.mubr.f32.mxu0 %v60
  %834 = vmatmul.mubr.f32.gmra.mxu0 %v59
  %v835 = vpop.f32.mrf.mxu0
  %v836 = vadd.f32 %v751, %v835
  %v837 = vpop.f32.mrf.mxu0
  %838 = vmatprep.mubr.f32.mxu0 %v79
  %839 = vmatmul.mubr.f32.gmra.mxu0 %v78
  %v840 = vpop.f32.mrf.mxu0
  %v841 = vadd.f32 %v756, %v840
  %v842 = vpop.f32.mrf.mxu0
  %843 = vmatprep.mubr.f32.mxu0 %v98
  %844 = vmatmul.mubr.f32.gmra.mxu0 %v97
  %v845 = vpop.f32.mrf.mxu0
  %v846 = vadd.f32 %v761, %v845
  %v847 = vpop.f32.mrf.mxu0
  %848 = vmatprep.mubr.f32.mxu0 %v117
  %849 = vmatmul.mubr.f32.gmra.mxu0 %v116
  %v850 = vpop.f32.mrf.mxu0
  %v851 = vadd.f32 %v766, %v850
  %v852 = vpop.f32.mrf.mxu0
  %853 = vdwg.mxu0
  %854 = vmatprep.subr.mxu0 0.0
  %855 = vmatpush1.msra.mxu0 %v302
  %856 = vmatprep.subr.mxu0 0.0
  %857 = vmatpush1.msra.mxu0 %v301
  %858 = vmatprep.subr.mxu0 0.0
  %859 = vmatpush1.msra.mxu0 %v300
  %860 = vmatprep.subr.mxu0 0.0
  %861 = vmatpush1.msra.mxu0 %v299
  %862 = vmatprep.subr.mxu0 0.0
  %863 = vmatpush1.msra.mxu0 %v298
  %864 = vmatprep.subr.mxu0 0.0
  %865 = vmatpush1.msra.mxu0 %v297
  %866 = vmatprep.subr.mxu0 0.0
  %867 = vmatpush1.msra.mxu0 %v296
  %868 = vmatprep.subr.mxu0 0.0
  %869 = vmatpush1.msra.mxu0 %v295
  %870 = vmatprep.subr.mxu0 0.0
  %871 = vmatpush1.msra.mxu0 %v294
  %872 = vmatprep.subr.mxu0 0.0
  %873 = vmatpush1.msra.mxu0 %v293
  %874 = vmatprep.subr.mxu0 0.0
  %875 = vmatpush1.msra.mxu0 %v292
  %876 = vmatprep.subr.mxu0 0.0
  %877 = vmatpush1.msra.mxu0 %v291
  %878 = vmatprep.subr.mxu0 0.0
  %879 = vmatpush1.msra.mxu0 %v290
  %880 = vmatprep.subr.mxu0 0.0
  %881 = vmatpush1.msra.mxu0 %v289
  %882 = vmatprep.subr.mxu0 0.0
  %883 = vmatpush1.msra.mxu0 %v288
  %884 = vmatprep.subr.mxu0 0.0
  %885 = vmatpush1.msra.mxu0 %v287
  %886 = vmatprep.subr.mxu0 0.0
  %887 = vmatpush2.msra.mxu0 %v318
  %888 = vmatprep.subr.mxu0 0.0
  %889 = vmatpush2.msra.mxu0 %v317
  %890 = vmatprep.subr.mxu0 0.0
  %891 = vmatpush2.msra.mxu0 %v316
  %892 = vmatprep.subr.mxu0 0.0
  %893 = vmatpush2.msra.mxu0 %v315
  %894 = vmatprep.subr.mxu0 0.0
  %895 = vmatpush2.msra.mxu0 %v314
  %896 = vmatprep.subr.mxu0 0.0
  %897 = vmatpush2.msra.mxu0 %v313
  %898 = vmatprep.subr.mxu0 0.0
  %899 = vmatpush2.msra.mxu0 %v312
  %900 = vmatprep.subr.mxu0 0.0
  %901 = vmatpush2.msra.mxu0 %v311
  %902 = vmatprep.subr.mxu0 0.0
  %903 = vmatpush2.msra.mxu0 %v310
  %904 = vmatprep.subr.mxu0 0.0
  %905 = vmatpush2.msra.mxu0 %v309
  %906 = vmatprep.subr.mxu0 0.0
  %907 = vmatpush2.msra.mxu0 %v308
  %908 = vmatprep.subr.mxu0 0.0
  %909 = vmatpush2.msra.mxu0 %v307
  %910 = vmatprep.subr.mxu0 0.0
  %911 = vmatpush2.msra.mxu0 %v306
  %912 = vmatprep.subr.mxu0 0.0
  %913 = vmatpush2.msra.mxu0 %v305
  %914 = vmatprep.subr.mxu0 0.0
  %915 = vmatpush2.msra.mxu0 %v304
  %916 = vmatprep.subr.mxu0 0.0
  %917 = vmatpush2.msra.mxu0 %v303
  %918 = vmatprep.mubr.f32.mxu0 %v62
  %919 = vmatmul.mubr.f32.gmra.mxu0 %v61
  %v920 = vpop.f32.mrf.mxu0
  %v921 = vadd.f32 %v836, %v920
  %v922 = vpop.f32.mrf.mxu0
  %923 = vmatprep.mubr.f32.mxu0 %v81
  %924 = vmatmul.mubr.f32.gmra.mxu0 %v80
  %v925 = vpop.f32.mrf.mxu0
  %v926 = vadd.f32 %v841, %v925
  %v927 = vpop.f32.mrf.mxu0
  %928 = vmatprep.mubr.f32.mxu0 %v100
  %929 = vmatmul.mubr.f32.gmra.mxu0 %v99
  %v930 = vpop.f32.mrf.mxu0
  %v931 = vadd.f32 %v846, %v930
  %v932 = vpop.f32.mrf.mxu0
  %933 = vmatprep.mubr.f32.mxu0 %v119
  %934 = vmatmul.mubr.f32.gmra.mxu0 %v118
  %v935 = vpop.f32.mrf.mxu0
  %v936 = vadd.f32 %v851, %v935
  %v937 = vpop.f32.mrf.mxu0
  %938 = vdwg.mxu0
  %939 = vmatprep.subr.mxu0 0.0
  %940 = vmatpush1.msra.mxu0 %v334
  %941 = vmatprep.subr.mxu0 0.0
  %942 = vmatpush1.msra.mxu0 %v333
  %943 = vmatprep.subr.mxu0 0.0
  %944 = vmatpush1.msra.mxu0 %v332
  %945 = vmatprep.subr.mxu0 0.0
  %946 = vmatpush1.msra.mxu0 %v331
  %947 = vmatprep.subr.mxu0 0.0
  %948 = vmatpush1.msra.mxu0 %v330
  %949 = vmatprep.subr.mxu0 0.0
  %950 = vmatpush1.msra.mxu0 %v329
  %951 = vmatprep.subr.mxu0 0.0
  %952 = vmatpush1.msra.mxu0 %v328
  %953 = vmatprep.subr.mxu0 0.0
  %954 = vmatpush1.msra.mxu0 %v327
  %955 = vmatprep.subr.mxu0 0.0
  %956 = vmatpush1.msra.mxu0 %v326
  %957 = vmatprep.subr.mxu0 0.0
  %958 = vmatpush1.msra.mxu0 %v325
  %959 = vmatprep.subr.mxu0 0.0
  %960 = vmatpush1.msra.mxu0 %v324
  %961 = vmatprep.subr.mxu0 0.0
  %962 = vmatpush1.msra.mxu0 %v323
  %963 = vmatprep.subr.mxu0 0.0
  %964 = vmatpush1.msra.mxu0 %v322
  %965 = vmatprep.subr.mxu0 0.0
  %966 = vmatpush1.msra.mxu0 %v321
  %967 = vmatprep.subr.mxu0 0.0
  %968 = vmatpush1.msra.mxu0 %v320
  %969 = vmatprep.subr.mxu0 0.0
  %970 = vmatpush1.msra.mxu0 %v319
  %971 = vmatprep.subr.mxu0 0.0
  %972 = vmatpush2.msra.mxu0 %v350
  %973 = vmatprep.subr.mxu0 0.0
  %974 = vmatpush2.msra.mxu0 %v349
  %975 = vmatprep.subr.mxu0 0.0
  %976 = vmatpush2.msra.mxu0 %v348
  %977 = vmatprep.subr.mxu0 0.0
  %978 = vmatpush2.msra.mxu0 %v347
  %979 = vmatprep.subr.mxu0 0.0
  %980 = vmatpush2.msra.mxu0 %v346
  %981 = vmatprep.subr.mxu0 0.0
  %982 = vmatpush2.msra.mxu0 %v345
  %983 = vmatprep.subr.mxu0 0.0
  %984 = vmatpush2.msra.mxu0 %v344
  %985 = vmatprep.subr.mxu0 0.0
  %986 = vmatpush2.msra.mxu0 %v343
  %987 = vmatprep.subr.mxu0 0.0
  %988 = vmatpush2.msra.mxu0 %v342
  %989 = vmatprep.subr.mxu0 0.0
  %990 = vmatpush2.msra.mxu0 %v341
  %991 = vmatprep.subr.mxu0 0.0
  %992 = vmatpush2.msra.mxu0 %v340
  %993 = vmatprep.subr.mxu0 0.0
  %994 = vmatpush2.msra.mxu0 %v339
  %995 = vmatprep.subr.mxu0 0.0
  %996 = vmatpush2.msra.mxu0 %v338
  %997 = vmatprep.subr.mxu0 0.0
  %998 = vmatpush2.msra.mxu0 %v337
  %999 = vmatprep.subr.mxu0 0.0
  %1000 = vmatpush2.msra.mxu0 %v336
  %1001 = vmatprep.subr.mxu0 0.0
  %1002 = vmatpush2.msra.mxu0 %v335
  %1003 = vmatprep.mubr.f32.mxu0 %v64
  %1004 = vmatmul.mubr.f32.gmra.mxu0 %v63
  %v1005 = vpop.f32.mrf.mxu0
  %v1006 = vadd.f32 %v921, %v1005
  %v1007 = vpop.f32.mrf.mxu0
  %1008 = vmatprep.mubr.f32.mxu0 %v83
  %1009 = vmatmul.mubr.f32.gmra.mxu0 %v82
  %v1010 = vpop.f32.mrf.mxu0
  %v1011 = vadd.f32 %v926, %v1010
  %v1012 = vpop.f32.mrf.mxu0
  %1013 = vmatprep.mubr.f32.mxu0 %v102
  %1014 = vmatmul.mubr.f32.gmra.mxu0 %v101
  %v1015 = vpop.f32.mrf.mxu0
  %v1016 = vadd.f32 %v931, %v1015
  %v1017 = vpop.f32.mrf.mxu0
  %1018 = vmatprep.mubr.f32.mxu0 %v121
  %1019 = vmatmul.mubr.f32.gmra.mxu0 %v120
  %v1020 = vpop.f32.mrf.mxu0
  %v1021 = vadd.f32 %v936, %v1020
  %v1022 = vpop.f32.mrf.mxu0
  %1023 = vdwg.mxu0
  %1024 = vmatprep.subr.mxu0 0.0
  %1025 = vmatpush1.msra.mxu0 %v366
  %1026 = vmatprep.subr.mxu0 0.0
  %1027 = vmatpush1.msra.mxu0 %v365
  %1028 = vmatprep.subr.mxu0 0.0
  %1029 = vmatpush1.msra.mxu0 %v364
  %1030 = vmatprep.subr.mxu0 0.0
  %1031 = vmatpush1.msra.mxu0 %v363
  %1032 = vmatprep.subr.mxu0 0.0
  %1033 = vmatpush1.msra.mxu0 %v362
  %1034 = vmatprep.subr.mxu0 0.0
  %1035 = vmatpush1.msra.mxu0 %v361
  %1036 = vmatprep.subr.mxu0 0.0
  %1037 = vmatpush1.msra.mxu0 %v360
  %1038 = vmatprep.subr.mxu0 0.0
  %1039 = vmatpush1.msra.mxu0 %v359
  %1040 = vmatprep.subr.mxu0 0.0
  %1041 = vmatpush1.msra.mxu0 %v358
  %1042 = vmatprep.subr.mxu0 0.0
  %1043 = vmatpush1.msra.mxu0 %v357
  %1044 = vmatprep.subr.mxu0 0.0
  %1045 = vmatpush1.msra.mxu0 %v356
  %1046 = vmatprep.subr.mxu0 0.0
  %1047 = vmatpush1.msra.mxu0 %v355
  %1048 = vmatprep.subr.mxu0 0.0
  %1049 = vmatpush1.msra.mxu0 %v354
  %1050 = vmatprep.subr.mxu0 0.0
  %1051 = vmatpush1.msra.mxu0 %v353
  %1052 = vmatprep.subr.mxu0 0.0
  %1053 = vmatpush1.msra.mxu0 %v352
  %1054 = vmatprep.subr.mxu0 0.0
  %1055 = vmatpush1.msra.mxu0 %v351
  %1056 = vmatprep.subr.mxu0 0.0
  %1057 = vmatpush2.msra.mxu0 %v382
  %1058 = vmatprep.subr.mxu0 0.0
  %1059 = vmatpush2.msra.mxu0 %v381
  %1060 = vmatprep.subr.mxu0 0.0
  %1061 = vmatpush2.msra.mxu0 %v380
  %1062 = vmatprep.subr.mxu0 0.0
  %1063 = vmatpush2.msra.mxu0 %v379
  %1064 = vmatprep.subr.mxu0 0.0
  %1065 = vmatpush2.msra.mxu0 %v378
  %1066 = vmatprep.subr.mxu0 0.0
  %1067 = vmatpush2.msra.mxu0 %v377
  %1068 = vmatprep.subr.mxu0 0.0
  %1069 = vmatpush2.msra.mxu0 %v376
  %1070 = vmatprep.subr.mxu0 0.0
  %1071 = vmatpush2.msra.mxu0 %v375
  %1072 = vmatprep.subr.mxu0 0.0
  %1073 = vmatpush2.msra.mxu0 %v374
  %1074 = vmatprep.subr.mxu0 0.0
  %1075 = vmatpush2.msra.mxu0 %v373
  %1076 = vmatprep.subr.mxu0 0.0
  %1077 = vmatpush2.msra.mxu0 %v372
  %1078 = vmatprep.subr.mxu0 0.0
  %1079 = vmatpush2.msra.mxu0 %v371
  %1080 = vmatprep.subr.mxu0 0.0
  %1081 = vmatpush2.msra.mxu0 %v370
  %1082 = vmatprep.subr.mxu0 0.0
  %1083 = vmatpush2.msra.mxu0 %v369
  %1084 = vmatprep.subr.mxu0 0.0
  %1085 = vmatpush2.msra.mxu0 %v368
  %1086 = vmatprep.subr.mxu0 0.0
  %1087 = vmatpush2.msra.mxu0 %v367
  %1088 = vmatprep.mubr.f32.mxu0 %v66
  %1089 = vmatmul.mubr.f32.gmra.mxu0 %v65
  %v1090 = vpop.f32.mrf.mxu0
  %v1091 = vadd.f32 %v1006, %v1090
  %v1092 = vpop.f32.mrf.mxu0
  %1093 = vmatprep.mubr.f32.mxu0 %v85
  %1094 = vmatmul.mubr.f32.gmra.mxu0 %v84
  %v1095 = vpop.f32.mrf.mxu0
  %v1096 = vadd.f32 %v1011, %v1095
  %v1097 = vpop.f32.mrf.mxu0
  %1098 = vmatprep.mubr.f32.mxu0 %v104
  %1099 = vmatmul.mubr.f32.gmra.mxu0 %v103
  %v1100 = vpop.f32.mrf.mxu0
  %v1101 = vadd.f32 %v1016, %v1100
  %v1102 = vpop.f32.mrf.mxu0
  %1103 = vmatprep.mubr.f32.mxu0 %v123
  %1104 = vmatmul.mubr.f32.gmra.mxu0 %v122
  %v1105 = vpop.f32.mrf.mxu0
  %v1106 = vadd.f32 %v1021, %v1105
  %v1107 = vpop.f32.mrf.mxu0
  %1108 = vdwg.mxu0
  %1109 = vmatprep.subr.mxu0 0.0
  %1110 = vmatpush1.msra.mxu0 %v398
  %1111 = vmatprep.subr.mxu0 0.0
  %1112 = vmatpush1.msra.mxu0 %v397
  %1113 = vmatprep.subr.mxu0 0.0
  %1114 = vmatpush1.msra.mxu0 %v396
  %1115 = vmatprep.subr.mxu0 0.0
  %1116 = vmatpush1.msra.mxu0 %v395
  %1117 = vmatprep.subr.mxu0 0.0
  %1118 = vmatpush1.msra.mxu0 %v394
  %1119 = vmatprep.subr.mxu0 0.0
  %1120 = vmatpush1.msra.mxu0 %v393
  %1121 = vmatprep.subr.mxu0 0.0
  %1122 = vmatpush1.msra.mxu0 %v392
  %1123 = vmatprep.subr.mxu0 0.0
  %1124 = vmatpush1.msra.mxu0 %v391
  %1125 = vmatprep.subr.mxu0 0.0
  %1126 = vmatpush1.msra.mxu0 %v390
  %1127 = vmatprep.subr.mxu0 0.0
  %1128 = vmatpush1.msra.mxu0 %v389
  %1129 = vmatprep.subr.mxu0 0.0
  %1130 = vmatpush1.msra.mxu0 %v388
  %1131 = vmatprep.subr.mxu0 0.0
  %1132 = vmatpush1.msra.mxu0 %v387
  %1133 = vmatprep.subr.mxu0 0.0
  %1134 = vmatpush1.msra.mxu0 %v386
  %1135 = vmatprep.subr.mxu0 0.0
  %1136 = vmatpush1.msra.mxu0 %v385
  %1137 = vmatprep.subr.mxu0 0.0
  %1138 = vmatpush1.msra.mxu0 %v384
  %1139 = vmatprep.subr.mxu0 0.0
  %1140 = vmatpush1.msra.mxu0 %v383
  %1141 = vmatprep.subr.mxu0 0.0
  %1142 = vmatpush2.msra.mxu0 %v414
  %1143 = vmatprep.subr.mxu0 0.0
  %1144 = vmatpush2.msra.mxu0 %v413
  %1145 = vmatprep.subr.mxu0 0.0
  %1146 = vmatpush2.msra.mxu0 %v412
  %1147 = vmatprep.subr.mxu0 0.0
  %1148 = vmatpush2.msra.mxu0 %v411
  %1149 = vmatprep.subr.mxu0 0.0
  %1150 = vmatpush2.msra.mxu0 %v410
  %1151 = vmatprep.subr.mxu0 0.0
  %1152 = vmatpush2.msra.mxu0 %v409
  %1153 = vmatprep.subr.mxu0 0.0
  %1154 = vmatpush2.msra.mxu0 %v408
  %1155 = vmatprep.subr.mxu0 0.0
  %1156 = vmatpush2.msra.mxu0 %v407
  %1157 = vmatprep.subr.mxu0 0.0
  %1158 = vmatpush2.msra.mxu0 %v406
  %1159 = vmatprep.subr.mxu0 0.0
  %1160 = vmatpush2.msra.mxu0 %v405
  %1161 = vmatprep.subr.mxu0 0.0
  %1162 = vmatpush2.msra.mxu0 %v404
  %1163 = vmatprep.subr.mxu0 0.0
  %1164 = vmatpush2.msra.mxu0 %v403
  %1165 = vmatprep.subr.mxu0 0.0
  %1166 = vmatpush2.msra.mxu0 %v402
  %1167 = vmatprep.subr.mxu0 0.0
  %1168 = vmatpush2.msra.mxu0 %v401
  %1169 = vmatprep.subr.mxu0 0.0
  %1170 = vmatpush2.msra.mxu0 %v400
  %1171 = vmatprep.subr.mxu0 0.0
  %1172 = vmatpush2.msra.mxu0 %v399
  %1173 = vmatprep.mubr.f32.mxu0 %v68
  %1174 = vmatmul.mubr.f32.gmra.mxu0 %v67
  %v1175 = vpop.f32.mrf.mxu0
  %v1176 = vadd.f32 %v1091, %v1175
  %v1177 = vpop.f32.mrf.mxu0
  %1178 = vmatprep.mubr.f32.mxu0 %v87
  %1179 = vmatmul.mubr.f32.gmra.mxu0 %v86
  %v1180 = vpop.f32.mrf.mxu0
  %v1181 = vadd.f32 %v1096, %v1180
  %v1182 = vpop.f32.mrf.mxu0
  %1183 = vmatprep.mubr.f32.mxu0 %v106
  %1184 = vmatmul.mubr.f32.gmra.mxu0 %v105
  %v1185 = vpop.f32.mrf.mxu0
  %v1186 = vadd.f32 %v1101, %v1185
  %v1187 = vpop.f32.mrf.mxu0
  %1188 = vmatprep.mubr.f32.mxu0 %v125
  %1189 = vmatmul.mubr.f32.gmra.mxu0 %v124
  %v1190 = vpop.f32.mrf.mxu0
  %v1191 = vadd.f32 %v1106, %v1190
  %v1192 = vpop.f32.mrf.mxu0
  %1193 = vdwg.mxu0
  %1194 = vmatprep.subr.mxu0 0.0
  %1195 = vmatpush1.msra.mxu0 0.0
  %1196 = vmatprep.subr.mxu0 0.0
  %1197 = vmatpush1.msra.mxu0 0.0
  %1198 = vmatprep.subr.mxu0 0.0
  %1199 = vmatpush1.msra.mxu0 0.0
  %1200 = vmatprep.subr.mxu0 0.0
  %1201 = vmatpush1.msra.mxu0 0.0
  %1202 = vmatprep.subr.mxu0 0.0
  %1203 = vmatpush1.msra.mxu0 0.0
  %1204 = vmatprep.subr.mxu0 0.0
  %1205 = vmatpush1.msra.mxu0 0.0
  %1206 = vmatprep.subr.mxu0 0.0
  %1207 = vmatpush1.msra.mxu0 0.0
  %1208 = vmatprep.subr.mxu0 0.0
  %1209 = vmatpush1.msra.mxu0 0.0
  %1210 = vmatprep.subr.mxu0 0.0
  %1211 = vmatpush1.msra.mxu0 0.0
  %1212 = vmatprep.subr.mxu0 0.0
  %1213 = vmatpush1.msra.mxu0 0.0
  %1214 = vmatprep.subr.mxu0 0.0
  %1215 = vmatpush1.msra.mxu0 0.0
  %1216 = vmatprep.subr.mxu0 0.0
  %1217 = vmatpush1.msra.mxu0 0.0
  %1218 = vmatprep.subr.mxu0 0.0
  %1219 = vmatpush1.msra.mxu0 0.0
  %1220 = vmatprep.subr.mxu0 0.0
  %1221 = vmatpush1.msra.mxu0 0.0
  %1222 = vmatprep.subr.mxu0 0.0
  %1223 = vmatpush1.msra.mxu0 0.0
  %1224 = vmatprep.subr.mxu0 0.0
  %1225 = vmatpush1.msra.mxu0 %v415
  %1226 = vmatprep.subr.mxu0 0.0
  %1227 = vmatpush2.msra.mxu0 0.0
  %1228 = vmatprep.subr.mxu0 0.0
  %1229 = vmatpush2.msra.mxu0 0.0
  %1230 = vmatprep.subr.mxu0 0.0
  %1231 = vmatpush2.msra.mxu0 0.0
  %1232 = vmatprep.subr.mxu0 0.0
  %1233 = vmatpush2.msra.mxu0 0.0
  %1234 = vmatprep.subr.mxu0 0.0
  %1235 = vmatpush2.msra.mxu0 0.0
  %1236 = vmatprep.subr.mxu0 0.0
  %1237 = vmatpush2.msra.mxu0 0.0
  %1238 = vmatprep.subr.mxu0 0.0
  %1239 = vmatpush2.msra.mxu0 0.0
  %1240 = vmatprep.subr.mxu0 0.0
  %1241 = vmatpush2.msra.mxu0 0.0
  %1242 = vmatprep.subr.mxu0 0.0
  %1243 = vmatpush2.msra.mxu0 0.0
  %1244 = vmatprep.subr.mxu0 0.0
  %1245 = vmatpush2.msra.mxu0 0.0
  %1246 = vmatprep.subr.mxu0 0.0
  %1247 = vmatpush2.msra.mxu0 0.0
  %1248 = vmatprep.subr.mxu0 0.0
  %1249 = vmatpush2.msra.mxu0 0.0
  %1250 = vmatprep.subr.mxu0 0.0
  %1251 = vmatpush2.msra.mxu0 0.0
  %1252 = vmatprep.subr.mxu0 0.0
  %1253 = vmatpush2.msra.mxu0 0.0
  %1254 = vmatprep.subr.mxu0 0.0
  %1255 = vmatpush2.msra.mxu0 0.0
  %1256 = vmatprep.subr.mxu0 0.0
  %1257 = vmatpush2.msra.mxu0 0.0
  %1258 = vmatprep.mubr.f32.mxu0 0.0
  %1259 = vmatmul.mubr.f32.gmra.mxu0 %v418
  %v1260 = vpop.f32.mrf.mxu0
  %v1261 = vadd.f32 %v1176, %v1260
  %v1262 = vpop.f32.mrf.mxu0
  %1263 = vmatprep.mubr.f32.mxu0 0.0
  %1264 = vmatmul.mubr.f32.gmra.mxu0 %v421
  %v1265 = vpop.f32.mrf.mxu0
  %v1266 = vadd.f32 %v1181, %v1265
  %v1267 = vpop.f32.mrf.mxu0
  %1268 = vmatprep.mubr.f32.mxu0 0.0
  %1269 = vmatmul.mubr.f32.gmra.mxu0 %v424
  %v1270 = vpop.f32.mrf.mxu0
  %v1271 = vadd.f32 %v1186, %v1270
  %v1272 = vpop.f32.mrf.mxu0
  %1273 = vmatprep.mubr.f32.mxu0 0.0
  %1274 = vmatmul.mubr.f32.gmra.mxu0 %v427
  %v1275 = vpop.f32.mrf.mxu0
  %v1276 = vadd.f32 %v1191, %v1275
  %v1277 = vpop.f32.mrf.mxu0
  %1278 = vdwg.mxu0
  %1279 = vst [vmem:[%s2] sm:$0xff] %v1261
  %1280 = vst [vmem:[%s2 + $0x8] sm:$0xff] %v1266
  %1281 = vst [vmem:[%s2 + $0x10] sm:$0xff] %v1271
  %1282 = vst [vmem:[%s2 + $0x18] sm:$0xff] %v1276
  // Predicated region
  $region10: #{rsnn_forward.2} parent=0 // pred_check
    _
  $region11: #{rsnn_forward.2} parent=0 // pred_check_branch
    %1284 = sbr.rel (0) target = $region13
  $region12: #{rsnn_forward.2} parent=0 // pred_region
    _
  $region13: #{rsnn_forward.2} parent=0 // pred_fallthru
    _
  // Predicated region
  $region14: #{rsnn_forward.2} parent=0 // pred_check
    _
  $region15: #{rsnn_forward.2} parent=0 // pred_check_branch
    %1286 = sbr.rel (0) target = $region17
  $region16: #{rsnn_forward.2} parent=0 // pred_region
    _
  $region17: #{rsnn_forward.2} parent=0 // pred_fallthru
    _

</llo_original>
